<compile_context>
chip_gen: v7x
topology: tpu7x:2x2x1
jax: 0.10.0
libtpu: 0.0.40
codegen_flags: <defaults>
</compile_context>

<pallas_src>
import jax
import jax.numpy as jnp
from jax.experimental import pallas as pl
from jax.experimental.pallas import tpu as pltpu

HIDDEN = 128
INPUT_DIM = 6
NUM_AGENTS = 20
NUM_NBRS = NUM_AGENTS - 1
SEQ = 50
PRED_STEPS = 60
CONV_K = 5
CONV_PAD = 1
# The last Conv1d output position (the only one the decoder consumes) reads
# original timesteps T_TAIL_START..SEQ-1; the final tap hits the right zero-pad.
T_TAIL_START = SEQ + CONV_PAD - CONV_K          # 46
K_VALID = SEQ - T_TAIL_START                    # 4 real conv taps
OUT_PAD = 128                                   # lane-dense decoder output width
TCHUNK = 10                                     # encoder T-pipelining chunk


def _round_up(n, m):
    return ((n + m - 1) // m) * m


def _gate_tanh_dtype():
    # bf16 EUP transcendentals exist on v6e / v7x (~2x f32 throughput); v5e/v4
    # have no bf16 VPU/EUP path, so keep f32 there (also the exact-math path).
    try:
        kind = jax.devices()[0].device_kind.lower()
    except Exception:
        return jnp.float32
    if any(tag in kind for tag in ("v6", "v7", "7x")):
        return jnp.bfloat16
    return jnp.float32


_TANH_DTYPE = _gate_tanh_dtype()


def _lstm_cell(gates, c_prev):
    """LSTM cell where the i/f/o gate columns of `gates` are already scaled by
    0.5 (folded into the weights), so sigmoid(x) = 0.5*tanh(0.5*x)+0.5 needs no
    extra multiply.  Gate order (i, f, g, o) matches torch.nn.LSTM."""
    H = HIDDEN
    t = jnp.tanh(gates.astype(_TANH_DTYPE)).astype(jnp.float32)
    i = 0.5 * t[:, 0:H] + 0.5
    f = 0.5 * t[:, H:2 * H] + 0.5
    g = t[:, 2 * H:3 * H]
    o = 0.5 * t[:, 3 * H:4 * H] + 0.5
    c_new = f * c_prev + i * g
    h_new = o * jnp.tanh(c_new.astype(_TANH_DTYPE)).astype(jnp.float32)
    return h_new, c_new


# ---------------------------------------------------------------------------
# Merged encoder: ego + nbr LSTM in ONE 50-step recurrence (block-diagonal),
# pipelined over T-chunks via the grid; h/c carried in VMEM scratch.
# ---------------------------------------------------------------------------
def make_encoder_kernel(n_ego):
    def encoder_kernel(gx_ref, whh_ref, out_ref, h_sc, c_sc):
        # gx_ref : (TCHUNK, Bp, 4H)  precomputed x @ W_ih + b (gate-prescaled)
        # whh_ref: (2H, 4H)          vstack(Whh_ego, Whh_nbr), gate-prescaled
        # out_ref: (TCHUNK, Bp, H)   hidden states for this chunk
        # h_sc/c_sc: (Bp, H)         recurrent state carried across chunks
        @pl.when(pl.program_id(0) == 0)
        def _init():
            h_sc[...] = jnp.zeros_like(h_sc)
            c_sc[...] = jnp.zeros_like(c_sc)

        Bp = out_ref.shape[1]
        row = jax.lax.broadcasted_iota(jnp.int32, (Bp, 1), 0)
        ego_m = (row < n_ego).astype(jnp.float32)
        nbr_m = 1.0 - ego_m

        def step(t, carry):
            h, c = carry
            # Block-diagonal recurrence: ego rows only see Whh_ego, nbr rows
            # only see Whh_nbr; one K=256 matmul instead of two K=128 ones.
            h_comb = jnp.concatenate([h * ego_m, h * nbr_m], axis=-1)  # (Bp,2H)
            gates = gx_ref[t] + jnp.dot(h_comb, whh_ref[...],
                                        preferred_element_type=jnp.float32)
            h_new, c_new = _lstm_cell(gates, c)
            out_ref[t] = h_new
            return h_new, c_new

        h_fin, c_fin = jax.lax.fori_loop(0, out_ref.shape[0], step,
                                         (h_sc[...], c_sc[...]))
        h_sc[...] = h_fin
        c_sc[...] = c_fin

    return encoder_kernel


def run_encoder(gx, whh_comb, n_ego):
    T, Bp, G = gx.shape
    tc = TCHUNK if T % TCHUNK == 0 else T
    return pl.pallas_call(
        make_encoder_kernel(n_ego),
        out_shape=jax.ShapeDtypeStruct((T, Bp, HIDDEN), jnp.float32),
        grid_spec=pltpu.PrefetchScalarGridSpec(
            num_scalar_prefetch=0,
            grid=(T // tc,),
            in_specs=[
                pl.BlockSpec((tc, Bp, G), lambda i: (i, 0, 0)),
                pl.BlockSpec((2 * HIDDEN, G), lambda i: (0, 0)),
            ],
            out_specs=pl.BlockSpec((tc, Bp, HIDDEN), lambda i: (i, 0, 0)),
            scratch_shapes=[pltpu.VMEM((Bp, HIDDEN), jnp.float32),
                            pltpu.VMEM((Bp, HIDDEN), jnp.float32)],
        ),
        compiler_params=pltpu.CompilerParams(
            dimension_semantics=("arbitrary",)),
    )(gx, whh_comb)


# ---------------------------------------------------------------------------
# Fused decoder: spatial attention (only the K_VALID encoder steps the last
# conv output touches) + last-position Conv1d taps + 60-step autoregressive
# LSTM + output MLP, all in one pallas_call.
# ---------------------------------------------------------------------------
def make_decoder_kernel(n_ego):
    def decoder_kernel(tail_ref, w1_ref, b1_ref, w2_ref, b2_ref,
                       wconv_ref, bconv_ref,
                       wih_ref, wsum_ref, bdec_ref,
                       wo1_ref, bo1_ref, wo2_ref, bo2_ref,
                       out_ref, hh_sc):
        tail = tail_ref[...]                                   # (K_VALID, Bp, H)
        w1 = w1_ref[...]
        b1 = b1_ref[...]
        w2 = w2_ref[...]
        b2 = b2_ref[...]

        # ---- last Conv1d output position (decoder seed x0) ----------------
        x0 = jnp.zeros((n_ego, HIDDEN), jnp.float32) + bconv_ref[...]
        for k in range(K_VALID):                               # static unroll
            ego_k = tail[k, 0:n_ego, :]                        # (b, H)
            x0 = x0 + jnp.dot(ego_k, wconv_ref[k, 0:HIDDEN, :],
                              preferred_element_type=jnp.float32)
            # spatial attention over the 19 neighbors, per batch element
            att_rows = []
            for bi in range(n_ego):                            # static unroll
                r0 = n_ego + bi * NUM_NBRS
                slab = tail[k, r0:r0 + NUM_NBRS, :]            # (19, H)
                hid = jnp.maximum(
                    jnp.dot(slab, w1, preferred_element_type=jnp.float32) + b1,
                    0.0)                                       # (19, 64)
                sc = jnp.sum(hid * w2, axis=-1, keepdims=True) + b2   # (19, 1)
                sc = sc - jnp.max(sc, axis=0, keepdims=True)
                e = jnp.exp(sc)
                wts = e / jnp.sum(e, axis=0, keepdims=True)            # (19, 1)
                att_rows.append(jnp.sum(slab * wts, axis=0, keepdims=True))
            att_k = jnp.concatenate(att_rows, axis=0)          # (b, H)
            x0 = x0 + jnp.dot(att_k, wconv_ref[k, HIDDEN:2 * HIDDEN, :],
                              preferred_element_type=jnp.float32)

        # ---- 60-step autoregressive decoder (x_t == h_{t-1} for t >= 1) ---
        b_dec = bdec_ref[...]
        g0 = jnp.dot(x0, wih_ref[...],
                     preferred_element_type=jnp.float32) + b_dec
        h, c = _lstm_cell(g0, jnp.zeros((n_ego, HIDDEN), jnp.float32))
        hh_sc[0] = h

        def step(t, carry):
            h, c = carry
            gates = jnp.dot(h, wsum_ref[...],
                            preferred_element_type=jnp.float32) + b_dec
            h_new, c_new = _lstm_cell(gates, c)
            hh_sc[t] = h_new
            return h_new, c_new

        jax.lax.fori_loop(1, PRED_STEPS, step, (h, c))

        # ---- output MLP applied once over all steps (lane-dense output) ---
        hs = hh_sc[...].reshape(PRED_STEPS * n_ego, HIDDEN)
        hid = jnp.maximum(
            jnp.dot(hs, wo1_ref[...], preferred_element_type=jnp.float32)
            + bo1_ref[...], 0.0)
        out_ref[...] = (jnp.dot(hid, wo2_ref[...],
                                preferred_element_type=jnp.float32)
                        + bo2_ref[...])

    return decoder_kernel


def _full_spec(shape):
    zeros = (0,) * len(shape)
    return pl.BlockSpec(tuple(shape), lambda *_: zeros)


def run_decoder(tail, kp, n_ego):
    ins = [
        tail,
        kp["attn_w1"], kp["attn_b1"], kp["attn_w2"], kp["attn_b2"],
        kp["conv_w_tail"], kp["conv_b"],
        kp["dec_wih"], kp["dec_wsum"], kp["dec_b"],
        kp["out_w1"], kp["out_b1"], kp["out_w2"], kp["out_b2"],
    ]
    return pl.pallas_call(
        make_decoder_kernel(n_ego),
        out_shape=jax.ShapeDtypeStruct((PRED_STEPS * n_ego, OUT_PAD),
                                       jnp.float32),
        grid_spec=pltpu.PrefetchScalarGridSpec(
            num_scalar_prefetch=0,
            grid=(1,),
            in_specs=[_full_spec(a.shape) for a in ins],
            out_specs=_full_spec((PRED_STEPS * n_ego, OUT_PAD)),
            scratch_shapes=[pltpu.VMEM((PRED_STEPS, n_ego, HIDDEN),
                                       jnp.float32)],
        ),
        compiler_params=pltpu.CompilerParams(
            dimension_semantics=("arbitrary",)),
    )(*ins)


# ---------------------------------------------------------------------------
# Parameters.  Stored in x @ W ("pre-transposed") layout; torch weights would
# be imported as W_ih.T / W_hh.T, conv weight as weight.permute(2, 1, 0).
# ---------------------------------------------------------------------------
def init_params(key):
    def norm(k, shape, scale=0.1):
        return scale * jax.random.normal(k, shape, jnp.float32)

    ks = jax.random.split(key, 19)
    return {
        "ego_lstm": (norm(ks[0], (INPUT_DIM, 4 * HIDDEN)),
                     norm(ks[1], (HIDDEN, 4 * HIDDEN)),
                     norm(ks[2], (1, 4 * HIDDEN))),
        "nbr_lstm": (norm(ks[3], (INPUT_DIM, 4 * HIDDEN)),
                     norm(ks[4], (HIDDEN, 4 * HIDDEN)),
                     norm(ks[5], (1, 4 * HIDDEN))),
        "spatial": (norm(ks[6], (HIDDEN, 64)),
                    norm(ks[7], (1, 64)),
                    norm(ks[8], (1, 64)),
                    norm(ks[9], (1, 1))),
        "conv": (norm(ks[10], (CONV_K, 2 * HIDDEN, HIDDEN)),   # (K, Cin, Cout)
                 norm(ks[11], (1, HIDDEN))),
        "decoder": (norm(ks[12], (HIDDEN, 4 * HIDDEN)),
                    norm(ks[13], (HIDDEN, 4 * HIDDEN)),
                    norm(ks[14], (1, 4 * HIDDEN))),
        "out": (norm(ks[15], (HIDDEN, 64)),
                norm(ks[16], (1, 64)),
                norm(ks[17], (64, 2)),
                norm(ks[18], (1, 2))),
    }


def prepare_params(p):
    """One-time (outside jit) transform to the kernel-ready layout:
      * i/f/o gate columns of all LSTM weights/biases scaled by 0.5, so
        sigmoid(x) = 0.5*tanh(0.5*x)+0.5 needs no in-kernel pre-scale,
      * ego/nbr W_hh stacked for the block-diagonal merged recurrence,
      * decoder W_ih + W_hh pre-summed (decoder feeds h_{t-1} back as x_t),
      * only the K_VALID conv taps that reach the last output position,
      * output head padded to a lane-dense (64, 128) weight (extra cols zero).
    """
    H = HIDDEN

    def fold(w):
        return jnp.concatenate(
            [0.5 * w[..., 0:2 * H], w[..., 2 * H:3 * H],
             0.5 * w[..., 3 * H:4 * H]], axis=-1)

    ego_wih, ego_whh, ego_b = p["ego_lstm"]
    nbr_wih, nbr_whh, nbr_b = p["nbr_lstm"]
    dec_wih, dec_whh, dec_b = p["decoder"]
    conv_w, conv_b = p["conv"]
    w1, b1, w2, b2 = p["spatial"]
    wo1, bo1, wo2, bo2 = p["out"]

    dec_wih_f = fold(dec_wih)
    return {
        "enc_wih_ego": fold(ego_wih), "enc_b_ego": fold(ego_b),
        "enc_wih_nbr": fold(nbr_wih), "enc_b_nbr": fold(nbr_b),
        "enc_whh_comb": jnp.concatenate([fold(ego_whh), fold(nbr_whh)], axis=0),
        "attn_w1": w1, "attn_b1": b1, "attn_w2": w2, "attn_b2": b2,
        "conv_w_tail": conv_w[:K_VALID],                 # (K_VALID, 2H, H)
        "conv_b": conv_b,
        "dec_wih": dec_wih_f,
        "dec_wsum": dec_wih_f + fold(dec_whh),
        "dec_b": fold(dec_b),
        "out_w1": wo1, "out_b1": bo1,
        "out_w2": jnp.pad(wo2, ((0, 0), (0, OUT_PAD - wo2.shape[1]))),
        "out_b2": jnp.pad(bo2, ((0, 0), (0, OUT_PAD - bo2.shape[1]))),
    }


# ---------------------------------------------------------------------------
# Full forward: 2 pallas_calls, thin XLA glue for reshapes / input projection.
# ---------------------------------------------------------------------------
def forward(x, kp):
    batch = x.shape[0] // NUM_AGENTS
    n_ego, n_nbr = batch, batch * NUM_NBRS
    x = x.reshape(batch, NUM_AGENTS, SEQ, INPUT_DIM)
    ego_hist = jnp.transpose(x[:, 0], (1, 0, 2))                    # (T, b, 6)
    nbrs_hist = jnp.transpose(
        x[:, 1:].reshape(n_nbr, SEQ, INPUT_DIM), (1, 0, 2))         # (T, 19b, 6)

    # Input projection hoisted to XLA: lane-dense gx removes the K=6 matmul and
    # the 6->128 lane-padded input DMA from the recurrence kernel.
    gx_ego = jnp.dot(ego_hist, kp["enc_wih_ego"]) + kp["enc_b_ego"]
    gx_nbr = jnp.dot(nbrs_hist, kp["enc_wih_nbr"]) + kp["enc_b_nbr"]
    gx = jnp.concatenate([gx_ego, gx_nbr], axis=1)                  # (T, 20b, 4H)
    rows = NUM_AGENTS * batch
    Bp = _round_up(rows, 8)
    if Bp != rows:
        gx = jnp.pad(gx, ((0, 0), (0, Bp - rows), (0, 0)))

    enc_h = run_encoder(gx, kp["enc_whh_comb"], n_ego)              # (T, Bp, H)

    # Only the last Conv1d output position feeds the decoder, so only the
    # final K_VALID encoder timesteps are needed downstream.
    tail = enc_h[T_TAIL_START:]                                     # (4, Bp, H)
    out = run_decoder(tail, kp, n_ego)                              # (60b, 128)
    preds = out[:, :2].reshape(PRED_STEPS, batch, 2)
    return jnp.transpose(preds, (1, 0, 2))                          # (b, 60, 2)


if __name__ == "__main__":
    key = jax.random.PRNGKey(0)
    pkey, xkey = jax.random.split(key)
    params = init_params(pkey)
    kparams = prepare_params(params)

    batch_size = 2
    x = jax.random.normal(
        xkey, (batch_size * NUM_AGENTS, SEQ, INPUT_DIM), jnp.float32)

    out = jax.jit(forward)(x, kparams)
    out = jax.block_until_ready(out)
    assert out.shape == (batch_size, PRED_STEPS, 2), out.shape
    assert bool(jnp.all(jnp.isfinite(out)))
    print("KERNEL_OK")
</pallas_src>

<mosaic_0001>
module attributes {stable_mosaic.version = 11 : i64} {
  func.func @encoder_kernel(%arg0: i32, %arg1: memref<10x40x512xf32, #tpu.memory_space<vmem>>, %arg2: memref<256x512xf32, #tpu.memory_space<vmem>>, %arg3: memref<10x40x128xf32, #tpu.memory_space<vmem>>, %arg4: memref<40x128xf32, #tpu.memory_space<vmem>>, %arg5: memref<40x128xf32, #tpu.memory_space<vmem>>) attributes {dimension_semantics = [#tpu.dimension_semantics<arbitrary>], iteration_bounds = array<i64: 5>, scalar_prefetch = 0 : i64, scratch_operands = 2 : i64, tpu.core_type = #tpu.core_type<tc>, window_params = [{transform_indices = @transform_0, window_bounds = array<i64: 10, 40, 512>}, {pipeline_mode = #tpu.pipeline_mode<synchronous>, transform_indices = @transform_1, window_bounds = array<i64: 256, 512>}, {transform_indices = @transform_2, window_bounds = array<i64: 10, 40, 128>}]} {
    %c0_i32 = arith.constant 0 : i32
    %0 = arith.cmpi eq, %arg0, %c0_i32 : i32
    %1 = arith.extui %0 : i1 to i32
    %c0_i32_0 = arith.constant 0 : i32
    %2 = arith.cmpi ne, %1, %c0_i32_0 : i32
    scf.if %2 {
      %cst_10 = arith.constant 0.000000e+00 : f32
      %16 = vector.broadcast %cst_10 : f32 to vector<40x128xf32>
      %c0_11 = arith.constant 0 : index
      %c0_12 = arith.constant 0 : index
      %17 = vector.load %arg4[%c0_11, %c0_12] : memref<40x128xf32, #tpu.memory_space<vmem>>, vector<40x128xf32>
      tpu.vector_store %arg4[%c0_11, %c0_12], %16 {strides = array<i32>} : memref<40x128xf32, #tpu.memory_space<vmem>>, vector<40x128xf32>,
      %cst_13 = arith.constant 0.000000e+00 : f32
      %18 = vector.broadcast %cst_13 : f32 to vector<40x128xf32>
      %c0_14 = arith.constant 0 : index
      %c0_15 = arith.constant 0 : index
      %19 = vector.load %arg5[%c0_14, %c0_15] : memref<40x128xf32, #tpu.memory_space<vmem>>, vector<40x128xf32>
      tpu.vector_store %arg5[%c0_14, %c0_15], %18 {strides = array<i32>} : memref<40x128xf32, #tpu.memory_space<vmem>>, vector<40x128xf32>,
    } else {
    }
    %3 = tpu.iota {dimensions = array<i32: 0>} : vector<40x1xi32>
    %c2_i32 = arith.constant 2 : i32
    %4 = vector.broadcast %c2_i32 : i32 to vector<40x1xi32>
    %5 = arith.cmpi slt, %3, %4 : vector<40x1xi32>
    %6 = arith.extui %5 : vector<40x1xi1> to vector<40x1xi32>
    %7 = arith.sitofp %6 : vector<40x1xi32> to vector<40x1xf32>
    %cst = arith.constant 1.000000e+00 : f32
    %8 = vector.broadcast %cst : f32 to vector<40x1xf32>
    %9 = arith.subf %8, %7 : vector<40x1xf32>
    %c0 = arith.constant 0 : index
    %c0_1 = arith.constant 0 : index
    %10 = vector.load %arg4[%c0, %c0_1] : memref<40x128xf32, #tpu.memory_space<vmem>>, vector<40x128xf32>
    %c0_2 = arith.constant 0 : index
    %c0_3 = arith.constant 0 : index
    %11 = vector.load %arg5[%c0_2, %c0_3] : memref<40x128xf32, #tpu.memory_space<vmem>>, vector<40x128xf32>
    %c0_i32_4 = arith.constant 0 : i32
    %c10_i32 = arith.constant 10 : i32
    %12 = arith.addi %c0_i32_4, %c10_i32 : i32
    %c1_i32 = arith.constant 1 : i32
    %13:2 = scf.for %arg6 = %c0_i32_4 to %12 step %c1_i32 iter_args(%arg7 = %10, %arg8 = %11) -> (vector<40x128xf32>, vector<40x128xf32>)  : i32 {
      %16 = vector.broadcast %7 : vector<40x1xf32> to vector<40x128xf32>
      %17 = arith.mulf %arg7, %16 : vector<40x128xf32>
      %18 = vector.broadcast %9 : vector<40x1xf32> to vector<40x128xf32>
      %19 = arith.mulf %arg7, %18 : vector<40x128xf32>
      %20 = tpu.concatenate %17, %19 in 1 : vector<40x128xf32>, vector<40x128xf32> -> vector<40x256xf32>
      %21 = arith.index_cast %arg6 : i32 to index
      %c0_10 = arith.constant 0 : index
      %c0_11 = arith.constant 0 : index
      %22 = vector.load %arg1[%21, %c0_10, %c0_11] : memref<10x40x512xf32, #tpu.memory_space<vmem>>, vector<1x40x512xf32>
      %23 = vector.shape_cast %22 : vector<1x40x512xf32> to vector<40x512xf32>
      %c0_12 = arith.constant 0 : index
      %c0_13 = arith.constant 0 : index
      %24 = vector.load %arg2[%c0_12, %c0_13] : memref<256x512xf32, #tpu.memory_space<vmem>>, vector<256x512xf32>
      %cst_14 = arith.constant dense<0.000000e+00> : vector<40x512xf32>
      %25 = tpu.matmul %20, %24, %cst_14 {dimension_numbers = #tpu.dot_dimension_numbers<[1], [0], [0], [1], [0, 0, 1, 1], [], []>} : vector<40x256xf32>, vector<256x512xf32>, vector<40x512xf32> -> vector<40x512xf32>
      %26 = arith.addf %23, %25 : vector<40x512xf32>
      %27 = math.tanh %26 : vector<40x512xf32>
      %28 = vector.extract_strided_slice %27 {offsets = [0, 0], sizes = [40, 128], strides = [1, 1]} : vector<40x512xf32> to vector<40x128xf32>
      %cst_15 = arith.constant 5.000000e-01 : f32
      %29 = vector.broadcast %cst_15 : f32 to vector<40x128xf32>
      %30 = arith.mulf %29, %28 : vector<40x128xf32>
      %cst_16 = arith.constant 5.000000e-01 : f32
      %31 = vector.broadcast %cst_16 : f32 to vector<40x128xf32>
      %32 = arith.addf %30, %31 : vector<40x128xf32>
      %33 = vector.extract_strided_slice %27 {offsets = [0, 128], sizes = [40, 128], strides = [1, 1]} : vector<40x512xf32> to vector<40x128xf32>
      %cst_17 = arith.constant 5.000000e-01 : f32
      %34 = vector.broadcast %cst_17 : f32 to vector<40x128xf32>
      %35 = arith.mulf %34, %33 : vector<40x128xf32>
      %cst_18 = arith.constant 5.000000e-01 : f32
      %36 = vector.broadcast %cst_18 : f32 to vector<40x128xf32>
      %37 = arith.addf %35, %36 : vector<40x128xf32>
      %38 = vector.extract_strided_slice %27 {offsets = [0, 256], sizes = [40, 128], strides = [1, 1]} : vector<40x512xf32> to vector<40x128xf32>
      %39 = vector.extract_strided_slice %27 {offsets = [0, 384], sizes = [40, 128], strides = [1, 1]} : vector<40x512xf32> to vector<40x128xf32>
      %cst_19 = arith.constant 5.000000e-01 : f32
      %40 = vector.broadcast %cst_19 : f32 to vector<40x128xf32>
      %41 = arith.mulf %40, %39 : vector<40x128xf32>
      %cst_20 = arith.constant 5.000000e-01 : f32
      %42 = vector.broadcast %cst_20 : f32 to vector<40x128xf32>
      %43 = arith.addf %41, %42 : vector<40x128xf32>
      %44 = arith.mulf %37, %arg8 : vector<40x128xf32>
      %45 = arith.mulf %32, %38 : vector<40x128xf32>
      %46 = arith.addf %44, %45 : vector<40x128xf32>
      %47 = math.tanh %46 : vector<40x128xf32>
      %48 = arith.mulf %43, %47 : vector<40x128xf32>
      %49 = arith.index_cast %arg6 : i32 to index
      %c0_21 = arith.constant 0 : index
      %c0_22 = arith.constant 0 : index
      %50 = vector.load %arg3[%49, %c0_21, %c0_22] : memref<10x40x128xf32, #tpu.memory_space<vmem>>, vector<1x40x128xf32>
      %51 = vector.shape_cast %50 : vector<1x40x128xf32> to vector<40x128xf32>
      %52 = vector.shape_cast %48 : vector<40x128xf32> to vector<1x40x128xf32>
      tpu.vector_store %arg3[%49, %c0_21, %c0_22], %52 {strides = array<i32>} : memref<10x40x128xf32, #tpu.memory_space<vmem>>, vector<1x40x128xf32>,
      scf.yield %48, %46 : vector<40x128xf32>, vector<40x128xf32>
    }
    %c10_i32_5 = arith.constant 10 : i32
    %c0_6 = arith.constant 0 : index
    %c0_7 = arith.constant 0 : index
    %14 = vector.load %arg4[%c0_6, %c0_7] : memref<40x128xf32, #tpu.memory_space<vmem>>, vector<40x128xf32>
    tpu.vector_store %arg4[%c0_6, %c0_7], %13#0 {strides = array<i32>} : memref<40x128xf32, #tpu.memory_space<vmem>>, vector<40x128xf32>,
    %c0_8 = arith.constant 0 : index
    %c0_9 = arith.constant 0 : index
    %15 = vector.load %arg5[%c0_8, %c0_9] : memref<40x128xf32, #tpu.memory_space<vmem>>, vector<40x128xf32>
    tpu.vector_store %arg5[%c0_8, %c0_9], %13#1 {strides = array<i32>} : memref<40x128xf32, #tpu.memory_space<vmem>>, vector<40x128xf32>,
    return
  }
  func.func @transform_0(%arg0: i32) -> (i32, i32, i32) {
    %c0_i32 = arith.constant 0 : i32
    %c0_i32_0 = arith.constant 0 : i32
    %c0_i32_1 = arith.constant 0 : i32
    return %arg0, %c0_i32, %c0_i32_0 : i32, i32, i32
  }
  func.func @transform_1(%arg0: i32) -> (i32, i32) {
    %c0_i32 = arith.constant 0 : i32
    %c0_i32_0 = arith.constant 0 : i32
    %c0_i32_1 = arith.constant 0 : i32
    return %c0_i32, %c0_i32_0 : i32, i32
  }
  func.func @transform_2(%arg0: i32) -> (i32, i32, i32) {
    %c0_i32 = arith.constant 0 : i32
    %c0_i32_0 = arith.constant 0 : i32
    %c0_i32_1 = arith.constant 0 : i32
    return %arg0, %c0_i32, %c0_i32_0 : i32, i32, i32
  }
}

module attributes {stable_mosaic.version = 11 : i64} {
  func.func @decoder_kernel(%arg0: i32, %arg1: memref<4x40x128xf32, #tpu.memory_space<vmem>>, %arg2: memref<128x64xf32, #tpu.memory_space<vmem>>, %arg3: memref<1x64xf32, #tpu.memory_space<vmem>>, %arg4: memref<1x64xf32, #tpu.memory_space<vmem>>, %arg5: memref<1x1xf32, #tpu.memory_space<vmem>>, %arg6: memref<4x256x128xf32, #tpu.memory_space<vmem>>, %arg7: memref<1x128xf32, #tpu.memory_space<vmem>>, %arg8: memref<128x512xf32, #tpu.memory_space<vmem>>, %arg9: memref<128x512xf32, #tpu.memory_space<vmem>>, %arg10: memref<1x512xf32, #tpu.memory_space<vmem>>, %arg11: memref<128x64xf32, #tpu.memory_space<vmem>>, %arg12: memref<1x64xf32, #tpu.memory_space<vmem>>, %arg13: memref<64x128xf32, #tpu.memory_space<vmem>>, %arg14: memref<1x128xf32, #tpu.memory_space<vmem>>, %arg15: memref<120x128xf32, #tpu.memory_space<vmem>>, %arg16: memref<60x2x128xf32, #tpu.memory_space<vmem>>) attributes {dimension_semantics = [#tpu.dimension_semantics<arbitrary>], iteration_bounds = array<i64: 1>, scalar_prefetch = 0 : i64, scratch_operands = 1 : i64, tpu.core_type = #tpu.core_type<tc>, window_params = [{pipeline_mode = #tpu.pipeline_mode<synchronous>, transform_indices = @transform_0, window_bounds = array<i64: 4, 40, 128>}, {pipeline_mode = #tpu.pipeline_mode<synchronous>, transform_indices = @transform_1, window_bounds = array<i64: 128, 64>}, {pipeline_mode = #tpu.pipeline_mode<synchronous>, transform_indices = @transform_2, window_bounds = array<i64: 1, 64>}, {pipeline_mode = #tpu.pipeline_mode<synchronous>, transform_indices = @transform_3, window_bounds = array<i64: 1, 64>}, {pipeline_mode = #tpu.pipeline_mode<synchronous>, transform_indices = @transform_4, window_bounds = array<i64: 1, 1>}, {pipeline_mode = #tpu.pipeline_mode<synchronous>, transform_indices = @transform_5, window_bounds = array<i64: 4, 256, 128>}, {pipeline_mode = #tpu.pipeline_mode<synchronous>, transform_indices = @transform_6, window_bounds = array<i64: 1, 128>}, {pipeline_mode = #tpu.pipeline_mode<synchronous>, transform_indices = @transform_7, window_bounds = array<i64: 128, 512>}, {pipeline_mode = #tpu.pipeline_mode<synchronous>, transform_indices = @transform_8, window_bounds = array<i64: 128, 512>}, {pipeline_mode = #tpu.pipeline_mode<synchronous>, transform_indices = @transform_9, window_bounds = array<i64: 1, 512>}, {pipeline_mode = #tpu.pipeline_mode<synchronous>, transform_indices = @transform_10, window_bounds = array<i64: 128, 64>}, {pipeline_mode = #tpu.pipeline_mode<synchronous>, transform_indices = @transform_11, window_bounds = array<i64: 1, 64>}, {pipeline_mode = #tpu.pipeline_mode<synchronous>, transform_indices = @transform_12, window_bounds = array<i64: 64, 128>}, {pipeline_mode = #tpu.pipeline_mode<synchronous>, transform_indices = @transform_13, window_bounds = array<i64: 1, 128>}, {pipeline_mode = #tpu.pipeline_mode<synchronous>, transform_indices = @transform_14, window_bounds = array<i64: 120, 128>}]} {
    %c0 = arith.constant 0 : index
    %c0_0 = arith.constant 0 : index
    %c0_1 = arith.constant 0 : index
    %0 = vector.load %arg1[%c0, %c0_0, %c0_1] : memref<4x40x128xf32, #tpu.memory_space<vmem>>, vector<4x40x128xf32>
    %c0_2 = arith.constant 0 : index
    %c0_3 = arith.constant 0 : index
    %1 = vector.load %arg2[%c0_2, %c0_3] : memref<128x64xf32, #tpu.memory_space<vmem>>, vector<128x64xf32>
    %c0_4 = arith.constant 0 : index
    %c0_5 = arith.constant 0 : index
    %2 = vector.load %arg3[%c0_4, %c0_5] : memref<1x64xf32, #tpu.memory_space<vmem>>, vector<1x64xf32>
    %c0_6 = arith.constant 0 : index
    %c0_7 = arith.constant 0 : index
    %3 = vector.load %arg4[%c0_6, %c0_7] : memref<1x64xf32, #tpu.memory_space<vmem>>, vector<1x64xf32>
    %c0_8 = arith.constant 0 : index
    %c0_9 = arith.constant 0 : index
    %4 = vector.load %arg5[%c0_8, %c0_9] : memref<1x1xf32, #tpu.memory_space<vmem>>, vector<1x1xf32>
    %cst = arith.constant 0.000000e+00 : f32
    %5 = vector.broadcast %cst : f32 to vector<2x128xf32>
    %c0_10 = arith.constant 0 : index
    %c0_11 = arith.constant 0 : index
    %6 = vector.load %arg7[%c0_10, %c0_11] : memref<1x128xf32, #tpu.memory_space<vmem>>, vector<1x128xf32>
    %7 = vector.broadcast %6 : vector<1x128xf32> to vector<2x128xf32>
    %8 = arith.addf %5, %7 : vector<2x128xf32>
    %9 = vector.extract_strided_slice %0 {offsets = [0, 0, 0], sizes = [1, 2, 128], strides = [1, 1, 1]} : vector<4x40x128xf32> to vector<1x2x128xf32>
    %10 = vector.shape_cast %9 : vector<1x2x128xf32> to vector<2x128xf32>
    %c0_12 = arith.constant 0 : index
    %c0_13 = arith.constant 0 : index
    %c0_14 = arith.constant 0 : index
    %11 = vector.load %arg6[%c0_12, %c0_13, %c0_14] : memref<4x256x128xf32, #tpu.memory_space<vmem>>, vector<1x128x128xf32>
    %12 = vector.shape_cast %11 : vector<1x128x128xf32> to vector<128x128xf32>
    %cst_15 = arith.constant dense<0.000000e+00> : vector<2x128xf32>
    %13 = tpu.matmul %10, %12, %cst_15 {dimension_numbers = #tpu.dot_dimension_numbers<[1], [0], [0], [1], [0, 0, 1, 1], [], []>} : vector<2x128xf32>, vector<128x128xf32>, vector<2x128xf32> -> vector<2x128xf32>
    %14 = arith.addf %8, %13 : vector<2x128xf32>
    %15 = vector.extract_strided_slice %0 {offsets = [0, 2, 0], sizes = [1, 19, 128], strides = [1, 1, 1]} : vector<4x40x128xf32> to vector<1x19x128xf32>
    %16 = vector.shape_cast %15 : vector<1x19x128xf32> to vector<19x128xf32>
    %cst_16 = arith.constant dense<0.000000e+00> : vector<19x64xf32>
    %17 = tpu.matmul %16, %1, %cst_16 {dimension_numbers = #tpu.dot_dimension_numbers<[1], [0], [0], [1], [0, 0, 1, 1], [], []>} : vector<19x128xf32>, vector<128x64xf32>, vector<19x64xf32> -> vector<19x64xf32>
    %18 = vector.broadcast %2 : vector<1x64xf32> to vector<19x64xf32>
    %19 = arith.addf %17, %18 : vector<19x64xf32>
    %cst_17 = arith.constant 0.000000e+00 : f32
    %20 = vector.broadcast %cst_17 : f32 to vector<19x64xf32>
    %21 = arith.maximumf %19, %20 : vector<19x64xf32>
    %22 = vector.broadcast %3 : vector<1x64xf32> to vector<19x64xf32>
    %23 = arith.mulf %21, %22 : vector<19x64xf32>
    %cst_18 = arith.constant dense<0.000000e+00> : vector<19xf32>
    %24 = vector.multi_reduction <add>, %23, %cst_18 [1] : vector<19x64xf32> to vector<19xf32>
    %25 = vector.shape_cast %24 : vector<19xf32> to vector<19x1xf32>
    %26 = vector.broadcast %4 : vector<1x1xf32> to vector<19x1xf32>
    %27 = arith.addf %25, %26 : vector<19x1xf32>
    %cst_19 = arith.constant dense<0xFF800000> : vector<1xf32>
    %28 = vector.multi_reduction <maximumf>, %27, %cst_19 [0] : vector<19x1xf32> to vector<1xf32>
    %29 = vector.shape_cast %28 : vector<1xf32> to vector<1x1xf32>
    %30 = vector.broadcast %29 : vector<1x1xf32> to vector<19x1xf32>
    %31 = arith.subf %27, %30 : vector<19x1xf32>
    %32 = math.exp %31 : vector<19x1xf32>
    %cst_20 = arith.constant dense<0.000000e+00> : vector<1xf32>
    %33 = vector.multi_reduction <add>, %32, %cst_20 [0] : vector<19x1xf32> to vector<1xf32>
    %34 = vector.shape_cast %33 : vector<1xf32> to vector<1x1xf32>
    %35 = vector.broadcast %34 : vector<1x1xf32> to vector<19x1xf32>
    %36 = arith.divf %32, %35 : vector<19x1xf32>
    %37 = vector.broadcast %36 : vector<19x1xf32> to vector<19x128xf32>
    %38 = arith.mulf %16, %37 : vector<19x128xf32>
    %cst_21 = arith.constant dense<0.000000e+00> : vector<128xf32>
    %39 = vector.multi_reduction <add>, %38, %cst_21 [0] : vector<19x128xf32> to vector<128xf32>
    %40 = vector.shape_cast %39 : vector<128xf32> to vector<1x128xf32>
    %41 = vector.extract_strided_slice %0 {offsets = [0, 21, 0], sizes = [1, 19, 128], strides = [1, 1, 1]} : vector<4x40x128xf32> to vector<1x19x128xf32>
    %42 = vector.shape_cast %41 : vector<1x19x128xf32> to vector<19x128xf32>
    %cst_22 = arith.constant dense<0.000000e+00> : vector<19x64xf32>
    %43 = tpu.matmul %42, %1, %cst_22 {dimension_numbers = #tpu.dot_dimension_numbers<[1], [0], [0], [1], [0, 0, 1, 1], [], []>} : vector<19x128xf32>, vector<128x64xf32>, vector<19x64xf32> -> vector<19x64xf32>
    %44 = vector.broadcast %2 : vector<1x64xf32> to vector<19x64xf32>
    %45 = arith.addf %43, %44 : vector<19x64xf32>
    %cst_23 = arith.constant 0.000000e+00 : f32
    %46 = vector.broadcast %cst_23 : f32 to vector<19x64xf32>
    %47 = arith.maximumf %45, %46 : vector<19x64xf32>
    %48 = vector.broadcast %3 : vector<1x64xf32> to vector<19x64xf32>
    %49 = arith.mulf %47, %48 : vector<19x64xf32>
    %cst_24 = arith.constant dense<0.000000e+00> : vector<19xf32>
    %50 = vector.multi_reduction <add>, %49, %cst_24 [1] : vector<19x64xf32> to vector<19xf32>
    %51 = vector.shape_cast %50 : vector<19xf32> to vector<19x1xf32>
    %52 = vector.broadcast %4 : vector<1x1xf32> to vector<19x1xf32>
    %53 = arith.addf %51, %52 : vector<19x1xf32>
    %cst_25 = arith.constant dense<0xFF800000> : vector<1xf32>
    %54 = vector.multi_reduction <maximumf>, %53, %cst_25 [0] : vector<19x1xf32> to vector<1xf32>
    %55 = vector.shape_cast %54 : vector<1xf32> to vector<1x1xf32>
    %56 = vector.broadcast %55 : vector<1x1xf32> to vector<19x1xf32>
    %57 = arith.subf %53, %56 : vector<19x1xf32>
    %58 = math.exp %57 : vector<19x1xf32>
    %cst_26 = arith.constant dense<0.000000e+00> : vector<1xf32>
    %59 = vector.multi_reduction <add>, %58, %cst_26 [0] : vector<19x1xf32> to vector<1xf32>
    %60 = vector.shape_cast %59 : vector<1xf32> to vector<1x1xf32>
    %61 = vector.broadcast %60 : vector<1x1xf32> to vector<19x1xf32>
    %62 = arith.divf %58, %61 : vector<19x1xf32>
    %63 = vector.broadcast %62 : vector<19x1xf32> to vector<19x128xf32>
    %64 = arith.mulf %42, %63 : vector<19x128xf32>
    %cst_27 = arith.constant dense<0.000000e+00> : vector<128xf32>
    %65 = vector.multi_reduction <add>, %64, %cst_27 [0] : vector<19x128xf32> to vector<128xf32>
    %66 = vector.shape_cast %65 : vector<128xf32> to vector<1x128xf32>
    %67 = tpu.concatenate %40, %66 in 0 : vector<1x128xf32>, vector<1x128xf32> -> vector<2x128xf32>
    %c0_28 = arith.constant 0 : index
    %c128 = arith.constant 128 : index
    %c0_29 = arith.constant 0 : index
    %68 = vector.load %arg6[%c0_28, %c128, %c0_29] : memref<4x256x128xf32, #tpu.memory_space<vmem>>, vector<1x128x128xf32>
    %69 = vector.shape_cast %68 : vector<1x128x128xf32> to vector<128x128xf32>
    %cst_30 = arith.constant dense<0.000000e+00> : vector<2x128xf32>
    %70 = tpu.matmul %67, %69, %cst_30 {dimension_numbers = #tpu.dot_dimension_numbers<[1], [0], [0], [1], [0, 0, 1, 1], [], []>} : vector<2x128xf32>, vector<128x128xf32>, vector<2x128xf32> -> vector<2x128xf32>
    %71 = arith.addf %14, %70 : vector<2x128xf32>
    %72 = vector.extract_strided_slice %0 {offsets = [1, 0, 0], sizes = [1, 2, 128], strides = [1, 1, 1]} : vector<4x40x128xf32> to vector<1x2x128xf32>
    %73 = vector.shape_cast %72 : vector<1x2x128xf32> to vector<2x128xf32>
    %c1 = arith.constant 1 : index
    %c0_31 = arith.constant 0 : index
    %c0_32 = arith.constant 0 : index
    %74 = vector.load %arg6[%c1, %c0_31, %c0_32] : memref<4x256x128xf32, #tpu.memory_space<vmem>>, vector<1x128x128xf32>
    %75 = vector.shape_cast %74 : vector<1x128x128xf32> to vector<128x128xf32>
    %cst_33 = arith.constant dense<0.000000e+00> : vector<2x128xf32>
    %76 = tpu.matmul %73, %75, %cst_33 {dimension_numbers = #tpu.dot_dimension_numbers<[1], [0], [0], [1], [0, 0, 1, 1], [], []>} : vector<2x128xf32>, vector<128x128xf32>, vector<2x128xf32> -> vector<2x128xf32>
    %77 = arith.addf %71, %76 : vector<2x128xf32>
    %78 = vector.extract_strided_slice %0 {offsets = [1, 2, 0], sizes = [1, 19, 128], strides = [1, 1, 1]} : vector<4x40x128xf32> to vector<1x19x128xf32>
    %79 = vector.shape_cast %78 : vector<1x19x128xf32> to vector<19x128xf32>
    %cst_34 = arith.constant dense<0.000000e+00> : vector<19x64xf32>
    %80 = tpu.matmul %79, %1, %cst_34 {dimension_numbers = #tpu.dot_dimension_numbers<[1], [0], [0], [1], [0, 0, 1, 1], [], []>} : vector<19x128xf32>, vector<128x64xf32>, vector<19x64xf32> -> vector<19x64xf32>
    %81 = vector.broadcast %2 : vector<1x64xf32> to vector<19x64xf32>
    %82 = arith.addf %80, %81 : vector<19x64xf32>
    %cst_35 = arith.constant 0.000000e+00 : f32
    %83 = vector.broadcast %cst_35 : f32 to vector<19x64xf32>
    %84 = arith.maximumf %82, %83 : vector<19x64xf32>
    %85 = vector.broadcast %3 : vector<1x64xf32> to vector<19x64xf32>
    %86 = arith.mulf %84, %85 : vector<19x64xf32>
    %cst_36 = arith.constant dense<0.000000e+00> : vector<19xf32>
    %87 = vector.multi_reduction <add>, %86, %cst_36 [1] : vector<19x64xf32> to vector<19xf32>
    %88 = vector.shape_cast %87 : vector<19xf32> to vector<19x1xf32>
    %89 = vector.broadcast %4 : vector<1x1xf32> to vector<19x1xf32>
    %90 = arith.addf %88, %89 : vector<19x1xf32>
    %cst_37 = arith.constant dense<0xFF800000> : vector<1xf32>
    %91 = vector.multi_reduction <maximumf>, %90, %cst_37 [0] : vector<19x1xf32> to vector<1xf32>
    %92 = vector.shape_cast %91 : vector<1xf32> to vector<1x1xf32>
    %93 = vector.broadcast %92 : vector<1x1xf32> to vector<19x1xf32>
    %94 = arith.subf %90, %93 : vector<19x1xf32>
    %95 = math.exp %94 : vector<19x1xf32>
    %cst_38 = arith.constant dense<0.000000e+00> : vector<1xf32>
    %96 = vector.multi_reduction <add>, %95, %cst_38 [0] : vector<19x1xf32> to vector<1xf32>
    %97 = vector.shape_cast %96 : vector<1xf32> to vector<1x1xf32>
    %98 = vector.broadcast %97 : vector<1x1xf32> to vector<19x1xf32>
    %99 = arith.divf %95, %98 : vector<19x1xf32>
    %100 = vector.broadcast %99 : vector<19x1xf32> to vector<19x128xf32>
    %101 = arith.mulf %79, %100 : vector<19x128xf32>
    %cst_39 = arith.constant dense<0.000000e+00> : vector<128xf32>
    %102 = vector.multi_reduction <add>, %101, %cst_39 [0] : vector<19x128xf32> to vector<128xf32>
    %103 = vector.shape_cast %102 : vector<128xf32> to vector<1x128xf32>
    %104 = vector.extract_strided_slice %0 {offsets = [1, 21, 0], sizes = [1, 19, 128], strides = [1, 1, 1]} : vector<4x40x128xf32> to vector<1x19x128xf32>
    %105 = vector.shape_cast %104 : vector<1x19x128xf32> to vector<19x128xf32>
    %cst_40 = arith.constant dense<0.000000e+00> : vector<19x64xf32>
    %106 = tpu.matmul %105, %1, %cst_40 {dimension_numbers = #tpu.dot_dimension_numbers<[1], [0], [0], [1], [0, 0, 1, 1], [], []>} : vector<19x128xf32>, vector<128x64xf32>, vector<19x64xf32> -> vector<19x64xf32>
    %107 = vector.broadcast %2 : vector<1x64xf32> to vector<19x64xf32>
    %108 = arith.addf %106, %107 : vector<19x64xf32>
    %cst_41 = arith.constant 0.000000e+00 : f32
    %109 = vector.broadcast %cst_41 : f32 to vector<19x64xf32>
    %110 = arith.maximumf %108, %109 : vector<19x64xf32>
    %111 = vector.broadcast %3 : vector<1x64xf32> to vector<19x64xf32>
    %112 = arith.mulf %110, %111 : vector<19x64xf32>
    %cst_42 = arith.constant dense<0.000000e+00> : vector<19xf32>
    %113 = vector.multi_reduction <add>, %112, %cst_42 [1] : vector<19x64xf32> to vector<19xf32>
    %114 = vector.shape_cast %113 : vector<19xf32> to vector<19x1xf32>
    %115 = vector.broadcast %4 : vector<1x1xf32> to vector<19x1xf32>
    %116 = arith.addf %114, %115 : vector<19x1xf32>
    %cst_43 = arith.constant dense<0xFF800000> : vector<1xf32>
    %117 = vector.multi_reduction <maximumf>, %116, %cst_43 [0] : vector<19x1xf32> to vector<1xf32>
    %118 = vector.shape_cast %117 : vector<1xf32> to vector<1x1xf32>
    %119 = vector.broadcast %118 : vector<1x1xf32> to vector<19x1xf32>
    %120 = arith.subf %116, %119 : vector<19x1xf32>
    %121 = math.exp %120 : vector<19x1xf32>
    %cst_44 = arith.constant dense<0.000000e+00> : vector<1xf32>
    %122 = vector.multi_reduction <add>, %121, %cst_44 [0] : vector<19x1xf32> to vector<1xf32>
    %123 = vector.shape_cast %122 : vector<1xf32> to vector<1x1xf32>
    %124 = vector.broadcast %123 : vector<1x1xf32> to vector<19x1xf32>
    %125 = arith.divf %121, %124 : vector<19x1xf32>
    %126 = vector.broadcast %125 : vector<19x1xf32> to vector<19x128xf32>
    %127 = arith.mulf %105, %126 : vector<19x128xf32>
    %cst_45 = arith.constant dense<0.000000e+00> : vector<128xf32>
    %128 = vector.multi_reduction <add>, %127, %cst_45 [0] : vector<19x128xf32> to vector<128xf32>
    %129 = vector.shape_cast %128 : vector<128xf32> to vector<1x128xf32>
    %130 = tpu.concatenate %103, %129 in 0 : vector<1x128xf32>, vector<1x128xf32> -> vector<2x128xf32>
    %c1_46 = arith.constant 1 : index
    %c128_47 = arith.constant 128 : index
    %c0_48 = arith.constant 0 : index
    %131 = vector.load %arg6[%c1_46, %c128_47, %c0_48] : memref<4x256x128xf32, #tpu.memory_space<vmem>>, vector<1x128x128xf32>
    %132 = vector.shape_cast %131 : vector<1x128x128xf32> to vector<128x128xf32>
    %cst_49 = arith.constant dense<0.000000e+00> : vector<2x128xf32>
    %133 = tpu.matmul %130, %132, %cst_49 {dimension_numbers = #tpu.dot_dimension_numbers<[1], [0], [0], [1], [0, 0, 1, 1], [], []>} : vector<2x128xf32>, vector<128x128xf32>, vector<2x128xf32> -> vector<2x128xf32>
    %134 = arith.addf %77, %133 : vector<2x128xf32>
    %135 = vector.extract_strided_slice %0 {offsets = [2, 0, 0], sizes = [1, 2, 128], strides = [1, 1, 1]} : vector<4x40x128xf32> to vector<1x2x128xf32>
    %136 = vector.shape_cast %135 : vector<1x2x128xf32> to vector<2x128xf32>
    %c2 = arith.constant 2 : index
    %c0_50 = arith.constant 0 : index
    %c0_51 = arith.constant 0 : index
    %137 = vector.load %arg6[%c2, %c0_50, %c0_51] : memref<4x256x128xf32, #tpu.memory_space<vmem>>, vector<1x128x128xf32>
    %138 = vector.shape_cast %137 : vector<1x128x128xf32> to vector<128x128xf32>
    %cst_52 = arith.constant dense<0.000000e+00> : vector<2x128xf32>
    %139 = tpu.matmul %136, %138, %cst_52 {dimension_numbers = #tpu.dot_dimension_numbers<[1], [0], [0], [1], [0, 0, 1, 1], [], []>} : vector<2x128xf32>, vector<128x128xf32>, vector<2x128xf32> -> vector<2x128xf32>
    %140 = arith.addf %134, %139 : vector<2x128xf32>
    %141 = vector.extract_strided_slice %0 {offsets = [2, 2, 0], sizes = [1, 19, 128], strides = [1, 1, 1]} : vector<4x40x128xf32> to vector<1x19x128xf32>
    %142 = vector.shape_cast %141 : vector<1x19x128xf32> to vector<19x128xf32>
    %cst_53 = arith.constant dense<0.000000e+00> : vector<19x64xf32>
    %143 = tpu.matmul %142, %1, %cst_53 {dimension_numbers = #tpu.dot_dimension_numbers<[1], [0], [0], [1], [0, 0, 1, 1], [], []>} : vector<19x128xf32>, vector<128x64xf32>, vector<19x64xf32> -> vector<19x64xf32>
    %144 = vector.broadcast %2 : vector<1x64xf32> to vector<19x64xf32>
    %145 = arith.addf %143, %144 : vector<19x64xf32>
    %cst_54 = arith.constant 0.000000e+00 : f32
    %146 = vector.broadcast %cst_54 : f32 to vector<19x64xf32>
    %147 = arith.maximumf %145, %146 : vector<19x64xf32>
    %148 = vector.broadcast %3 : vector<1x64xf32> to vector<19x64xf32>
    %149 = arith.mulf %147, %148 : vector<19x64xf32>
    %cst_55 = arith.constant dense<0.000000e+00> : vector<19xf32>
    %150 = vector.multi_reduction <add>, %149, %cst_55 [1] : vector<19x64xf32> to vector<19xf32>
    %151 = vector.shape_cast %150 : vector<19xf32> to vector<19x1xf32>
    %152 = vector.broadcast %4 : vector<1x1xf32> to vector<19x1xf32>
    %153 = arith.addf %151, %152 : vector<19x1xf32>
    %cst_56 = arith.constant dense<0xFF800000> : vector<1xf32>
    %154 = vector.multi_reduction <maximumf>, %153, %cst_56 [0] : vector<19x1xf32> to vector<1xf32>
    %155 = vector.shape_cast %154 : vector<1xf32> to vector<1x1xf32>
    %156 = vector.broadcast %155 : vector<1x1xf32> to vector<19x1xf32>
    %157 = arith.subf %153, %156 : vector<19x1xf32>
    %158 = math.exp %157 : vector<19x1xf32>
    %cst_57 = arith.constant dense<0.000000e+00> : vector<1xf32>
    %159 = vector.multi_reduction <add>, %158, %cst_57 [0] : vector<19x1xf32> to vector<1xf32>
    %160 = vector.shape_cast %159 : vector<1xf32> to vector<1x1xf32>
    %161 = vector.broadcast %160 : vector<1x1xf32> to vector<19x1xf32>
    %162 = arith.divf %158, %161 : vector<19x1xf32>
    %163 = vector.broadcast %162 : vector<19x1xf32> to vector<19x128xf32>
    %164 = arith.mulf %142, %163 : vector<19x128xf32>
    %cst_58 = arith.constant dense<0.000000e+00> : vector<128xf32>
    %165 = vector.multi_reduction <add>, %164, %cst_58 [0] : vector<19x128xf32> to vector<128xf32>
    %166 = vector.shape_cast %165 : vector<128xf32> to vector<1x128xf32>
    %167 = vector.extract_strided_slice %0 {offsets = [2, 21, 0], sizes = [1, 19, 128], strides = [1, 1, 1]} : vector<4x40x128xf32> to vector<1x19x128xf32>
    %168 = vector.shape_cast %167 : vector<1x19x128xf32> to vector<19x128xf32>
    %cst_59 = arith.constant dense<0.000000e+00> : vector<19x64xf32>
    %169 = tpu.matmul %168, %1, %cst_59 {dimension_numbers = #tpu.dot_dimension_numbers<[1], [0], [0], [1], [0, 0, 1, 1], [], []>} : vector<19x128xf32>, vector<128x64xf32>, vector<19x64xf32> -> vector<19x64xf32>
    %170 = vector.broadcast %2 : vector<1x64xf32> to vector<19x64xf32>
    %171 = arith.addf %169, %170 : vector<19x64xf32>
    %cst_60 = arith.constant 0.000000e+00 : f32
    %172 = vector.broadcast %cst_60 : f32 to vector<19x64xf32>
    %173 = arith.maximumf %171, %172 : vector<19x64xf32>
    %174 = vector.broadcast %3 : vector<1x64xf32> to vector<19x64xf32>
    %175 = arith.mulf %173, %174 : vector<19x64xf32>
    %cst_61 = arith.constant dense<0.000000e+00> : vector<19xf32>
    %176 = vector.multi_reduction <add>, %175, %cst_61 [1] : vector<19x64xf32> to vector<19xf32>
    %177 = vector.shape_cast %176 : vector<19xf32> to vector<19x1xf32>
    %178 = vector.broadcast %4 : vector<1x1xf32> to vector<19x1xf32>
    %179 = arith.addf %177, %178 : vector<19x1xf32>
    %cst_62 = arith.constant dense<0xFF800000> : vector<1xf32>
    %180 = vector.multi_reduction <maximumf>, %179, %cst_62 [0] : vector<19x1xf32> to vector<1xf32>
    %181 = vector.shape_cast %180 : vector<1xf32> to vector<1x1xf32>
    %182 = vector.broadcast %181 : vector<1x1xf32> to vector<19x1xf32>
    %183 = arith.subf %179, %182 : vector<19x1xf32>
    %184 = math.exp %183 : vector<19x1xf32>
    %cst_63 = arith.constant dense<0.000000e+00> : vector<1xf32>
    %185 = vector.multi_reduction <add>, %184, %cst_63 [0] : vector<19x1xf32> to vector<1xf32>
    %186 = vector.shape_cast %185 : vector<1xf32> to vector<1x1xf32>
    %187 = vector.broadcast %186 : vector<1x1xf32> to vector<19x1xf32>
    %188 = arith.divf %184, %187 : vector<19x1xf32>
    %189 = vector.broadcast %188 : vector<19x1xf32> to vector<19x128xf32>
    %190 = arith.mulf %168, %189 : vector<19x128xf32>
    %cst_64 = arith.constant dense<0.000000e+00> : vector<128xf32>
    %191 = vector.multi_reduction <add>, %190, %cst_64 [0] : vector<19x128xf32> to vector<128xf32>
    %192 = vector.shape_cast %191 : vector<128xf32> to vector<1x128xf32>
    %193 = tpu.concatenate %166, %192 in 0 : vector<1x128xf32>, vector<1x128xf32> -> vector<2x128xf32>
    %c2_65 = arith.constant 2 : index
    %c128_66 = arith.constant 128 : index
    %c0_67 = arith.constant 0 : index
    %194 = vector.load %arg6[%c2_65, %c128_66, %c0_67] : memref<4x256x128xf32, #tpu.memory_space<vmem>>, vector<1x128x128xf32>
    %195 = vector.shape_cast %194 : vector<1x128x128xf32> to vector<128x128xf32>
    %cst_68 = arith.constant dense<0.000000e+00> : vector<2x128xf32>
    %196 = tpu.matmul %193, %195, %cst_68 {dimension_numbers = #tpu.dot_dimension_numbers<[1], [0], [0], [1], [0, 0, 1, 1], [], []>} : vector<2x128xf32>, vector<128x128xf32>, vector<2x128xf32> -> vector<2x128xf32>
    %197 = arith.addf %140, %196 : vector<2x128xf32>
    %198 = vector.extract_strided_slice %0 {offsets = [3, 0, 0], sizes = [1, 2, 128], strides = [1, 1, 1]} : vector<4x40x128xf32> to vector<1x2x128xf32>
    %199 = vector.shape_cast %198 : vector<1x2x128xf32> to vector<2x128xf32>
    %c3 = arith.constant 3 : index
    %c0_69 = arith.constant 0 : index
    %c0_70 = arith.constant 0 : index
    %200 = vector.load %arg6[%c3, %c0_69, %c0_70] : memref<4x256x128xf32, #tpu.memory_space<vmem>>, vector<1x128x128xf32>
    %201 = vector.shape_cast %200 : vector<1x128x128xf32> to vector<128x128xf32>
    %cst_71 = arith.constant dense<0.000000e+00> : vector<2x128xf32>
    %202 = tpu.matmul %199, %201, %cst_71 {dimension_numbers = #tpu.dot_dimension_numbers<[1], [0], [0], [1], [0, 0, 1, 1], [], []>} : vector<2x128xf32>, vector<128x128xf32>, vector<2x128xf32> -> vector<2x128xf32>
    %203 = arith.addf %197, %202 : vector<2x128xf32>
    %204 = vector.extract_strided_slice %0 {offsets = [3, 2, 0], sizes = [1, 19, 128], strides = [1, 1, 1]} : vector<4x40x128xf32> to vector<1x19x128xf32>
    %205 = vector.shape_cast %204 : vector<1x19x128xf32> to vector<19x128xf32>
    %cst_72 = arith.constant dense<0.000000e+00> : vector<19x64xf32>
    %206 = tpu.matmul %205, %1, %cst_72 {dimension_numbers = #tpu.dot_dimension_numbers<[1], [0], [0], [1], [0, 0, 1, 1], [], []>} : vector<19x128xf32>, vector<128x64xf32>, vector<19x64xf32> -> vector<19x64xf32>
    %207 = vector.broadcast %2 : vector<1x64xf32> to vector<19x64xf32>
    %208 = arith.addf %206, %207 : vector<19x64xf32>
    %cst_73 = arith.constant 0.000000e+00 : f32
    %209 = vector.broadcast %cst_73 : f32 to vector<19x64xf32>
    %210 = arith.maximumf %208, %209 : vector<19x64xf32>
    %211 = vector.broadcast %3 : vector<1x64xf32> to vector<19x64xf32>
    %212 = arith.mulf %210, %211 : vector<19x64xf32>
    %cst_74 = arith.constant dense<0.000000e+00> : vector<19xf32>
    %213 = vector.multi_reduction <add>, %212, %cst_74 [1] : vector<19x64xf32> to vector<19xf32>
    %214 = vector.shape_cast %213 : vector<19xf32> to vector<19x1xf32>
    %215 = vector.broadcast %4 : vector<1x1xf32> to vector<19x1xf32>
    %216 = arith.addf %214, %215 : vector<19x1xf32>
    %cst_75 = arith.constant dense<0xFF800000> : vector<1xf32>
    %217 = vector.multi_reduction <maximumf>, %216, %cst_75 [0] : vector<19x1xf32> to vector<1xf32>
    %218 = vector.shape_cast %217 : vector<1xf32> to vector<1x1xf32>
    %219 = vector.broadcast %218 : vector<1x1xf32> to vector<19x1xf32>
    %220 = arith.subf %216, %219 : vector<19x1xf32>
    %221 = math.exp %220 : vector<19x1xf32>
    %cst_76 = arith.constant dense<0.000000e+00> : vector<1xf32>
    %222 = vector.multi_reduction <add>, %221, %cst_76 [0] : vector<19x1xf32> to vector<1xf32>
    %223 = vector.shape_cast %222 : vector<1xf32> to vector<1x1xf32>
    %224 = vector.broadcast %223 : vector<1x1xf32> to vector<19x1xf32>
    %225 = arith.divf %221, %224 : vector<19x1xf32>
    %226 = vector.broadcast %225 : vector<19x1xf32> to vector<19x128xf32>
    %227 = arith.mulf %205, %226 : vector<19x128xf32>
    %cst_77 = arith.constant dense<0.000000e+00> : vector<128xf32>
    %228 = vector.multi_reduction <add>, %227, %cst_77 [0] : vector<19x128xf32> to vector<128xf32>
    %229 = vector.shape_cast %228 : vector<128xf32> to vector<1x128xf32>
    %230 = vector.extract_strided_slice %0 {offsets = [3, 21, 0], sizes = [1, 19, 128], strides = [1, 1, 1]} : vector<4x40x128xf32> to vector<1x19x128xf32>
    %231 = vector.shape_cast %230 : vector<1x19x128xf32> to vector<19x128xf32>
    %cst_78 = arith.constant dense<0.000000e+00> : vector<19x64xf32>
    %232 = tpu.matmul %231, %1, %cst_78 {dimension_numbers = #tpu.dot_dimension_numbers<[1], [0], [0], [1], [0, 0, 1, 1], [], []>} : vector<19x128xf32>, vector<128x64xf32>, vector<19x64xf32> -> vector<19x64xf32>
    %233 = vector.broadcast %2 : vector<1x64xf32> to vector<19x64xf32>
    %234 = arith.addf %232, %233 : vector<19x64xf32>
    %cst_79 = arith.constant 0.000000e+00 : f32
    %235 = vector.broadcast %cst_79 : f32 to vector<19x64xf32>
    %236 = arith.maximumf %234, %235 : vector<19x64xf32>
    %237 = vector.broadcast %3 : vector<1x64xf32> to vector<19x64xf32>
    %238 = arith.mulf %236, %237 : vector<19x64xf32>
    %cst_80 = arith.constant dense<0.000000e+00> : vector<19xf32>
    %239 = vector.multi_reduction <add>, %238, %cst_80 [1] : vector<19x64xf32> to vector<19xf32>
    %240 = vector.shape_cast %239 : vector<19xf32> to vector<19x1xf32>
    %241 = vector.broadcast %4 : vector<1x1xf32> to vector<19x1xf32>
    %242 = arith.addf %240, %241 : vector<19x1xf32>
    %cst_81 = arith.constant dense<0xFF800000> : vector<1xf32>
    %243 = vector.multi_reduction <maximumf>, %242, %cst_81 [0] : vector<19x1xf32> to vector<1xf32>
    %244 = vector.shape_cast %243 : vector<1xf32> to vector<1x1xf32>
    %245 = vector.broadcast %244 : vector<1x1xf32> to vector<19x1xf32>
    %246 = arith.subf %242, %245 : vector<19x1xf32>
    %247 = math.exp %246 : vector<19x1xf32>
    %cst_82 = arith.constant dense<0.000000e+00> : vector<1xf32>
    %248 = vector.multi_reduction <add>, %247, %cst_82 [0] : vector<19x1xf32> to vector<1xf32>
    %249 = vector.shape_cast %248 : vector<1xf32> to vector<1x1xf32>
    %250 = vector.broadcast %249 : vector<1x1xf32> to vector<19x1xf32>
    %251 = arith.divf %247, %250 : vector<19x1xf32>
    %252 = vector.broadcast %251 : vector<19x1xf32> to vector<19x128xf32>
    %253 = arith.mulf %231, %252 : vector<19x128xf32>
    %cst_83 = arith.constant dense<0.000000e+00> : vector<128xf32>
    %254 = vector.multi_reduction <add>, %253, %cst_83 [0] : vector<19x128xf32> to vector<128xf32>
    %255 = vector.shape_cast %254 : vector<128xf32> to vector<1x128xf32>
    %256 = tpu.concatenate %229, %255 in 0 : vector<1x128xf32>, vector<1x128xf32> -> vector<2x128xf32>
    %c3_84 = arith.constant 3 : index
    %c128_85 = arith.constant 128 : index
    %c0_86 = arith.constant 0 : index
    %257 = vector.load %arg6[%c3_84, %c128_85, %c0_86] : memref<4x256x128xf32, #tpu.memory_space<vmem>>, vector<1x128x128xf32>
    %258 = vector.shape_cast %257 : vector<1x128x128xf32> to vector<128x128xf32>
    %cst_87 = arith.constant dense<0.000000e+00> : vector<2x128xf32>
    %259 = tpu.matmul %256, %258, %cst_87 {dimension_numbers = #tpu.dot_dimension_numbers<[1], [0], [0], [1], [0, 0, 1, 1], [], []>} : vector<2x128xf32>, vector<128x128xf32>, vector<2x128xf32> -> vector<2x128xf32>
    %260 = arith.addf %203, %259 : vector<2x128xf32>
    %c0_88 = arith.constant 0 : index
    %c0_89 = arith.constant 0 : index
    %261 = vector.load %arg10[%c0_88, %c0_89] : memref<1x512xf32, #tpu.memory_space<vmem>>, vector<1x512xf32>
    %c0_90 = arith.constant 0 : index
    %c0_91 = arith.constant 0 : index
    %262 = vector.load %arg8[%c0_90, %c0_91] : memref<128x512xf32, #tpu.memory_space<vmem>>, vector<128x512xf32>
    %cst_92 = arith.constant dense<0.000000e+00> : vector<2x512xf32>
    %263 = tpu.matmul %260, %262, %cst_92 {dimension_numbers = #tpu.dot_dimension_numbers<[1], [0], [0], [1], [0, 0, 1, 1], [], []>} : vector<2x128xf32>, vector<128x512xf32>, vector<2x512xf32> -> vector<2x512xf32>
    %264 = vector.broadcast %261 : vector<1x512xf32> to vector<2x512xf32>
    %265 = arith.addf %263, %264 : vector<2x512xf32>
    %cst_93 = arith.constant 0.000000e+00 : f32
    %266 = vector.broadcast %cst_93 : f32 to vector<2x128xf32>
    %267 = math.tanh %265 : vector<2x512xf32>
    %268 = vector.extract_strided_slice %267 {offsets = [0, 0], sizes = [2, 128], strides = [1, 1]} : vector<2x512xf32> to vector<2x128xf32>
    %cst_94 = arith.constant 5.000000e-01 : f32
    %269 = vector.broadcast %cst_94 : f32 to vector<2x128xf32>
    %270 = arith.mulf %269, %268 : vector<2x128xf32>
    %cst_95 = arith.constant 5.000000e-01 : f32
    %271 = vector.broadcast %cst_95 : f32 to vector<2x128xf32>
    %272 = arith.addf %270, %271 : vector<2x128xf32>
    %273 = vector.extract_strided_slice %267 {offsets = [0, 128], sizes = [2, 128], strides = [1, 1]} : vector<2x512xf32> to vector<2x128xf32>
    %cst_96 = arith.constant 5.000000e-01 : f32
    %274 = vector.broadcast %cst_96 : f32 to vector<2x128xf32>
    %275 = arith.mulf %274, %273 : vector<2x128xf32>
    %cst_97 = arith.constant 5.000000e-01 : f32
    %276 = vector.broadcast %cst_97 : f32 to vector<2x128xf32>
    %277 = arith.addf %275, %276 : vector<2x128xf32>
    %278 = vector.extract_strided_slice %267 {offsets = [0, 256], sizes = [2, 128], strides = [1, 1]} : vector<2x512xf32> to vector<2x128xf32>
    %279 = vector.extract_strided_slice %267 {offsets = [0, 384], sizes = [2, 128], strides = [1, 1]} : vector<2x512xf32> to vector<2x128xf32>
    %cst_98 = arith.constant 5.000000e-01 : f32
    %280 = vector.broadcast %cst_98 : f32 to vector<2x128xf32>
    %281 = arith.mulf %280, %279 : vector<2x128xf32>
    %cst_99 = arith.constant 5.000000e-01 : f32
    %282 = vector.broadcast %cst_99 : f32 to vector<2x128xf32>
    %283 = arith.addf %281, %282 : vector<2x128xf32>
    %284 = arith.mulf %277, %266 : vector<2x128xf32>
    %285 = arith.mulf %272, %278 : vector<2x128xf32>
    %286 = arith.addf %284, %285 : vector<2x128xf32>
    %287 = math.tanh %286 : vector<2x128xf32>
    %288 = arith.mulf %283, %287 : vector<2x128xf32>
    %c0_100 = arith.constant 0 : index
    %c0_101 = arith.constant 0 : index
    %c0_102 = arith.constant 0 : index
    %289 = vector.load %arg16[%c0_100, %c0_101, %c0_102] : memref<60x2x128xf32, #tpu.memory_space<vmem>>, vector<1x2x128xf32>
    %290 = vector.shape_cast %289 : vector<1x2x128xf32> to vector<2x128xf32>
    %291 = vector.shape_cast %288 : vector<2x128xf32> to vector<1x2x128xf32>
    tpu.vector_store %arg16[%c0_100, %c0_101, %c0_102], %291 {strides = array<i32>} : memref<60x2x128xf32, #tpu.memory_space<vmem>>, vector<1x2x128xf32>,
    %c1_i32 = arith.constant 1 : i32
    %c59_i32 = arith.constant 59 : i32
    %292 = arith.addi %c1_i32, %c59_i32 : i32
    %c1_i32_103 = arith.constant 1 : i32
    %293:2 = scf.for %arg17 = %c1_i32 to %292 step %c1_i32_103 iter_args(%arg18 = %288, %arg19 = %286) -> (vector<2x128xf32>, vector<2x128xf32>)  : i32 {
      %c0_121 = arith.constant 0 : index
      %c0_122 = arith.constant 0 : index
      %309 = vector.load %arg9[%c0_121, %c0_122] : memref<128x512xf32, #tpu.memory_space<vmem>>, vector<128x512xf32>
      %cst_123 = arith.constant dense<0.000000e+00> : vector<2x512xf32>
      %310 = tpu.matmul %arg18, %309, %cst_123 {dimension_numbers = #tpu.dot_dimension_numbers<[1], [0], [0], [1], [0, 0, 1, 1], [], []>} : vector<2x128xf32>, vector<128x512xf32>, vector<2x512xf32> -> vector<2x512xf32>
      %311 = vector.broadcast %261 : vector<1x512xf32> to vector<2x512xf32>
      %312 = arith.addf %310, %311 : vector<2x512xf32>
      %313 = math.tanh %312 : vector<2x512xf32>
      %314 = vector.extract_strided_slice %313 {offsets = [0, 0], sizes = [2, 128], strides = [1, 1]} : vector<2x512xf32> to vector<2x128xf32>
      %cst_124 = arith.constant 5.000000e-01 : f32
      %315 = vector.broadcast %cst_124 : f32 to vector<2x128xf32>
      %316 = arith.mulf %315, %314 : vector<2x128xf32>
      %cst_125 = arith.constant 5.000000e-01 : f32
      %317 = vector.broadcast %cst_125 : f32 to vector<2x128xf32>
      %318 = arith.addf %316, %317 : vector<2x128xf32>
      %319 = vector.extract_strided_slice %313 {offsets = [0, 128], sizes = [2, 128], strides = [1, 1]} : vector<2x512xf32> to vector<2x128xf32>
      %cst_126 = arith.constant 5.000000e-01 : f32
      %320 = vector.broadcast %cst_126 : f32 to vector<2x128xf32>
      %321 = arith.mulf %320, %319 : vector<2x128xf32>
      %cst_127 = arith.constant 5.000000e-01 : f32
      %322 = vector.broadcast %cst_127 : f32 to vector<2x128xf32>
      %323 = arith.addf %321, %322 : vector<2x128xf32>
      %324 = vector.extract_strided_slice %313 {offsets = [0, 256], sizes = [2, 128], strides = [1, 1]} : vector<2x512xf32> to vector<2x128xf32>
      %325 = vector.extract_strided_slice %313 {offsets = [0, 384], sizes = [2, 128], strides = [1, 1]} : vector<2x512xf32> to vector<2x128xf32>
      %cst_128 = arith.constant 5.000000e-01 : f32
      %326 = vector.broadcast %cst_128 : f32 to vector<2x128xf32>
      %327 = arith.mulf %326, %325 : vector<2x128xf32>
      %cst_129 = arith.constant 5.000000e-01 : f32
      %328 = vector.broadcast %cst_129 : f32 to vector<2x128xf32>
      %329 = arith.addf %327, %328 : vector<2x128xf32>
      %330 = arith.mulf %323, %arg19 : vector<2x128xf32>
      %331 = arith.mulf %318, %324 : vector<2x128xf32>
      %332 = arith.addf %330, %331 : vector<2x128xf32>
      %333 = math.tanh %332 : vector<2x128xf32>
      %334 = arith.mulf %329, %333 : vector<2x128xf32>
      %335 = arith.index_cast %arg17 : i32 to index
      %c0_130 = arith.constant 0 : index
      %c0_131 = arith.constant 0 : index
      %336 = vector.load %arg16[%335, %c0_130, %c0_131] : memref<60x2x128xf32, #tpu.memory_space<vmem>>, vector<1x2x128xf32>
      %337 = vector.shape_cast %336 : vector<1x2x128xf32> to vector<2x128xf32>
      %338 = vector.shape_cast %334 : vector<2x128xf32> to vector<1x2x128xf32>
      tpu.vector_store %arg16[%335, %c0_130, %c0_131], %338 {strides = array<i32>} : memref<60x2x128xf32, #tpu.memory_space<vmem>>, vector<1x2x128xf32>,
      scf.yield %334, %332 : vector<2x128xf32>, vector<2x128xf32>
    }
    %c59_i32_104 = arith.constant 59 : i32
    %c0_105 = arith.constant 0 : index
    %c0_106 = arith.constant 0 : index
    %c0_107 = arith.constant 0 : index
    %294 = vector.load %arg16[%c0_105, %c0_106, %c0_107] : memref<60x2x128xf32, #tpu.memory_space<vmem>>, vector<60x2x128xf32>
    %295 = vector.shape_cast %294 : vector<60x2x128xf32> to vector<120x128xf32>
    %c0_108 = arith.constant 0 : index
    %c0_109 = arith.constant 0 : index
    %296 = vector.load %arg11[%c0_108, %c0_109] : memref<128x64xf32, #tpu.memory_space<vmem>>, vector<128x64xf32>
    %cst_110 = arith.constant dense<0.000000e+00> : vector<120x64xf32>
    %297 = tpu.matmul %295, %296, %cst_110 {dimension_numbers = #tpu.dot_dimension_numbers<[1], [0], [0], [1], [0, 0, 1, 1], [], []>} : vector<120x128xf32>, vector<128x64xf32>, vector<120x64xf32> -> vector<120x64xf32>
    %c0_111 = arith.constant 0 : index
    %c0_112 = arith.constant 0 : index
    %298 = vector.load %arg12[%c0_111, %c0_112] : memref<1x64xf32, #tpu.memory_space<vmem>>, vector<1x64xf32>
    %299 = vector.broadcast %298 : vector<1x64xf32> to vector<120x64xf32>
    %300 = arith.addf %297, %299 : vector<120x64xf32>
    %cst_113 = arith.constant 0.000000e+00 : f32
    %301 = vector.broadcast %cst_113 : f32 to vector<120x64xf32>
    %302 = arith.maximumf %300, %301 : vector<120x64xf32>
    %c0_114 = arith.constant 0 : index
    %c0_115 = arith.constant 0 : index
    %303 = vector.load %arg13[%c0_114, %c0_115] : memref<64x128xf32, #tpu.memory_space<vmem>>, vector<64x128xf32>
    %cst_116 = arith.constant dense<0.000000e+00> : vector<120x128xf32>
    %304 = tpu.matmul %302, %303, %cst_116 {dimension_numbers = #tpu.dot_dimension_numbers<[1], [0], [0], [1], [0, 0, 1, 1], [], []>} : vector<120x64xf32>, vector<64x128xf32>, vector<120x128xf32> -> vector<120x128xf32>
    %c0_117 = arith.constant 0 : index
    %c0_118 = arith.constant 0 : index
    %305 = vector.load %arg14[%c0_117, %c0_118] : memref<1x128xf32, #tpu.memory_space<vmem>>, vector<1x128xf32>
    %306 = vector.broadcast %305 : vector<1x128xf32> to vector<120x128xf32>
    %307 = arith.addf %304, %306 : vector<120x128xf32>
    %c0_119 = arith.constant 0 : index
    %c0_120 = arith.constant 0 : index
    %308 = vector.load %arg15[%c0_119, %c0_120] : memref<120x128xf32, #tpu.memory_space<vmem>>, vector<120x128xf32>
    tpu.vector_store %arg15[%c0_119, %c0_120], %307 {strides = array<i32>} : memref<120x128xf32, #tpu.memory_space<vmem>>, vector<120x128xf32>,
    return
  }
  func.func @transform_0(%arg0: i32) -> (i32, i32, i32) {
    %c0_i32 = arith.constant 0 : i32
    %c0_i32_0 = arith.constant 0 : i32
    %c0_i32_1 = arith.constant 0 : i32
    %c0_i32_2 = arith.constant 0 : i32
    return %c0_i32, %c0_i32_0, %c0_i32_1 : i32, i32, i32
  }
  func.func @transform_1(%arg0: i32) -> (i32, i32) {
    %c0_i32 = arith.constant 0 : i32
    %c0_i32_0 = arith.constant 0 : i32
    %c0_i32_1 = arith.constant 0 : i32
    return %c0_i32, %c0_i32_0 : i32, i32
  }
  func.func @transform_2(%arg0: i32) -> (i32, i32) {
    %c0_i32 = arith.constant 0 : i32
    %c0_i32_0 = arith.constant 0 : i32
    %c0_i32_1 = arith.constant 0 : i32
    return %c0_i32, %c0_i32_0 : i32, i32
  }
  func.func @transform_3(%arg0: i32) -> (i32, i32) {
    %c0_i32 = arith.constant 0 : i32
    %c0_i32_0 = arith.constant 0 : i32
    %c0_i32_1 = arith.constant 0 : i32
    return %c0_i32, %c0_i32_0 : i32, i32
  }
  func.func @transform_4(%arg0: i32) -> (i32, i32) {
    %c0_i32 = arith.constant 0 : i32
    %c0_i32_0 = arith.constant 0 : i32
    %c0_i32_1 = arith.constant 0 : i32
    return %c0_i32, %c0_i32_0 : i32, i32
  }
  func.func @transform_5(%arg0: i32) -> (i32, i32, i32) {
    %c0_i32 = arith.constant 0 : i32
    %c0_i32_0 = arith.constant 0 : i32
    %c0_i32_1 = arith.constant 0 : i32
    %c0_i32_2 = arith.constant 0 : i32
    return %c0_i32, %c0_i32_0, %c0_i32_1 : i32, i32, i32
  }
  func.func @transform_6(%arg0: i32) -> (i32, i32) {
    %c0_i32 = arith.constant 0 : i32
    %c0_i32_0 = arith.constant 0 : i32
    %c0_i32_1 = arith.constant 0 : i32
    return %c0_i32, %c0_i32_0 : i32, i32
  }
  func.func @transform_7(%arg0: i32) -> (i32, i32) {
    %c0_i32 = arith.constant 0 : i32
    %c0_i32_0 = arith.constant 0 : i32
    %c0_i32_1 = arith.constant 0 : i32
    return %c0_i32, %c0_i32_0 : i32, i32
  }
  func.func @transform_8(%arg0: i32) -> (i32, i32) {
    %c0_i32 = arith.constant 0 : i32
    %c0_i32_0 = arith.constant 0 : i32
    %c0_i32_1 = arith.constant 0 : i32
    return %c0_i32, %c0_i32_0 : i32, i32
  }
  func.func @transform_9(%arg0: i32) -> (i32, i32) {
    %c0_i32 = arith.constant 0 : i32
    %c0_i32_0 = arith.constant 0 : i32
    %c0_i32_1 = arith.constant 0 : i32
    return %c0_i32, %c0_i32_0 : i32, i32
  }
  func.func @transform_10(%arg0: i32) -> (i32, i32) {
    %c0_i32 = arith.constant 0 : i32
    %c0_i32_0 = arith.constant 0 : i32
    %c0_i32_1 = arith.constant 0 : i32
    return %c0_i32, %c0_i32_0 : i32, i32
  }
  func.func @transform_11(%arg0: i32) -> (i32, i32) {
    %c0_i32 = arith.constant 0 : i32
    %c0_i32_0 = arith.constant 0 : i32
    %c0_i32_1 = arith.constant 0 : i32
    return %c0_i32, %c0_i32_0 : i32, i32
  }
  func.func @transform_12(%arg0: i32) -> (i32, i32) {
    %c0_i32 = arith.constant 0 : i32
    %c0_i32_0 = arith.constant 0 : i32
    %c0_i32_1 = arith.constant 0 : i32
    return %c0_i32, %c0_i32_0 : i32, i32
  }
  func.func @transform_13(%arg0: i32) -> (i32, i32) {
    %c0_i32 = arith.constant 0 : i32
    %c0_i32_0 = arith.constant 0 : i32
    %c0_i32_1 = arith.constant 0 : i32
    return %c0_i32, %c0_i32_0 : i32, i32
  }
  func.func @transform_14(%arg0: i32) -> (i32, i32) {
    %c0_i32 = arith.constant 0 : i32
    %c0_i32_0 = arith.constant 0 : i32
    %c0_i32_1 = arith.constant 0 : i32
    return %c0_i32, %c0_i32_0 : i32, i32
  }
}

</mosaic_0001>

<llo_original>
// kernel: forward.2
$region0: #{forward.2}
  #allocation0 [shape = 'u32[]', space=smem, size = 0x4, offset = 0x4, fixed_abs, tag = 'smem constant byte address 0x4 - core index']
  #allocation1 [shape = 'u32[144,128]{1,0:T(1,128)}', space=vmem, size = 0x12000, scoped, tag = 'internal scratch']
  #allocation2 [shape = 'f32[40,128]{1,0:T(8,128)}', space=vmem, size = 0x5000, scoped, tag = 'scratch operand']
  #allocation3 [shape = 'f32[40,128]{1,0:T(8,128)}', space=vmem, size = 0x5000, scoped, tag = 'scratch operand']
  %s0 = inlined_call_operand.vmem [shape: f32[50,40,512], index: 0, kind: input, shape index: {}]
  %s1 = inlined_call_operand.vmem [shape: f32[256,512], index: 1, kind: input, shape index: {}]
  %s2 = inlined_call_operand.vmem [shape: f32[50,40,128], index: 2, kind: output, shape index: {}]
  %s3 = sld [smem:[#allocation0]]
  $region52: #{forward.2} parent=0
    _
  %s5 = ssub.s32 1, %s3
  %s6 = scalar_select 0, %s5, %s3
  loop: start=0, step=1, limit=7
  $region2: #{forward.2} parent=0 // loop_pre_header
    _
  $region3: #{forward.2} parent=0 // loop_header
    %s8 = sphi 0, %s12
    %p9 = scmp.ge.s32.totalorder %s8, 7
    %s18 = sphi 0, %s20
    %s21 = sphi 0, %s18
    %s22 = sphi 0, %s21
    %s38 = sphi 0, %s22
    %s42 = sphi 0, %s42
    %s44 = sphi 0, %s42
    %s45 = sphi 0, %s44
    %s59 = sphi 0, %s45
    %s65 = sphi 0, %s67
    %s68 = sphi 0, %s65
    %s69 = sphi 0, %s68
    %s85 = sphi 0, %s69
  $region4: #{forward.2} parent=0 // loop_header_branch
    %11 = sbr.rel (%p9) target = $region8
  $region5: #{forward.2} parent=0 // loop_body
    %s13 = ssub.s32 %s8, 1
    %s14 = ssub.s32 %s8, 2
    %s15 = sadd.s32 %s8, 1
    %s16 = ssub.s32 %s8, %s15
    %p17 = scmp.eq.s32.totalorder %s16, 0
    %s19 = sadd.s32 %s18, 1
    %s20 = scalar_select %p17, %s18, %s19
    %p23 = pneg %p17
    %p24 = scmp.eq.s32.totalorder %s8, 4
    %p25 = por %p23, %p24
    %p26 = scmp.ne.s32.totalorder %s18, %s21
    %p27 = scmp.eq.s32.totalorder %s8, 0
    %p28 = por %p26, %p27
    %p29 = scmp.ne.s32.totalorder %s18, %s21
    %p30 = scmp.eq.s32.totalorder %s13, 4
    %p31 = por %p29, %p30
    %p32 = scmp.ne.s32.totalorder %s21, %s22
    %p33 = scmp.eq.s32.totalorder %s13, 0
    %p34 = por %p32, %p33
    %p35 = scmp.ne.s32.totalorder %s21, %s22
    %p36 = scmp.eq.s32.totalorder %s14, 4
    %p37 = por %p35, %p36
    %p39 = scmp.ne.s32.totalorder %s22, %s38
    %p40 = scmp.eq.s32.totalorder %s14, 0
    %p41 = por %p39, %p40
    %s43 = sadd.s32 %s42, 1
    %p46 = scmp.eq.s32.totalorder %s8, 4
    %p47 = scmp.ne.s32.totalorder %s42, %s44
    %p48 = scmp.eq.s32.totalorder %s8, 0
    %p49 = por %p47, %p48
    %p50 = scmp.ne.s32.totalorder %s42, %s44
    %p51 = scmp.eq.s32.totalorder %s13, 4
    %p52 = por %p50, %p51
    %p53 = scmp.ne.s32.totalorder %s44, %s45
    %p54 = scmp.eq.s32.totalorder %s13, 0
    %p55 = por %p53, %p54
    %p56 = scmp.ne.s32.totalorder %s44, %s45
    %p57 = scmp.eq.s32.totalorder %s14, 4
    %p58 = por %p56, %p57
    %p60 = scmp.ne.s32.totalorder %s45, %s59
    %p61 = scmp.eq.s32.totalorder %s14, 0
    %p62 = por %p60, %p61
    %s63 = ssub.s32 %s8, %s15
    %p64 = scmp.eq.s32.totalorder %s63, 0
    %s66 = sadd.s32 %s65, 1
    %s67 = scalar_select %p64, %s65, %s66
    %p70 = pneg %p64
    %p71 = scmp.eq.s32.totalorder %s8, 4
    %p72 = por %p70, %p71
    %p73 = scmp.ne.s32.totalorder %s65, %s68
    %p74 = scmp.eq.s32.totalorder %s8, 0
    %p75 = por %p73, %p74
    %p76 = scmp.ne.s32.totalorder %s65, %s68
    %p77 = scmp.eq.s32.totalorder %s13, 4
    %p78 = por %p76, %p77
    %p79 = scmp.ne.s32.totalorder %s68, %s69
    %p80 = scmp.eq.s32.totalorder %s13, 0
    %p81 = por %p79, %p80
    %p82 = scmp.ne.s32.totalorder %s68, %s69
    %p83 = scmp.eq.s32.totalorder %s14, 4
    %p84 = por %p82, %p83
    %p86 = scmp.ne.s32.totalorder %s69, %s85
    %p87 = scmp.eq.s32.totalorder %s14, 0
    %p88 = por %p86, %p87
    %p89 = scmp.le.s32.totalorder 1, %s8
    %p90 = scmp.lt.s32.totalorder %s8, 6
    %p91 = pnand %p89, %p90
    %p92 = pneg %p91
    // Predicated region
    $region9: #{forward.2} parent=5 // pred_check
      _
    $region10: #{forward.2} parent=5 // pred_check_branch
      %94 = sbr.rel (%p91) target = $region12
    $region11: #{forward.2} parent=5 // pred_region
      %s95 = ssub.s32 %s8, 1
      // Predicated region
      $region13: #{forward.2} parent=11 // pred_check
        %p96 = pneg %p55
      $region14: #{forward.2} parent=11 // pred_check_branch
        %98 = sbr.rel (%p96) target = $region16
      $region15: #{forward.2} parent=11 // pred_region
        _
      $region16: #{forward.2} parent=11 // pred_fallthru
        _
    $region12: #{forward.2} parent=5 // pred_fallthru
      _
    %p99 = scmp.lt.s32.totalorder %s8, 5
    // Predicated region
    $region17: #{forward.2} parent=5 // pred_check
      %p100 = pneg %p99
    $region18: #{forward.2} parent=5 // pred_check_branch
      %102 = sbr.rel (%p100) target = $region20
    $region19: #{forward.2} parent=5 // pred_region
      // Predicated region
      $region21: #{forward.2} parent=19 // pred_check
        %p103 = pneg %p28
      $region22: #{forward.2} parent=19 // pred_check_branch
        %105 = sbr.rel (%p103) target = $region24
      $region23: #{forward.2} parent=19 // pred_region
        %s106 = smul.u32 10, %s8
        %p107 = scmp.lt.s32.totalorder %s106, 49
        %s108 = scalar_select %p107, %s106, 49
        %s109 = smul.addr %s108, 20
        %s110 = smul.addr %s109, 8
        %s111 = scalar_lea.vmem %s0, %s110
        %s112 = smul.u32 10, %s8
      $region24: #{forward.2} parent=19 // pred_fallthru
        _
    $region20: #{forward.2} parent=5 // pred_fallthru
      _
    %p113 = scmp.le.s32.totalorder 1, %s8
    %p114 = scmp.lt.s32.totalorder %s8, 6
    %p115 = pnand %p113, %p114
    %p116 = pneg %p115
    // Predicated region
    $region25: #{forward.2} parent=5 // pred_check
      _
    $region26: #{forward.2} parent=5 // pred_check_branch
      %118 = sbr.rel (%p115) target = $region28
    $region27: #{forward.2} parent=5 // pred_region
      %s119 = ssub.s32 %s8, 1
      %s120 = smul.u32 10, %s13
      %p121 = scmp.lt.s32.totalorder %s120, 49
      %s122 = scalar_select %p121, %s120, 49
      %s123 = smul.addr %s122, 20
      %s124 = smul.addr %s123, 8
      %s125 = scalar_lea.vmem %s0, %s124
      %p126 = pneg %p34
      %p127 = pneg %p31
      %p128 = pneg %p55
      %p129 = pneg %p52
      %p130 = pneg %p81
      %p131 = pneg %p78
      %s132 = smul.u32 10, %s13
      %p133 = scmp.lt.s32.totalorder %s132, 49
      %s134 = scalar_select %p133, %s132, 49
      %s135 = smul.addr %s134, 5
      %s136 = smul.addr %s135, 8
      %s137 = scalar_lea.vmem %s2, %s136
      %s138 = smul.u32 10, %s13
      %p139 = scmp.lt.s32.totalorder %s138, 49
      %s140 = scalar_select %p139, %s138, 49
      %s141 = smul.addr %s140, 20
      %s142 = smul.addr %s141, 8
      %s143 = scalar_lea.vmem %s0, %s142
      %s144 = smul.u32 10, %s13
      %s145 = smul.u32 10, %s13
      %p146 = scmp.lt.s32.totalorder %s145, 49
      %s147 = scalar_select %p146, %s145, 49
      %s148 = smul.addr %s147, 5
      %s149 = smul.addr %s148, 8
      %s150 = scalar_lea.vmem %s2, %s149
      %s151 = smul.u32 10, %s13
      %p152 = scmp.eq.s32.totalorder %s13, 0
      // Predicated region
      $region29: #{forward.2} parent=27 // pred_check
        %p153 = pneg %p152
      $region30: #{forward.2} parent=27 // pred_check_branch
        %155 = sbr.rel (%p153) target = $region32
      $region31: #{forward.2} parent=27 // pred_region
        %156 = vst [vmem:[#allocation2] sm:$0xff] 0.0
        %157 = vst [vmem:[#allocation2 + $0x8] sm:$0xff] 0.0
        %158 = vst [vmem:[#allocation2 + $0x10] sm:$0xff] 0.0
        %159 = vst [vmem:[#allocation2 + $0x18] sm:$0xff] 0.0
        %160 = vst [vmem:[#allocation2 + $0x20] sm:$0xff] 0.0
        %161 = vst [vmem:[#allocation3] sm:$0xff] 0.0
        %162 = vst [vmem:[#allocation3 + $0x8] sm:$0xff] 0.0
        %163 = vst [vmem:[#allocation3 + $0x10] sm:$0xff] 0.0
        %164 = vst [vmem:[#allocation3 + $0x18] sm:$0xff] 0.0
        %165 = vst [vmem:[#allocation3 + $0x20] sm:$0xff] 0.0
      $region32: #{forward.2} parent=27 // pred_fallthru
        _
      %v166 = vlaneseq
      %v167 = vshrl.u32 %v166, 7
      %v168 = vadd.s32 %v167, 8
      %v169 = vadd.s32 %v167, 16
      %v170 = vadd.s32 %v167, 24
      %v171 = vadd.s32 %v167, 32
      %vm172 = vcmp.lt.s32.totalorder %v167, 2
      %vm173 = vcmp.lt.s32.totalorder %v168, 2
      %vm174 = vcmp.lt.s32.totalorder %v169, 2
      %vm175 = vcmp.lt.s32.totalorder %v170, 2
      %vm176 = vcmp.lt.s32.totalorder %v171, 2
      %v177 = vsel %vm172, 1, 0
      %v178 = vsel %vm173, 1, 0
      %v179 = vsel %vm174, 1, 0
      %v180 = vsel %vm175, 1, 0
      %v181 = vsel %vm176, 1, 0
      %v182 = vcvt.s32.f32 %v177
      %v183 = vcvt.s32.f32 %v178
      %v184 = vcvt.s32.f32 %v179
      %v185 = vcvt.s32.f32 %v180
      %v186 = vcvt.s32.f32 %v181
      %v187 = vsub.f32 1.0, %v182
      %v188 = vsub.f32 1.0, %v183
      %v189 = vsub.f32 1.0, %v184
      %v190 = vsub.f32 1.0, %v185
      %v191 = vsub.f32 1.0, %v186
      %v192 = vld [vmem:[#allocation2] sm:$0xff]
      %v193 = vld [vmem:[#allocation2 + $0x8] sm:$0xff]
      %v194 = vld [vmem:[#allocation2 + $0x10] sm:$0xff]
      %v195 = vld [vmem:[#allocation2 + $0x18] sm:$0xff]
      %v196 = vld [vmem:[#allocation2 + $0x20] sm:$0xff]
      %v197 = vld [vmem:[#allocation3] sm:$0xff]
      %v198 = vld [vmem:[#allocation3 + $0x8] sm:$0xff]
      %v199 = vld [vmem:[#allocation3 + $0x10] sm:$0xff]
      %v200 = vld [vmem:[#allocation3 + $0x18] sm:$0xff]
      %v201 = vld [vmem:[#allocation3 + $0x20] sm:$0xff]
      loop: start=0, step=1, limit=10
      $region33: #{forward.2} parent=27 // loop_pre_header
        _
      $region34: #{forward.2} parent=27 // loop_header
        %s203 = sphi 0, %s207
        %p204 = scmp.ge.s32.totalorder %s203, 10
        %v208 = vphi %v192, %v659
        %v209 = vphi %v193, %v660
        %v210 = vphi %v194, %v661
        %v211 = vphi %v195, %v662
        %v212 = vphi %v196, %v663
        %v213 = vphi %v197, %v649
        %v214 = vphi %v198, %v650
        %v215 = vphi %v199, %v651
        %v216 = vphi %v200, %v652
        %v217 = vphi %v201, %v653
      $region35: #{forward.2} parent=27 // loop_header_branch
        %206 = sbr.rel (%p204) target = $region39
      $region36: #{forward.2} parent=27 // loop_body
        %v218 = vmul.f32 %v208, %v182
        %v219 = vmul.f32 %v209, %v183
        %v220 = vmul.f32 %v210, %v184
        %v221 = vmul.f32 %v211, %v185
        %v222 = vmul.f32 %v212, %v186
        %v223 = vmul.f32 %v208, %v187
        %v224 = vmul.f32 %v209, %v188
        %v225 = vmul.f32 %v210, %v189
        %v226 = vmul.f32 %v211, %v190
        %v227 = vmul.f32 %v212, %v191
        %s228 = smul.u32 %s203, 20
        %s229 = smul.addr %s228, 8
        %s230 = scalar_lea.vmem %s143, %s229
        %v231 = vld [vmem:[%s230] sm:$0xff]
        %v232 = vld [vmem:[%s230 + $0x8] sm:$0xff]
        %v233 = vld [vmem:[%s230 + $0x10] sm:$0xff]
        %v234 = vld [vmem:[%s230 + $0x18] sm:$0xff]
        %v235 = vld [vmem:[%s230 + $0x20] sm:$0xff]
        %v236 = vld [vmem:[%s230 + $0x28] sm:$0xff]
        %v237 = vld [vmem:[%s230 + $0x30] sm:$0xff]
        %v238 = vld [vmem:[%s230 + $0x38] sm:$0xff]
        %v239 = vld [vmem:[%s230 + $0x40] sm:$0xff]
        %v240 = vld [vmem:[%s230 + $0x48] sm:$0xff]
        %v241 = vld [vmem:[%s230 + $0x50] sm:$0xff]
        %v242 = vld [vmem:[%s230 + $0x58] sm:$0xff]
        %v243 = vld [vmem:[%s230 + $0x60] sm:$0xff]
        %v244 = vld [vmem:[%s230 + $0x68] sm:$0xff]
        %v245 = vld [vmem:[%s230 + $0x70] sm:$0xff]
        %v246 = vld [vmem:[%s230 + $0x78] sm:$0xff]
        %v247 = vld [vmem:[%s230 + $0x80] sm:$0xff]
        %v248 = vld [vmem:[%s230 + $0x88] sm:$0xff]
        %v249 = vld [vmem:[%s230 + $0x90] sm:$0xff]
        %v250 = vld [vmem:[%s230 + $0x98] sm:$0xff]
        %v251 = vld [vmem:[%s1] sm:$0xff]
        %v252 = vld [vmem:[%s1 + $0x8] sm:$0xff]
        %v253 = vld [vmem:[%s1 + $0x10] sm:$0xff]
        %v254 = vld [vmem:[%s1 + $0x18] sm:$0xff]
        %v255 = vld [vmem:[%s1 + $0x20] sm:$0xff]
        %v256 = vld [vmem:[%s1 + $0x28] sm:$0xff]
        %v257 = vld [vmem:[%s1 + $0x30] sm:$0xff]
        %v258 = vld [vmem:[%s1 + $0x38] sm:$0xff]
        %v259 = vld [vmem:[%s1 + $0x40] sm:$0xff]
        %v260 = vld [vmem:[%s1 + $0x48] sm:$0xff]
        %v261 = vld [vmem:[%s1 + $0x50] sm:$0xff]
        %v262 = vld [vmem:[%s1 + $0x58] sm:$0xff]
        %v263 = vld [vmem:[%s1 + $0x60] sm:$0xff]
        %v264 = vld [vmem:[%s1 + $0x68] sm:$0xff]
        %v265 = vld [vmem:[%s1 + $0x70] sm:$0xff]
        %v266 = vld [vmem:[%s1 + $0x78] sm:$0xff]
        %v267 = vld [vmem:[%s1 + $0x80] sm:$0xff]
        %v268 = vld [vmem:[%s1 + $0x88] sm:$0xff]
        %v269 = vld [vmem:[%s1 + $0x90] sm:$0xff]
        %v270 = vld [vmem:[%s1 + $0x98] sm:$0xff]
        %v271 = vld [vmem:[%s1 + $0xa0] sm:$0xff]
        %v272 = vld [vmem:[%s1 + $0xa8] sm:$0xff]
        %v273 = vld [vmem:[%s1 + $0xb0] sm:$0xff]
        %v274 = vld [vmem:[%s1 + $0xb8] sm:$0xff]
        %v275 = vld [vmem:[%s1 + $0xc0] sm:$0xff]
        %v276 = vld [vmem:[%s1 + $0xc8] sm:$0xff]
        %v277 = vld [vmem:[%s1 + $0xd0] sm:$0xff]
        %v278 = vld [vmem:[%s1 + $0xd8] sm:$0xff]
        %v279 = vld [vmem:[%s1 + $0xe0] sm:$0xff]
        %v280 = vld [vmem:[%s1 + $0xe8] sm:$0xff]
        %v281 = vld [vmem:[%s1 + $0xf0] sm:$0xff]
        %v282 = vld [vmem:[%s1 + $0xf8] sm:$0xff]
        %v283 = vld [vmem:[%s1 + $0x100] sm:$0xff]
        %v284 = vld [vmem:[%s1 + $0x108] sm:$0xff]
        %v285 = vld [vmem:[%s1 + $0x110] sm:$0xff]
        %v286 = vld [vmem:[%s1 + $0x118] sm:$0xff]
        %v287 = vld [vmem:[%s1 + $0x120] sm:$0xff]
        %v288 = vld [vmem:[%s1 + $0x128] sm:$0xff]
        %v289 = vld [vmem:[%s1 + $0x130] sm:$0xff]
        %v290 = vld [vmem:[%s1 + $0x138] sm:$0xff]
        %v291 = vld [vmem:[%s1 + $0x140] sm:$0xff]
        %v292 = vld [vmem:[%s1 + $0x148] sm:$0xff]
        %v293 = vld [vmem:[%s1 + $0x150] sm:$0xff]
        %v294 = vld [vmem:[%s1 + $0x158] sm:$0xff]
        %v295 = vld [vmem:[%s1 + $0x160] sm:$0xff]
        %v296 = vld [vmem:[%s1 + $0x168] sm:$0xff]
        %v297 = vld [vmem:[%s1 + $0x170] sm:$0xff]
        %v298 = vld [vmem:[%s1 + $0x178] sm:$0xff]
        %v299 = vld [vmem:[%s1 + $0x180] sm:$0xff]
        %v300 = vld [vmem:[%s1 + $0x188] sm:$0xff]
        %v301 = vld [vmem:[%s1 + $0x190] sm:$0xff]
        %v302 = vld [vmem:[%s1 + $0x198] sm:$0xff]
        %v303 = vld [vmem:[%s1 + $0x1a0] sm:$0xff]
        %v304 = vld [vmem:[%s1 + $0x1a8] sm:$0xff]
        %v305 = vld [vmem:[%s1 + $0x1b0] sm:$0xff]
        %v306 = vld [vmem:[%s1 + $0x1b8] sm:$0xff]
        %v307 = vld [vmem:[%s1 + $0x1c0] sm:$0xff]
        %v308 = vld [vmem:[%s1 + $0x1c8] sm:$0xff]
        %v309 = vld [vmem:[%s1 + $0x1d0] sm:$0xff]
        %v310 = vld [vmem:[%s1 + $0x1d8] sm:$0xff]
        %v311 = vld [vmem:[%s1 + $0x1e0] sm:$0xff]
        %v312 = vld [vmem:[%s1 + $0x1e8] sm:$0xff]
        %v313 = vld [vmem:[%s1 + $0x1f0] sm:$0xff]
        %v314 = vld [vmem:[%s1 + $0x1f8] sm:$0xff]
        %v315 = vld [vmem:[%s1 + $0x200] sm:$0xff]
        %v316 = vld [vmem:[%s1 + $0x208] sm:$0xff]
        %v317 = vld [vmem:[%s1 + $0x210] sm:$0xff]
        %v318 = vld [vmem:[%s1 + $0x218] sm:$0xff]
        %v319 = vld [vmem:[%s1 + $0x220] sm:$0xff]
        %v320 = vld [vmem:[%s1 + $0x228] sm:$0xff]
        %v321 = vld [vmem:[%s1 + $0x230] sm:$0xff]
        %v322 = vld [vmem:[%s1 + $0x238] sm:$0xff]
        %v323 = vld [vmem:[%s1 + $0x240] sm:$0xff]
        %v324 = vld [vmem:[%s1 + $0x248] sm:$0xff]
        %v325 = vld [vmem:[%s1 + $0x250] sm:$0xff]
        %v326 = vld [vmem:[%s1 + $0x258] sm:$0xff]
        %v327 = vld [vmem:[%s1 + $0x260] sm:$0xff]
        %v328 = vld [vmem:[%s1 + $0x268] sm:$0xff]
        %v329 = vld [vmem:[%s1 + $0x270] sm:$0xff]
        %v330 = vld [vmem:[%s1 + $0x278] sm:$0xff]
        %v331 = vld [vmem:[%s1 + $0x280] sm:$0xff]
        %v332 = vld [vmem:[%s1 + $0x288] sm:$0xff]
        %v333 = vld [vmem:[%s1 + $0x290] sm:$0xff]
        %v334 = vld [vmem:[%s1 + $0x298] sm:$0xff]
        %v335 = vld [vmem:[%s1 + $0x2a0] sm:$0xff]
        %v336 = vld [vmem:[%s1 + $0x2a8] sm:$0xff]
        %v337 = vld [vmem:[%s1 + $0x2b0] sm:$0xff]
        %v338 = vld [vmem:[%s1 + $0x2b8] sm:$0xff]
        %v339 = vld [vmem:[%s1 + $0x2c0] sm:$0xff]
        %v340 = vld [vmem:[%s1 + $0x2c8] sm:$0xff]
        %v341 = vld [vmem:[%s1 + $0x2d0] sm:$0xff]
        %v342 = vld [vmem:[%s1 + $0x2d8] sm:$0xff]
        %v343 = vld [vmem:[%s1 + $0x2e0] sm:$0xff]
        %v344 = vld [vmem:[%s1 + $0x2e8] sm:$0xff]
        %v345 = vld [vmem:[%s1 + $0x2f0] sm:$0xff]
        %v346 = vld [vmem:[%s1 + $0x2f8] sm:$0xff]
        %v347 = vld [vmem:[%s1 + $0x300] sm:$0xff]
        %v348 = vld [vmem:[%s1 + $0x308] sm:$0xff]
        %v349 = vld [vmem:[%s1 + $0x310] sm:$0xff]
        %v350 = vld [vmem:[%s1 + $0x318] sm:$0xff]
        %v351 = vld [vmem:[%s1 + $0x320] sm:$0xff]
        %v352 = vld [vmem:[%s1 + $0x328] sm:$0xff]
        %v353 = vld [vmem:[%s1 + $0x330] sm:$0xff]
        %v354 = vld [vmem:[%s1 + $0x338] sm:$0xff]
        %v355 = vld [vmem:[%s1 + $0x340] sm:$0xff]
        %v356 = vld [vmem:[%s1 + $0x348] sm:$0xff]
        %v357 = vld [vmem:[%s1 + $0x350] sm:$0xff]
        %v358 = vld [vmem:[%s1 + $0x358] sm:$0xff]
        %v359 = vld [vmem:[%s1 + $0x360] sm:$0xff]
        %v360 = vld [vmem:[%s1 + $0x368] sm:$0xff]
        %v361 = vld [vmem:[%s1 + $0x370] sm:$0xff]
        %v362 = vld [vmem:[%s1 + $0x378] sm:$0xff]
        %v363 = vld [vmem:[%s1 + $0x380] sm:$0xff]
        %v364 = vld [vmem:[%s1 + $0x388] sm:$0xff]
        %v365 = vld [vmem:[%s1 + $0x390] sm:$0xff]
        %v366 = vld [vmem:[%s1 + $0x398] sm:$0xff]
        %v367 = vld [vmem:[%s1 + $0x3a0] sm:$0xff]
        %v368 = vld [vmem:[%s1 + $0x3a8] sm:$0xff]
        %v369 = vld [vmem:[%s1 + $0x3b0] sm:$0xff]
        %v370 = vld [vmem:[%s1 + $0x3b8] sm:$0xff]
        %v371 = vld [vmem:[%s1 + $0x3c0] sm:$0xff]
        %v372 = vld [vmem:[%s1 + $0x3c8] sm:$0xff]
        %v373 = vld [vmem:[%s1 + $0x3d0] sm:$0xff]
        %v374 = vld [vmem:[%s1 + $0x3d8] sm:$0xff]
        %v375 = vld [vmem:[%s1 + $0x3e0] sm:$0xff]
        %v376 = vld [vmem:[%s1 + $0x3e8] sm:$0xff]
        %v377 = vld [vmem:[%s1 + $0x3f0] sm:$0xff]
        %v378 = vld [vmem:[%s1 + $0x3f8] sm:$0xff]
        %379 = vmatprep.subr.mxu0 %v252
        %380 = vmatpush1.msra.mxu0 %v251
        %381 = vmatprep.subr.mxu0 %v256
        %382 = vmatpush1.msra.mxu0 %v255
        %383 = vmatprep.subr.mxu0 %v260
        %384 = vmatpush1.msra.mxu0 %v259
        %385 = vmatprep.subr.mxu0 %v264
        %386 = vmatpush1.msra.mxu0 %v263
        %387 = vmatprep.subr.mxu0 %v268
        %388 = vmatpush1.msra.mxu0 %v267
        %389 = vmatprep.subr.mxu0 %v272
        %390 = vmatpush1.msra.mxu0 %v271
        %391 = vmatprep.subr.mxu0 %v276
        %392 = vmatpush1.msra.mxu0 %v275
        %393 = vmatprep.subr.mxu0 %v280
        %394 = vmatpush1.msra.mxu0 %v279
        %395 = vmatprep.subr.mxu0 %v284
        %396 = vmatpush1.msra.mxu0 %v283
        %397 = vmatprep.subr.mxu0 %v288
        %398 = vmatpush1.msra.mxu0 %v287
        %399 = vmatprep.subr.mxu0 %v292
        %400 = vmatpush1.msra.mxu0 %v291
        %401 = vmatprep.subr.mxu0 %v296
        %402 = vmatpush1.msra.mxu0 %v295
        %403 = vmatprep.subr.mxu0 %v300
        %404 = vmatpush1.msra.mxu0 %v299
        %405 = vmatprep.subr.mxu0 %v304
        %406 = vmatpush1.msra.mxu0 %v303
        %407 = vmatprep.subr.mxu0 %v308
        %408 = vmatpush1.msra.mxu0 %v307
        %409 = vmatprep.subr.mxu0 %v312
        %410 = vmatpush1.msra.mxu0 %v311
        %411 = vmatprep.subr.mxu0 %v316
        %412 = vmatpush1.msra.mxu0 %v315
        %413 = vmatprep.subr.mxu0 %v320
        %414 = vmatpush1.msra.mxu0 %v319
        %415 = vmatprep.subr.mxu0 %v324
        %416 = vmatpush1.msra.mxu0 %v323
        %417 = vmatprep.subr.mxu0 %v328
        %418 = vmatpush1.msra.mxu0 %v327
        %419 = vmatprep.subr.mxu0 %v332
        %420 = vmatpush1.msra.mxu0 %v331
        %421 = vmatprep.subr.mxu0 %v336
        %422 = vmatpush1.msra.mxu0 %v335
        %423 = vmatprep.subr.mxu0 %v340
        %424 = vmatpush1.msra.mxu0 %v339
        %425 = vmatprep.subr.mxu0 %v344
        %426 = vmatpush1.msra.mxu0 %v343
        %427 = vmatprep.subr.mxu0 %v348
        %428 = vmatpush1.msra.mxu0 %v347
        %429 = vmatprep.subr.mxu0 %v352
        %430 = vmatpush1.msra.mxu0 %v351
        %431 = vmatprep.subr.mxu0 %v356
        %432 = vmatpush1.msra.mxu0 %v355
        %433 = vmatprep.subr.mxu0 %v360
        %434 = vmatpush1.msra.mxu0 %v359
        %435 = vmatprep.subr.mxu0 %v364
        %436 = vmatpush1.msra.mxu0 %v363
        %437 = vmatprep.subr.mxu0 %v368
        %438 = vmatpush1.msra.mxu0 %v367
        %439 = vmatprep.subr.mxu0 %v372
        %440 = vmatpush1.msra.mxu0 %v371
        %441 = vmatprep.subr.mxu0 %v376
        %442 = vmatpush1.msra.mxu0 %v375
        %443 = vmatprep.mubr.f32.mxu0 %v223
        %444 = vmatmul.mubr.f32.gmra.mrb[0].mxu0 %v218
        %v445 = vpop.f32.mrb[0].mxu0
        %v446 = vadd.f32 0.0, %v445
        %v447 = vpop.f32.mrb[0].mxu0
        %v448 = vadd.f32 0.0, %v447
        %449 = vmatprep.mubr.f32.mxu0 %v224
        %450 = vmatmul.mubr.f32.gmra.mrb[0].mxu0 %v219
        %v451 = vpop.f32.mrb[0].mxu0
        %v452 = vadd.f32 0.0, %v451
        %v453 = vpop.f32.mrb[0].mxu0
        %v454 = vadd.f32 0.0, %v453
        %455 = vmatprep.mubr.f32.mxu0 %v225
        %456 = vmatmul.mubr.f32.gmra.mrb[0].mxu0 %v220
        %v457 = vpop.f32.mrb[0].mxu0
        %v458 = vadd.f32 0.0, %v457
        %v459 = vpop.f32.mrb[0].mxu0
        %v460 = vadd.f32 0.0, %v459
        %461 = vmatprep.mubr.f32.mxu0 %v226
        %462 = vmatmul.mubr.f32.gmra.mrb[0].mxu0 %v221
        %v463 = vpop.f32.mrb[0].mxu0
        %v464 = vadd.f32 0.0, %v463
        %v465 = vpop.f32.mrb[0].mxu0
        %v466 = vadd.f32 0.0, %v465
        %467 = vmatprep.mubr.f32.mxu0 %v227
        %468 = vmatmul.mubr.f32.gmra.mrb[0].mxu0 %v222
        %v469 = vpop.f32.mrb[0].mxu0
        %v470 = vadd.f32 0.0, %v469
        %v471 = vpop.f32.mrb[0].mxu0
        %v472 = vadd.f32 0.0, %v471
        %473 = vdwg.mxu0
        %474 = vmatprep.subr.mxu0 %v254
        %475 = vmatpush1.msra.mxu0 %v253
        %476 = vmatprep.subr.mxu0 %v258
        %477 = vmatpush1.msra.mxu0 %v257
        %478 = vmatprep.subr.mxu0 %v262
        %479 = vmatpush1.msra.mxu0 %v261
        %480 = vmatprep.subr.mxu0 %v266
        %481 = vmatpush1.msra.mxu0 %v265
        %482 = vmatprep.subr.mxu0 %v270
        %483 = vmatpush1.msra.mxu0 %v269
        %484 = vmatprep.subr.mxu0 %v274
        %485 = vmatpush1.msra.mxu0 %v273
        %486 = vmatprep.subr.mxu0 %v278
        %487 = vmatpush1.msra.mxu0 %v277
        %488 = vmatprep.subr.mxu0 %v282
        %489 = vmatpush1.msra.mxu0 %v281
        %490 = vmatprep.subr.mxu0 %v286
        %491 = vmatpush1.msra.mxu0 %v285
        %492 = vmatprep.subr.mxu0 %v290
        %493 = vmatpush1.msra.mxu0 %v289
        %494 = vmatprep.subr.mxu0 %v294
        %495 = vmatpush1.msra.mxu0 %v293
        %496 = vmatprep.subr.mxu0 %v298
        %497 = vmatpush1.msra.mxu0 %v297
        %498 = vmatprep.subr.mxu0 %v302
        %499 = vmatpush1.msra.mxu0 %v301
        %500 = vmatprep.subr.mxu0 %v306
        %501 = vmatpush1.msra.mxu0 %v305
        %502 = vmatprep.subr.mxu0 %v310
        %503 = vmatpush1.msra.mxu0 %v309
        %504 = vmatprep.subr.mxu0 %v314
        %505 = vmatpush1.msra.mxu0 %v313
        %506 = vmatprep.subr.mxu0 %v318
        %507 = vmatpush1.msra.mxu0 %v317
        %508 = vmatprep.subr.mxu0 %v322
        %509 = vmatpush1.msra.mxu0 %v321
        %510 = vmatprep.subr.mxu0 %v326
        %511 = vmatpush1.msra.mxu0 %v325
        %512 = vmatprep.subr.mxu0 %v330
        %513 = vmatpush1.msra.mxu0 %v329
        %514 = vmatprep.subr.mxu0 %v334
        %515 = vmatpush1.msra.mxu0 %v333
        %516 = vmatprep.subr.mxu0 %v338
        %517 = vmatpush1.msra.mxu0 %v337
        %518 = vmatprep.subr.mxu0 %v342
        %519 = vmatpush1.msra.mxu0 %v341
        %520 = vmatprep.subr.mxu0 %v346
        %521 = vmatpush1.msra.mxu0 %v345
        %522 = vmatprep.subr.mxu0 %v350
        %523 = vmatpush1.msra.mxu0 %v349
        %524 = vmatprep.subr.mxu0 %v354
        %525 = vmatpush1.msra.mxu0 %v353
        %526 = vmatprep.subr.mxu0 %v358
        %527 = vmatpush1.msra.mxu0 %v357
        %528 = vmatprep.subr.mxu0 %v362
        %529 = vmatpush1.msra.mxu0 %v361
        %530 = vmatprep.subr.mxu0 %v366
        %531 = vmatpush1.msra.mxu0 %v365
        %532 = vmatprep.subr.mxu0 %v370
        %533 = vmatpush1.msra.mxu0 %v369
        %534 = vmatprep.subr.mxu0 %v374
        %535 = vmatpush1.msra.mxu0 %v373
        %536 = vmatprep.subr.mxu0 %v378
        %537 = vmatpush1.msra.mxu0 %v377
        %538 = vmatprep.mubr.f32.mxu0 %v223
        %539 = vmatmul.mubr.f32.gmra.mrb[0].mxu0 %v218
        %v540 = vpop.f32.mrb[0].mxu0
        %v541 = vadd.f32 0.0, %v540
        %v542 = vpop.f32.mrb[0].mxu0
        %v543 = vadd.f32 0.0, %v542
        %544 = vmatprep.mubr.f32.mxu0 %v224
        %545 = vmatmul.mubr.f32.gmra.mrb[0].mxu0 %v219
        %v546 = vpop.f32.mrb[0].mxu0
        %v547 = vadd.f32 0.0, %v546
        %v548 = vpop.f32.mrb[0].mxu0
        %v549 = vadd.f32 0.0, %v548
        %550 = vmatprep.mubr.f32.mxu0 %v225
        %551 = vmatmul.mubr.f32.gmra.mrb[0].mxu0 %v220
        %v552 = vpop.f32.mrb[0].mxu0
        %v553 = vadd.f32 0.0, %v552
        %v554 = vpop.f32.mrb[0].mxu0
        %v555 = vadd.f32 0.0, %v554
        %556 = vmatprep.mubr.f32.mxu0 %v226
        %557 = vmatmul.mubr.f32.gmra.mrb[0].mxu0 %v221
        %v558 = vpop.f32.mrb[0].mxu0
        %v559 = vadd.f32 0.0, %v558
        %v560 = vpop.f32.mrb[0].mxu0
        %v561 = vadd.f32 0.0, %v560
        %562 = vmatprep.mubr.f32.mxu0 %v227
        %563 = vmatmul.mubr.f32.gmra.mrb[0].mxu0 %v222
        %v564 = vpop.f32.mrb[0].mxu0
        %v565 = vadd.f32 0.0, %v564
        %v566 = vpop.f32.mrb[0].mxu0
        %v567 = vadd.f32 0.0, %v566
        %568 = vdwg.mxu0
        %v569 = vadd.f32 %v231, %v446
        %v570 = vadd.f32 %v232, %v448
        %v571 = vadd.f32 %v233, %v541
        %v572 = vadd.f32 %v234, %v543
        %v573 = vadd.f32 %v235, %v452
        %v574 = vadd.f32 %v236, %v454
        %v575 = vadd.f32 %v237, %v547
        %v576 = vadd.f32 %v238, %v549
        %v577 = vadd.f32 %v239, %v458
        %v578 = vadd.f32 %v240, %v460
        %v579 = vadd.f32 %v241, %v553
        %v580 = vadd.f32 %v242, %v555
        %v581 = vadd.f32 %v243, %v464
        %v582 = vadd.f32 %v244, %v466
        %v583 = vadd.f32 %v245, %v559
        %v584 = vadd.f32 %v246, %v561
        %v585 = vadd.f32 %v247, %v470
        %v586 = vadd.f32 %v248, %v472
        %v587 = vadd.f32 %v249, %v565
        %v588 = vadd.f32 %v250, %v567
        %v589 = vtanh.pop %v569
        %v590 = vtanh.pop %v570
        %v591 = vtanh.pop %v571
        %v592 = vtanh.pop %v572
        %v593 = vtanh.pop %v573
        %v594 = vtanh.pop %v574
        %v595 = vtanh.pop %v575
        %v596 = vtanh.pop %v576
        %v597 = vtanh.pop %v577
        %v598 = vtanh.pop %v578
        %v599 = vtanh.pop %v579
        %v600 = vtanh.pop %v580
        %v601 = vtanh.pop %v581
        %v602 = vtanh.pop %v582
        %v603 = vtanh.pop %v583
        %v604 = vtanh.pop %v584
        %v605 = vtanh.pop %v585
        %v606 = vtanh.pop %v586
        %v607 = vtanh.pop %v587
        %v608 = vtanh.pop %v588
        %v609 = vmul.f32 %v589, 0.5
        %v610 = vmul.f32 %v593, 0.5
        %v611 = vmul.f32 %v597, 0.5
        %v612 = vmul.f32 %v601, 0.5
        %v613 = vmul.f32 %v605, 0.5
        %v614 = vadd.f32 %v609, 0.5
        %v615 = vadd.f32 %v610, 0.5
        %v616 = vadd.f32 %v611, 0.5
        %v617 = vadd.f32 %v612, 0.5
        %v618 = vadd.f32 %v613, 0.5
        %v619 = vmul.f32 %v590, 0.5
        %v620 = vmul.f32 %v594, 0.5
        %v621 = vmul.f32 %v598, 0.5
        %v622 = vmul.f32 %v602, 0.5
        %v623 = vmul.f32 %v606, 0.5
        %v624 = vadd.f32 %v619, 0.5
        %v625 = vadd.f32 %v620, 0.5
        %v626 = vadd.f32 %v621, 0.5
        %v627 = vadd.f32 %v622, 0.5
        %v628 = vadd.f32 %v623, 0.5
        %v629 = vmul.f32 %v592, 0.5
        %v630 = vmul.f32 %v596, 0.5
        %v631 = vmul.f32 %v600, 0.5
        %v632 = vmul.f32 %v604, 0.5
        %v633 = vmul.f32 %v608, 0.5
        %v634 = vadd.f32 %v629, 0.5
        %v635 = vadd.f32 %v630, 0.5
        %v636 = vadd.f32 %v631, 0.5
        %v637 = vadd.f32 %v632, 0.5
        %v638 = vadd.f32 %v633, 0.5
        %v639 = vmul.f32 %v624, %v213
        %v640 = vmul.f32 %v625, %v214
        %v641 = vmul.f32 %v626, %v215
        %v642 = vmul.f32 %v627, %v216
        %v643 = vmul.f32 %v628, %v217
        %v644 = vmul.f32 %v614, %v591
        %v645 = vmul.f32 %v615, %v595
        %v646 = vmul.f32 %v616, %v599
        %v647 = vmul.f32 %v617, %v603
        %v648 = vmul.f32 %v618, %v607
        %v649 = vadd.f32 %v639, %v644
        %v650 = vadd.f32 %v640, %v645
        %v651 = vadd.f32 %v641, %v646
        %v652 = vadd.f32 %v642, %v647
        %v653 = vadd.f32 %v643, %v648
        %v654 = vtanh.pop %v649
        %v655 = vtanh.pop %v650
        %v656 = vtanh.pop %v651
        %v657 = vtanh.pop %v652
        %v658 = vtanh.pop %v653
        %v659 = vmul.f32 %v634, %v654
        %v660 = vmul.f32 %v635, %v655
        %v661 = vmul.f32 %v636, %v656
        %v662 = vmul.f32 %v637, %v657
        %v663 = vmul.f32 %v638, %v658
        %s664 = smul.u32 %s203, 40
        %s665 = scalar_lea.vmem %s150, %s664
        %666 = vst [vmem:[%s665] sm:$0xff] %v659
        %667 = vst [vmem:[%s665 + $0x8] sm:$0xff] %v660
        %668 = vst [vmem:[%s665 + $0x10] sm:$0xff] %v661
        %669 = vst [vmem:[%s665 + $0x18] sm:$0xff] %v662
        %670 = vst [vmem:[%s665 + $0x20] sm:$0xff] %v663
      $region37: #{forward.2} parent=27 // loop_footer
        %s207 = sadd.s32 1, %s203
      $region38: #{forward.2} parent=27 // loop_footer_branch
        %202 = sbr.rel target = $region34
      $region39: #{forward.2} parent=27 // loop_exit
        _
      %671 = vst [vmem:[#allocation2] sm:$0xff] %v208
      %672 = vst [vmem:[#allocation2 + $0x8] sm:$0xff] %v209
      %673 = vst [vmem:[#allocation2 + $0x10] sm:$0xff] %v210
      %674 = vst [vmem:[#allocation2 + $0x18] sm:$0xff] %v211
      %675 = vst [vmem:[#allocation2 + $0x20] sm:$0xff] %v212
      %676 = vst [vmem:[#allocation3] sm:$0xff] %v213
      %677 = vst [vmem:[#allocation3 + $0x8] sm:$0xff] %v214
      %678 = vst [vmem:[#allocation3 + $0x10] sm:$0xff] %v215
      %679 = vst [vmem:[#allocation3 + $0x18] sm:$0xff] %v216
      %680 = vst [vmem:[#allocation3 + $0x20] sm:$0xff] %v217
      %s681 = smul.u32 10, %s13
      %p682 = scmp.lt.s32.totalorder %s681, 49
      %s683 = scalar_select %p682, %s681, 49
      %s684 = smul.addr %s683, 5
      %s685 = smul.addr %s684, 8
      %s686 = scalar_lea.vmem %s2, %s685
      // Predicated region
      $region40: #{forward.2} parent=27 // pred_check
        %p687 = pneg %p78
      $region41: #{forward.2} parent=27 // pred_check_branch
        %689 = sbr.rel (%p687) target = $region43
      $region42: #{forward.2} parent=27 // pred_region
        %s690 = smul.u32 10, %s13
      $region43: #{forward.2} parent=27 // pred_fallthru
        _
    $region28: #{forward.2} parent=5 // pred_fallthru
      _
    %p691 = scmp.le.s32.totalorder 2, %s8
    // Predicated region
    $region44: #{forward.2} parent=5 // pred_check
      %p692 = pneg %p691
    $region45: #{forward.2} parent=5 // pred_check_branch
      %694 = sbr.rel (%p692) target = $region47
    $region46: #{forward.2} parent=5 // pred_region
      %s695 = ssub.s32 %s8, 2
      // Predicated region
      $region48: #{forward.2} parent=46 // pred_check
        %p696 = pneg %p84
      $region49: #{forward.2} parent=46 // pred_check_branch
        %698 = sbr.rel (%p696) target = $region51
      $region50: #{forward.2} parent=46 // pred_region
        %s699 = smul.u32 10, %s14
        %p700 = scmp.lt.s32.totalorder %s699, 49
        %s701 = scalar_select %p700, %s699, 49
        %s702 = smul.addr %s701, 5
        %s703 = smul.addr %s702, 8
        %s704 = scalar_lea.vmem %s2, %s703
      $region51: #{forward.2} parent=46 // pred_fallthru
        _
    $region47: #{forward.2} parent=5 // pred_fallthru
      _
  $region6: #{forward.2} parent=0 // loop_footer
    %s12 = sadd.s32 1, %s8
  $region7: #{forward.2} parent=0 // loop_footer_branch
    %7 = sbr.rel target = $region3
  $region8: #{forward.2} parent=0 // loop_exit
    _

// kernel: forward.3
$region0: #{forward.3}
  #allocation0 [shape = 'u32[]', space=smem, size = 0x4, offset = 0x4, fixed_abs, tag = 'smem constant byte address 0x4 - core index']
  #allocation1 [shape = 'u32[144,128]{1,0:T(1,128)}', space=vmem, size = 0x12000, scoped, tag = 'internal scratch']
  #allocation2 [shape = 'f32[60,2,128]{2,1,0:T(2,128)}', space=vmem, size = 0xf000, scoped, tag = 'scratch operand']
  #allocation3 [shape = 'f32[1,1]{1,0:T(1,128)S(1)}', space=vmem, size = 0x200, scoped, tag = 'scoped memory for forward.3']
  %s0 = inlined_call_operand.vmem [shape: f32[4,40,128], index: 0, kind: input, shape index: {}]
  %s1 = inlined_call_operand.vmem [shape: f32[128,64], index: 1, kind: input, shape index: {}]
  %s2 = inlined_call_operand.vmem [shape: f32[1,64], index: 2, kind: input, shape index: {}]
  %s3 = inlined_call_operand.vmem [shape: f32[1,64], index: 3, kind: input, shape index: {}]
  %s4 = inlined_call_operand.<no memory space> [shape: f32[1,1], index: 4, kind: input, shape index: {}]
  %s5 = inlined_call_operand.vmem [shape: f32[4,256,128], index: 5, kind: input, shape index: {}]
  %s6 = inlined_call_operand.vmem [shape: f32[1,128], index: 6, kind: input, shape index: {}]
  %s7 = inlined_call_operand.vmem [shape: f32[128,512], index: 7, kind: input, shape index: {}]
  %s8 = inlined_call_operand.vmem [shape: f32[128,512], index: 8, kind: input, shape index: {}]
  %s9 = inlined_call_operand.vmem [shape: f32[1,512], index: 9, kind: input, shape index: {}]
  %s10 = inlined_call_operand.vmem [shape: f32[128,64], index: 10, kind: input, shape index: {}]
  %s11 = inlined_call_operand.vmem [shape: f32[1,64], index: 11, kind: input, shape index: {}]
  %s12 = inlined_call_operand.vmem [shape: f32[64,128], index: 12, kind: input, shape index: {}]
  %s13 = inlined_call_operand.vmem [shape: f32[1,128], index: 13, kind: input, shape index: {}]
  %s14 = inlined_call_operand.vmem [shape: f32[120,128], index: 14, kind: output, shape index: {}]
  %s15 = sld [smem:[#allocation0]]
  $region73: #{forward.3} parent=0
    _
  %s17 = ssub.s32 1, %s15
  %s18 = scalar_select 0, %s17, %s15
  %v19 = vstv %s4
  %20 = vst [vmem:[#allocation3] sm:$0x1] %v19
  // Predicated region
  $region2: #{forward.3} parent=0 // pred_check
    _
  $region3: #{forward.3} parent=0 // pred_check_branch
    %22 = sbr.rel (0) target = $region5
  $region4: #{forward.3} parent=0 // pred_region
    _
  $region5: #{forward.3} parent=0 // pred_fallthru
    _
  // Predicated region
  $region6: #{forward.3} parent=0 // pred_check
    _
  $region7: #{forward.3} parent=0 // pred_check_branch
    %24 = sbr.rel (0) target = $region9
  $region8: #{forward.3} parent=0 // pred_region
    _
  $region9: #{forward.3} parent=0 // pred_fallthru
    _
  // Predicated region
  $region10: #{forward.3} parent=0 // pred_check
    _
  $region11: #{forward.3} parent=0 // pred_check_branch
    %26 = sbr.rel (0) target = $region13
  $region12: #{forward.3} parent=0 // pred_region
    _
  $region13: #{forward.3} parent=0 // pred_fallthru
    _
  // Predicated region
  $region14: #{forward.3} parent=0 // pred_check
    _
  $region15: #{forward.3} parent=0 // pred_check_branch
    %28 = sbr.rel (0) target = $region17
  $region16: #{forward.3} parent=0 // pred_region
    _
  $region17: #{forward.3} parent=0 // pred_fallthru
    _
  // Predicated region
  $region18: #{forward.3} parent=0 // pred_check
    _
  $region19: #{forward.3} parent=0 // pred_check_branch
    %30 = sbr.rel (0) target = $region21
  $region20: #{forward.3} parent=0 // pred_region
    _
  $region21: #{forward.3} parent=0 // pred_fallthru
    _
  // Predicated region
  $region22: #{forward.3} parent=0 // pred_check
    _
  $region23: #{forward.3} parent=0 // pred_check_branch
    %32 = sbr.rel (0) target = $region25
  $region24: #{forward.3} parent=0 // pred_region
    _
  $region25: #{forward.3} parent=0 // pred_fallthru
    _
  // Predicated region
  $region26: #{forward.3} parent=0 // pred_check
    _
  $region27: #{forward.3} parent=0 // pred_check_branch
    %34 = sbr.rel (0) target = $region29
  $region28: #{forward.3} parent=0 // pred_region
    _
  $region29: #{forward.3} parent=0 // pred_fallthru
    _
  // Predicated region
  $region30: #{forward.3} parent=0 // pred_check
    _
  $region31: #{forward.3} parent=0 // pred_check_branch
    %36 = sbr.rel (0) target = $region33
  $region32: #{forward.3} parent=0 // pred_region
    _
  $region33: #{forward.3} parent=0 // pred_fallthru
    _
  // Predicated region
  $region34: #{forward.3} parent=0 // pred_check
    _
  $region35: #{forward.3} parent=0 // pred_check_branch
    %38 = sbr.rel (0) target = $region37
  $region36: #{forward.3} parent=0 // pred_region
    _
  $region37: #{forward.3} parent=0 // pred_fallthru
    _
  // Predicated region
  $region38: #{forward.3} parent=0 // pred_check
    _
  $region39: #{forward.3} parent=0 // pred_check_branch
    %40 = sbr.rel (0) target = $region41
  $region40: #{forward.3} parent=0 // pred_region
    _
  $region41: #{forward.3} parent=0 // pred_fallthru
    _
  // Predicated region
  $region42: #{forward.3} parent=0 // pred_check
    _
  $region43: #{forward.3} parent=0 // pred_check_branch
    %42 = sbr.rel (0) target = $region45
  $region44: #{forward.3} parent=0 // pred_region
    _
  $region45: #{forward.3} parent=0 // pred_fallthru
    _
  // Predicated region
  $region46: #{forward.3} parent=0 // pred_check
    _
  $region47: #{forward.3} parent=0 // pred_check_branch
    %44 = sbr.rel (0) target = $region49
  $region48: #{forward.3} parent=0 // pred_region
    _
  $region49: #{forward.3} parent=0 // pred_fallthru
    _
  // Predicated region
  $region50: #{forward.3} parent=0 // pred_check
    _
  $region51: #{forward.3} parent=0 // pred_check_branch
    %46 = sbr.rel (0) target = $region53
  $region52: #{forward.3} parent=0 // pred_region
    _
  $region53: #{forward.3} parent=0 // pred_fallthru
    _
  // Predicated region
  $region54: #{forward.3} parent=0 // pred_check
    _
  $region55: #{forward.3} parent=0 // pred_check_branch
    %48 = sbr.rel (0) target = $region57
  $region56: #{forward.3} parent=0 // pred_region
    _
  $region57: #{forward.3} parent=0 // pred_fallthru
    _
  %v49 = vld [vmem:[%s0] sm:$0xff]
  %v50 = vld [vmem:[%s0 + $0x8] sm:$0xff]
  %v51 = vld [vmem:[%s0 + $0x10] sm:$0xff]
  %v52 = vld [vmem:[%s0 + $0x18] sm:$0xff]
  %v53 = vld [vmem:[%s0 + $0x20] sm:$0xff]
  %v54 = vld [vmem:[%s0 + $0x28] sm:$0xff]
  %v55 = vld [vmem:[%s0 + $0x30] sm:$0xff]
  %v56 = vld [vmem:[%s0 + $0x38] sm:$0xff]
  %v57 = vld [vmem:[%s0 + $0x40] sm:$0xff]
  %v58 = vld [vmem:[%s0 + $0x48] sm:$0xff]
  %v59 = vld [vmem:[%s0 + $0x50] sm:$0xff]
  %v60 = vld [vmem:[%s0 + $0x58] sm:$0xff]
  %v61 = vld [vmem:[%s0 + $0x60] sm:$0xff]
  %v62 = vld [vmem:[%s0 + $0x68] sm:$0xff]
  %v63 = vld [vmem:[%s0 + $0x70] sm:$0xff]
  %v64 = vld [vmem:[%s0 + $0x78] sm:$0xff]
  %v65 = vld [vmem:[%s0 + $0x80] sm:$0xff]
  %v66 = vld [vmem:[%s0 + $0x88] sm:$0xff]
  %v67 = vld [vmem:[%s0 + $0x90] sm:$0xff]
  %v68 = vld [vmem:[%s0 + $0x98] sm:$0xff]
  %v69 = vld [vmem:[%s1] sm:$0xff]
  %v70 = vld [vmem:[%s1 + $0x8] sm:$0xff]
  %v71 = vld [vmem:[%s1 + $0x10] sm:$0xff]
  %v72 = vld [vmem:[%s1 + $0x18] sm:$0xff]
  %v73 = vld [vmem:[%s1 + $0x20] sm:$0xff]
  %v74 = vld [vmem:[%s1 + $0x28] sm:$0xff]
  %v75 = vld [vmem:[%s1 + $0x30] sm:$0xff]
  %v76 = vld [vmem:[%s1 + $0x38] sm:$0xff]
  %v77 = vld [vmem:[%s1 + $0x40] sm:$0xff]
  %v78 = vld [vmem:[%s1 + $0x48] sm:$0xff]
  %v79 = vld [vmem:[%s1 + $0x50] sm:$0xff]
  %v80 = vld [vmem:[%s1 + $0x58] sm:$0xff]
  %v81 = vld [vmem:[%s1 + $0x60] sm:$0xff]
  %v82 = vld [vmem:[%s1 + $0x68] sm:$0xff]
  %v83 = vld [vmem:[%s1 + $0x70] sm:$0xff]
  %v84 = vld [vmem:[%s1 + $0x78] sm:$0xff]
  %v85 = vld [vmem:[%s2] sm:$0x1]
  %v86 = vld [vmem:[%s3] sm:$0x1]
  %v87 = vld [vmem:[#allocation3] sm:$0x1]
  %v88 = vld [vmem:[%s6] sm:$0x1]
  %v90 = vlaneseq
  %v91 = vshrl.u32 %v90, 7
  %v92 = vsub.s32 0, %v91
  %v93 = vrot.slane %v88, %v92
  %v95 = vadd.f32 %v93, 0.0
  %v96 = vld [vmem:[%s5] sm:$0xff]
  %v97 = vld [vmem:[%s5 + $0x8] sm:$0xff]
  %v98 = vld [vmem:[%s5 + $0x10] sm:$0xff]
  %v99 = vld [vmem:[%s5 + $0x18] sm:$0xff]
  %v100 = vld [vmem:[%s5 + $0x20] sm:$0xff]
  %v101 = vld [vmem:[%s5 + $0x28] sm:$0xff]
  %v102 = vld [vmem:[%s5 + $0x30] sm:$0xff]
  %v103 = vld [vmem:[%s5 + $0x38] sm:$0xff]
  %v104 = vld [vmem:[%s5 + $0x40] sm:$0xff]
  %v105 = vld [vmem:[%s5 + $0x48] sm:$0xff]
  %v106 = vld [vmem:[%s5 + $0x50] sm:$0xff]
  %v107 = vld [vmem:[%s5 + $0x58] sm:$0xff]
  %v108 = vld [vmem:[%s5 + $0x60] sm:$0xff]
  %v109 = vld [vmem:[%s5 + $0x68] sm:$0xff]
  %v110 = vld [vmem:[%s5 + $0x70] sm:$0xff]
  %v111 = vld [vmem:[%s5 + $0x78] sm:$0xff]
  %112 = vmatprep.subr.mxu0 0.0
  %113 = vmatpush1.msra.mxu0 %v96
  %114 = vmatprep.subr.mxu0 0.0
  %115 = vmatpush1.msra.mxu0 %v97
  %116 = vmatprep.subr.mxu0 0.0
  %117 = vmatpush1.msra.mxu0 %v98
  %118 = vmatprep.subr.mxu0 0.0
  %119 = vmatpush1.msra.mxu0 %v99
  %120 = vmatprep.subr.mxu0 0.0
  %121 = vmatpush1.msra.mxu0 %v100
  %122 = vmatprep.subr.mxu0 0.0
  %123 = vmatpush1.msra.mxu0 %v101
  %124 = vmatprep.subr.mxu0 0.0
  %125 = vmatpush1.msra.mxu0 %v102
  %126 = vmatprep.subr.mxu0 0.0
  %127 = vmatpush1.msra.mxu0 %v103
  %128 = vmatprep.subr.mxu0 0.0
  %129 = vmatpush1.msra.mxu0 %v104
  %130 = vmatprep.subr.mxu0 0.0
  %131 = vmatpush1.msra.mxu0 %v105
  %132 = vmatprep.subr.mxu0 0.0
  %133 = vmatpush1.msra.mxu0 %v106
  %134 = vmatprep.subr.mxu0 0.0
  %135 = vmatpush1.msra.mxu0 %v107
  %136 = vmatprep.subr.mxu0 0.0
  %137 = vmatpush1.msra.mxu0 %v108
  %138 = vmatprep.subr.mxu0 0.0
  %139 = vmatpush1.msra.mxu0 %v109
  %140 = vmatprep.subr.mxu0 0.0
  %141 = vmatpush1.msra.mxu0 %v110
  %142 = vmatprep.subr.mxu0 0.0
  %143 = vmatpush1.msra.mxu0 %v111
  %144 = vmatprep.subr.mxu0 0.0
  %145 = vmatpush1.msra.mxu0 0.0
  %146 = vmatprep.subr.mxu0 0.0
  %147 = vmatpush1.msra.mxu0 0.0
  %148 = vmatprep.subr.mxu0 0.0
  %149 = vmatpush1.msra.mxu0 0.0
  %150 = vmatprep.subr.mxu0 0.0
  %151 = vmatpush1.msra.mxu0 0.0
  %152 = vmatprep.subr.mxu0 0.0
  %153 = vmatpush1.msra.mxu0 0.0
  %154 = vmatprep.subr.mxu0 0.0
  %155 = vmatpush1.msra.mxu0 0.0
  %156 = vmatprep.subr.mxu0 0.0
  %157 = vmatpush1.msra.mxu0 0.0
  %158 = vmatprep.subr.mxu0 0.0
  %159 = vmatpush1.msra.mxu0 0.0
  %160 = vmatprep.subr.mxu0 0.0
  %161 = vmatpush1.msra.mxu0 0.0
  %162 = vmatprep.subr.mxu0 0.0
  %163 = vmatpush1.msra.mxu0 0.0
  %164 = vmatprep.subr.mxu0 0.0
  %165 = vmatpush1.msra.mxu0 0.0
  %166 = vmatprep.subr.mxu0 0.0
  %167 = vmatpush1.msra.mxu0 0.0
  %168 = vmatprep.subr.mxu0 0.0
  %169 = vmatpush1.msra.mxu0 0.0
  %170 = vmatprep.subr.mxu0 0.0
  %171 = vmatpush1.msra.mxu0 0.0
  %172 = vmatprep.subr.mxu0 0.0
  %173 = vmatpush1.msra.mxu0 0.0
  %174 = vmatprep.subr.mxu0 0.0
  %175 = vmatpush1.msra.mxu0 0.0
  %176 = vmatprep.mubr.f32.mxu0 0.0
  %177 = vmatmul.mubr.f32.gmra.mrb[0].mxu0 %v49
  %v178 = vpop.f32.mrb[0].mxu0
  %v179 = vadd.f32 0.0, %v178
  %v180 = vpop.f32.mrb[0].mxu0
  %181 = vdwg.mxu0
  %v182 = vadd.f32 %v95, %v179
  %v184 = vlaneseq
  %v185 = vshrl.u32 %v184, 7
  %v186 = vsub.s32 0, %v185
  %v187 = vrot.slane %v85, %v186
  %vm192 = vcmask 1045504
  %v193 = vrot.slane %v49, 2
  %v194 = vrot.slane %v50, 2
  %v195 = vsel %vm192, %v193, %v194
  %v196 = vrot.slane %v51, 2
  %v197 = vsel %vm192, %v194, %v196
  %201 = vmatprep.subr.mxu0 0.0
  %202 = vmatpush1.msra.mxu0 %v69
  %203 = vmatprep.subr.mxu0 0.0
  %204 = vmatpush1.msra.mxu0 %v70
  %205 = vmatprep.subr.mxu0 0.0
  %206 = vmatpush1.msra.mxu0 %v71
  %207 = vmatprep.subr.mxu0 0.0
  %208 = vmatpush1.msra.mxu0 %v72
  %209 = vmatprep.subr.mxu0 0.0
  %210 = vmatpush1.msra.mxu0 %v73
  %211 = vmatprep.subr.mxu0 0.0
  %212 = vmatpush1.msra.mxu0 %v74
  %213 = vmatprep.subr.mxu0 0.0
  %214 = vmatpush1.msra.mxu0 %v75
  %215 = vmatprep.subr.mxu0 0.0
  %216 = vmatpush1.msra.mxu0 %v76
  %217 = vmatprep.subr.mxu0 0.0
  %218 = vmatpush1.msra.mxu0 %v77
  %219 = vmatprep.subr.mxu0 0.0
  %220 = vmatpush1.msra.mxu0 %v78
  %221 = vmatprep.subr.mxu0 0.0
  %222 = vmatpush1.msra.mxu0 %v79
  %223 = vmatprep.subr.mxu0 0.0
  %224 = vmatpush1.msra.mxu0 %v80
  %225 = vmatprep.subr.mxu0 0.0
  %226 = vmatpush1.msra.mxu0 %v81
  %227 = vmatprep.subr.mxu0 0.0
  %228 = vmatpush1.msra.mxu0 %v82
  %229 = vmatprep.subr.mxu0 0.0
  %230 = vmatpush1.msra.mxu0 %v83
  %231 = vmatprep.subr.mxu0 0.0
  %232 = vmatpush1.msra.mxu0 %v84
  %233 = vmatprep.subr.mxu0 0.0
  %234 = vmatpush1.msra.mxu0 0.0
  %235 = vmatprep.subr.mxu0 0.0
  %236 = vmatpush1.msra.mxu0 0.0
  %237 = vmatprep.subr.mxu0 0.0
  %238 = vmatpush1.msra.mxu0 0.0
  %239 = vmatprep.subr.mxu0 0.0
  %240 = vmatpush1.msra.mxu0 0.0
  %241 = vmatprep.subr.mxu0 0.0
  %242 = vmatpush1.msra.mxu0 0.0
  %243 = vmatprep.subr.mxu0 0.0
  %244 = vmatpush1.msra.mxu0 0.0
  %245 = vmatprep.subr.mxu0 0.0
  %246 = vmatpush1.msra.mxu0 0.0
  %247 = vmatprep.subr.mxu0 0.0
  %248 = vmatpush1.msra.mxu0 0.0
  %249 = vmatprep.subr.mxu0 0.0
  %250 = vmatpush1.msra.mxu0 0.0
  %251 = vmatprep.subr.mxu0 0.0
  %252 = vmatpush1.msra.mxu0 0.0
  %253 = vmatprep.subr.mxu0 0.0
  %254 = vmatpush1.msra.mxu0 0.0
  %255 = vmatprep.subr.mxu0 0.0
  %256 = vmatpush1.msra.mxu0 0.0
  %257 = vmatprep.subr.mxu0 0.0
  %258 = vmatpush1.msra.mxu0 0.0
  %259 = vmatprep.subr.mxu0 0.0
  %260 = vmatpush1.msra.mxu0 0.0
  %261 = vmatprep.subr.mxu0 0.0
  %262 = vmatpush1.msra.mxu0 0.0
  %263 = vmatprep.subr.mxu0 0.0
  %264 = vmatpush1.msra.mxu0 0.0
  %265 = vmatprep.mubr.f32.mxu0 0.0
  %266 = vmatmul.mubr.f32.gmra.mrb[0].mxu0 %v195
  %v267 = vpop.f32.mrb[0].mxu0
  %v268 = vadd.f32 %v187, %v267
  %v269 = vpop.f32.mrb[0].mxu0
  %270 = vmatprep.mubr.f32.mxu0 0.0
  %271 = vmatmul.mubr.f32.gmra.mrb[0].mxu0 %v197
  %v272 = vpop.f32.mrb[0].mxu0
  %v273 = vadd.f32 %v187, %v272
  %v274 = vpop.f32.mrb[0].mxu0
  %275 = vmatprep.mubr.f32.mxu0 0.0
  %276 = vmatmul.mubr.f32.gmra.mrb[0].mxu0 %v196
  %v277 = vpop.f32.mrb[0].mxu0
  %v278 = vadd.f32 %v187, %v277
  %v279 = vpop.f32.mrb[0].mxu0
  %280 = vdwg.mxu0
  %v281 = vmax.f32 %v268, 0.0
  %v282 = vmax.f32 %v273, 0.0
  %v283 = vmax.f32 %v278, 0.0
  %v285 = vlaneseq
  %v286 = vshrl.u32 %v285, 7
  %v287 = vsub.s32 0, %v286
  %v288 = vrot.slane %v86, %v287
  %v290 = vmul.f32 %v281, %v288
  %v291 = vmul.f32 %v282, %v288
  %v292 = vmul.f32 %v283, %v288
  %vm293 = vcmask 523264
  %v294 = vsel %vm293, %v290, 0.0
  %295 = vadd.xlane.f32.xlu0 %v294
  %v296 = vpop.xlane.xlu0 %295
  %v297 = vsel %vm293, %v291, 0.0
  %298 = vadd.xlane.f32.xlu0 %v297
  %v299 = vpop.xlane.xlu0 %298
  %vm300 = vcmask 518144
  %v301 = vsel %vm300, %v292, 0.0
  %302 = vadd.xlane.f32.xlu0 %v301
  %v303 = vpop.xlane.xlu0 %302
  %v305 = vlaneseq
  %v306 = vshrl.u32 %v305, 7
  %v307 = vsub.s32 0, %v306
  %v308 = vrot.slane %v87, %v307
  %v310 = vadd.f32 %v296, %v308
  %v311 = vadd.f32 %v299, %v308
  %v312 = vadd.f32 %v303, %v308
  %vm313 = vcmask 7168
  %v314 = vsel %vm313, %v310, -inf
  %v315 = vsel %vm313, %v311, -inf
  %vm316 = vcmask 2048
  %v317 = vsel %vm316, %v312, -inf
  %v318 = vmax.f32 %v314, %v315
  %v319 = vmax.f32 %v318, %v317
  %v320 = vrot.slane %v319, 4
  %v321 = vmax.f32 %v319, %v320
  %v322 = vrot.slane %v321, 2
  %v323 = vmax.f32 %v321, %v322
  %v324 = vrot.slane %v323, 1
  %v325 = vmax.f32 %v323, %v324
  %v326 = vsub.f32 %v310, %v325
  %v327 = vsub.f32 %v311, %v325
  %v328 = vsub.f32 %v312, %v325
  %v329 = vmul.f32 %v326, 1.442695
  %v330 = vpow.pop %v329
  %v331 = vmul.f32 %v327, 1.442695
  %v332 = vpow.pop %v331
  %v333 = vmul.f32 %v328, 1.442695
  %v334 = vpow.pop %v333
  %v335 = vsel %vm313, %v330, 0.0
  %v336 = vsel %vm313, %v332, 0.0
  %v337 = vadd.f32 %v335, %v336
  %v338 = vsel %vm316, %v334, 0.0
  %v339 = vadd.f32 %v337, %v338
  %v340 = vrot.slane %v339, 4
  %v341 = vadd.f32 %v339, %v340
  %v342 = vrot.slane %v341, 2
  %v343 = vadd.f32 %v341, %v342
  %v344 = vrot.slane %v343, 1
  %v345 = vadd.f32 %v343, %v344
  %v346 = vrcp.pop %v345
  %v347 = vmul.f32 %v330, %v346
  %v348 = vmul.f32 %v332, %v346
  %v349 = vmul.f32 %v334, %v346
  %351 = vset.pattern.permute.xlu0 0
  %352 = vperm.xlu0 %351, %v347
  %v353 = vpop.permute.xlu0 %352
  %355 = vset.pattern.permute.xlu0 0
  %356 = vperm.xlu0 %355, %v348
  %v357 = vpop.permute.xlu0 %356
  %359 = vset.pattern.permute.xlu0 0
  %360 = vperm.xlu0 %359, %v349
  %v361 = vpop.permute.xlu0 %360
  %vm362 = vcmask 1041408
  %v363 = vrot.slane %v353, 6
  %v364 = vrot.slane %v357, 6
  %v365 = vsel %vm362, %v363, %v364
  %v366 = vrot.slane %v361, 6
  %v367 = vsel %vm362, %v364, %v366
  %v371 = vmul.f32 %v49, %v363
  %v372 = vmul.f32 %v50, %v365
  %v373 = vmul.f32 %v51, %v367
  %v377 = vrot.slane %v371, 2
  %v378 = vrot.slane %v372, 2
  %v379 = vsel %vm192, %v377, %v378
  %v380 = vrot.slane %v373, 2
  %v381 = vsel %vm192, %v378, %v380
  %v385 = vadd.f32 %v379, %v381
  %vm386 = vcmask 1042432
  %v387 = vsel %vm386, %v380, 0.0
  %v388 = vadd.f32 %v385, %v387
  %v389 = vrot.slane %v388, 4
  %v390 = vadd.f32 %v388, %v389
  %v391 = vrot.slane %v390, 2
  %v392 = vadd.f32 %v390, %v391
  %v393 = vrot.slane %v392, 1
  %v394 = vadd.f32 %v392, %v393
  %v397 = vrot.slane %v51, 5
  %v398 = vrot.slane %v52, 5
  %v399 = vsel %vm386, %v397, %v398
  %v400 = vrot.slane %v53, 5
  %v401 = vsel %vm386, %v398, %v400
  %405 = vmatprep.subr.mxu0 0.0
  %406 = vmatpush1.msra.mxu0 %v69
  %407 = vmatprep.subr.mxu0 0.0
  %408 = vmatpush1.msra.mxu0 %v70
  %409 = vmatprep.subr.mxu0 0.0
  %410 = vmatpush1.msra.mxu0 %v71
  %411 = vmatprep.subr.mxu0 0.0
  %412 = vmatpush1.msra.mxu0 %v72
  %413 = vmatprep.subr.mxu0 0.0
  %414 = vmatpush1.msra.mxu0 %v73
  %415 = vmatprep.subr.mxu0 0.0
  %416 = vmatpush1.msra.mxu0 %v74
  %417 = vmatprep.subr.mxu0 0.0
  %418 = vmatpush1.msra.mxu0 %v75
  %419 = vmatprep.subr.mxu0 0.0
  %420 = vmatpush1.msra.mxu0 %v76
  %421 = vmatprep.subr.mxu0 0.0
  %422 = vmatpush1.msra.mxu0 %v77
  %423 = vmatprep.subr.mxu0 0.0
  %424 = vmatpush1.msra.mxu0 %v78
  %425 = vmatprep.subr.mxu0 0.0
  %426 = vmatpush1.msra.mxu0 %v79
  %427 = vmatprep.subr.mxu0 0.0
  %428 = vmatpush1.msra.mxu0 %v80
  %429 = vmatprep.subr.mxu0 0.0
  %430 = vmatpush1.msra.mxu0 %v81
  %431 = vmatprep.subr.mxu0 0.0
  %432 = vmatpush1.msra.mxu0 %v82
  %433 = vmatprep.subr.mxu0 0.0
  %434 = vmatpush1.msra.mxu0 %v83
  %435 = vmatprep.subr.mxu0 0.0
  %436 = vmatpush1.msra.mxu0 %v84
  %437 = vmatprep.subr.mxu0 0.0
  %438 = vmatpush1.msra.mxu0 0.0
  %439 = vmatprep.subr.mxu0 0.0
  %440 = vmatpush1.msra.mxu0 0.0
  %441 = vmatprep.subr.mxu0 0.0
  %442 = vmatpush1.msra.mxu0 0.0
  %443 = vmatprep.subr.mxu0 0.0
  %444 = vmatpush1.msra.mxu0 0.0
  %445 = vmatprep.subr.mxu0 0.0
  %446 = vmatpush1.msra.mxu0 0.0
  %447 = vmatprep.subr.mxu0 0.0
  %448 = vmatpush1.msra.mxu0 0.0
  %449 = vmatprep.subr.mxu0 0.0
  %450 = vmatpush1.msra.mxu0 0.0
  %451 = vmatprep.subr.mxu0 0.0
  %452 = vmatpush1.msra.mxu0 0.0
  %453 = vmatprep.subr.mxu0 0.0
  %454 = vmatpush1.msra.mxu0 0.0
  %455 = vmatprep.subr.mxu0 0.0
  %456 = vmatpush1.msra.mxu0 0.0
  %457 = vmatprep.subr.mxu0 0.0
  %458 = vmatpush1.msra.mxu0 0.0
  %459 = vmatprep.subr.mxu0 0.0
  %460 = vmatpush1.msra.mxu0 0.0
  %461 = vmatprep.subr.mxu0 0.0
  %462 = vmatpush1.msra.mxu0 0.0
  %463 = vmatprep.subr.mxu0 0.0
  %464 = vmatpush1.msra.mxu0 0.0
  %465 = vmatprep.subr.mxu0 0.0
  %466 = vmatpush1.msra.mxu0 0.0
  %467 = vmatprep.subr.mxu0 0.0
  %468 = vmatpush1.msra.mxu0 0.0
  %469 = vmatprep.mubr.f32.mxu0 0.0
  %470 = vmatmul.mubr.f32.gmra.mrb[0].mxu0 %v399
  %v471 = vpop.f32.mrb[0].mxu0
  %v472 = vadd.f32 %v187, %v471
  %v473 = vpop.f32.mrb[0].mxu0
  %474 = vmatprep.mubr.f32.mxu0 0.0
  %475 = vmatmul.mubr.f32.gmra.mrb[0].mxu0 %v401
  %v476 = vpop.f32.mrb[0].mxu0
  %v477 = vadd.f32 %v187, %v476
  %v478 = vpop.f32.mrb[0].mxu0
  %479 = vmatprep.mubr.f32.mxu0 0.0
  %480 = vmatmul.mubr.f32.gmra.mrb[0].mxu0 %v400
  %v481 = vpop.f32.mrb[0].mxu0
  %v482 = vadd.f32 %v187, %v481
  %v483 = vpop.f32.mrb[0].mxu0
  %484 = vdwg.mxu0
  %v485 = vmax.f32 %v472, 0.0
  %v486 = vmax.f32 %v477, 0.0
  %v487 = vmax.f32 %v482, 0.0
  %v488 = vmul.f32 %v485, %v288
  %v489 = vmul.f32 %v486, %v288
  %v490 = vmul.f32 %v487, %v288
  %v491 = vsel %vm293, %v488, 0.0
  %492 = vadd.xlane.f32.xlu0 %v491
  %v493 = vpop.xlane.xlu0 %492
  %v494 = vsel %vm293, %v489, 0.0
  %495 = vadd.xlane.f32.xlu0 %v494
  %v496 = vpop.xlane.xlu0 %495
  %v497 = vsel %vm300, %v490, 0.0
  %498 = vadd.xlane.f32.xlu0 %v497
  %v499 = vpop.xlane.xlu0 %498
  %v500 = vadd.f32 %v493, %v308
  %v501 = vadd.f32 %v496, %v308
  %v502 = vadd.f32 %v499, %v308
  %v503 = vsel %vm313, %v500, -inf
  %v504 = vsel %vm313, %v501, -inf
  %v505 = vsel %vm316, %v502, -inf
  %v506 = vmax.f32 %v503, %v504
  %v507 = vmax.f32 %v506, %v505
  %v508 = vrot.slane %v507, 4
  %v509 = vmax.f32 %v507, %v508
  %v510 = vrot.slane %v509, 2
  %v511 = vmax.f32 %v509, %v510
  %v512 = vrot.slane %v511, 1
  %v513 = vmax.f32 %v511, %v512
  %v514 = vsub.f32 %v500, %v513
  %v515 = vsub.f32 %v501, %v513
  %v516 = vsub.f32 %v502, %v513
  %v517 = vmul.f32 %v514, 1.442695
  %v518 = vpow.pop %v517
  %v519 = vmul.f32 %v515, 1.442695
  %v520 = vpow.pop %v519
  %v521 = vmul.f32 %v516, 1.442695
  %v522 = vpow.pop %v521
  %v523 = vsel %vm313, %v518, 0.0
  %v524 = vsel %vm313, %v520, 0.0
  %v525 = vadd.f32 %v523, %v524
  %v526 = vsel %vm316, %v522, 0.0
  %v527 = vadd.f32 %v525, %v526
  %v528 = vrot.slane %v527, 4
  %v529 = vadd.f32 %v527, %v528
  %v530 = vrot.slane %v529, 2
  %v531 = vadd.f32 %v529, %v530
  %v532 = vrot.slane %v531, 1
  %v533 = vadd.f32 %v531, %v532
  %v534 = vrcp.pop %v533
  %v535 = vmul.f32 %v518, %v534
  %v536 = vmul.f32 %v520, %v534
  %v537 = vmul.f32 %v522, %v534
  %539 = vset.pattern.permute.xlu0 0
  %540 = vperm.xlu0 %539, %v535
  %v541 = vpop.permute.xlu0 %540
  %543 = vset.pattern.permute.xlu0 0
  %544 = vperm.xlu0 %543, %v536
  %v545 = vpop.permute.xlu0 %544
  %547 = vset.pattern.permute.xlu0 0
  %548 = vperm.xlu0 %547, %v537
  %v549 = vpop.permute.xlu0 %548
  %vm550 = vcmask 1044480
  %v551 = vrot.slane %v541, 3
  %v552 = vrot.slane %v545, 3
  %v553 = vsel %vm550, %v551, %v552
  %v554 = vrot.slane %v549, 3
  %v555 = vsel %vm550, %v552, %v554
  %v559 = vmul.f32 %v51, %v551
  %v560 = vmul.f32 %v52, %v553
  %v561 = vmul.f32 %v53, %v555
  %v565 = vrot.slane %v559, 5
  %v566 = vrot.slane %v560, 5
  %v567 = vsel %vm386, %v565, %v566
  %v568 = vrot.slane %v561, 5
  %v569 = vsel %vm386, %v566, %v568
  %v573 = vadd.f32 %v567, %v569
  %v574 = vsel %vm386, %v568, 0.0
  %v575 = vadd.f32 %v573, %v574
  %v576 = vrot.slane %v575, 4
  %v577 = vadd.f32 %v575, %v576
  %v578 = vrot.slane %v577, 2
  %v579 = vadd.f32 %v577, %v578
  %v580 = vrot.slane %v579, 1
  %v581 = vadd.f32 %v579, %v580
  %vm582 = vcmask 1040384
  %v583 = vsel %vm582, %v394, %v581
  %v584 = vld [vmem:[%s5 + $0x80] sm:$0xff]
  %v585 = vld [vmem:[%s5 + $0x88] sm:$0xff]
  %v586 = vld [vmem:[%s5 + $0x90] sm:$0xff]
  %v587 = vld [vmem:[%s5 + $0x98] sm:$0xff]
  %v588 = vld [vmem:[%s5 + $0xa0] sm:$0xff]
  %v589 = vld [vmem:[%s5 + $0xa8] sm:$0xff]
  %v590 = vld [vmem:[%s5 + $0xb0] sm:$0xff]
  %v591 = vld [vmem:[%s5 + $0xb8] sm:$0xff]
  %v592 = vld [vmem:[%s5 + $0xc0] sm:$0xff]
  %v593 = vld [vmem:[%s5 + $0xc8] sm:$0xff]
  %v594 = vld [vmem:[%s5 + $0xd0] sm:$0xff]
  %v595 = vld [vmem:[%s5 + $0xd8] sm:$0xff]
  %v596 = vld [vmem:[%s5 + $0xe0] sm:$0xff]
  %v597 = vld [vmem:[%s5 + $0xe8] sm:$0xff]
  %v598 = vld [vmem:[%s5 + $0xf0] sm:$0xff]
  %v599 = vld [vmem:[%s5 + $0xf8] sm:$0xff]
  %600 = vmatprep.subr.mxu0 0.0
  %601 = vmatpush1.msra.mxu0 %v584
  %602 = vmatprep.subr.mxu0 0.0
  %603 = vmatpush1.msra.mxu0 %v585
  %604 = vmatprep.subr.mxu0 0.0
  %605 = vmatpush1.msra.mxu0 %v586
  %606 = vmatprep.subr.mxu0 0.0
  %607 = vmatpush1.msra.mxu0 %v587
  %608 = vmatprep.subr.mxu0 0.0
  %609 = vmatpush1.msra.mxu0 %v588
  %610 = vmatprep.subr.mxu0 0.0
  %611 = vmatpush1.msra.mxu0 %v589
  %612 = vmatprep.subr.mxu0 0.0
  %613 = vmatpush1.msra.mxu0 %v590
  %614 = vmatprep.subr.mxu0 0.0
  %615 = vmatpush1.msra.mxu0 %v591
  %616 = vmatprep.subr.mxu0 0.0
  %617 = vmatpush1.msra.mxu0 %v592
  %618 = vmatprep.subr.mxu0 0.0
  %619 = vmatpush1.msra.mxu0 %v593
  %620 = vmatprep.subr.mxu0 0.0
  %621 = vmatpush1.msra.mxu0 %v594
  %622 = vmatprep.subr.mxu0 0.0
  %623 = vmatpush1.msra.mxu0 %v595
  %624 = vmatprep.subr.mxu0 0.0
  %625 = vmatpush1.msra.mxu0 %v596
  %626 = vmatprep.subr.mxu0 0.0
  %627 = vmatpush1.msra.mxu0 %v597
  %628 = vmatprep.subr.mxu0 0.0
  %629 = vmatpush1.msra.mxu0 %v598
  %630 = vmatprep.subr.mxu0 0.0
  %631 = vmatpush1.msra.mxu0 %v599
  %632 = vmatprep.subr.mxu0 0.0
  %633 = vmatpush1.msra.mxu0 0.0
  %634 = vmatprep.subr.mxu0 0.0
  %635 = vmatpush1.msra.mxu0 0.0
  %636 = vmatprep.subr.mxu0 0.0
  %637 = vmatpush1.msra.mxu0 0.0
  %638 = vmatprep.subr.mxu0 0.0
  %639 = vmatpush1.msra.mxu0 0.0
  %640 = vmatprep.subr.mxu0 0.0
  %641 = vmatpush1.msra.mxu0 0.0
  %642 = vmatprep.subr.mxu0 0.0
  %643 = vmatpush1.msra.mxu0 0.0
  %644 = vmatprep.subr.mxu0 0.0
  %645 = vmatpush1.msra.mxu0 0.0
  %646 = vmatprep.subr.mxu0 0.0
  %647 = vmatpush1.msra.mxu0 0.0
  %648 = vmatprep.subr.mxu0 0.0
  %649 = vmatpush1.msra.mxu0 0.0
  %650 = vmatprep.subr.mxu0 0.0
  %651 = vmatpush1.msra.mxu0 0.0
  %652 = vmatprep.subr.mxu0 0.0
  %653 = vmatpush1.msra.mxu0 0.0
  %654 = vmatprep.subr.mxu0 0.0
  %655 = vmatpush1.msra.mxu0 0.0
  %656 = vmatprep.subr.mxu0 0.0
  %657 = vmatpush1.msra.mxu0 0.0
  %658 = vmatprep.subr.mxu0 0.0
  %659 = vmatpush1.msra.mxu0 0.0
  %660 = vmatprep.subr.mxu0 0.0
  %661 = vmatpush1.msra.mxu0 0.0
  %662 = vmatprep.subr.mxu0 0.0
  %663 = vmatpush1.msra.mxu0 0.0
  %664 = vmatprep.mubr.f32.mxu0 0.0
  %665 = vmatmul.mubr.f32.gmra.mrb[0].mxu0 %v583
  %v666 = vpop.f32.mrb[0].mxu0
  %v667 = vadd.f32 0.0, %v666
  %v668 = vpop.f32.mrb[0].mxu0
  %669 = vdwg.mxu0
  %v670 = vadd.f32 %v182, %v667
  %s671 = scalar_lea.vmem %s5, 256
  %v672 = vld [vmem:[%s671] sm:$0xff]
  %v673 = vld [vmem:[%s671 + $0x8] sm:$0xff]
  %v674 = vld [vmem:[%s671 + $0x10] sm:$0xff]
  %v675 = vld [vmem:[%s671 + $0x18] sm:$0xff]
  %v676 = vld [vmem:[%s671 + $0x20] sm:$0xff]
  %v677 = vld [vmem:[%s671 + $0x28] sm:$0xff]
  %v678 = vld [vmem:[%s671 + $0x30] sm:$0xff]
  %v679 = vld [vmem:[%s671 + $0x38] sm:$0xff]
  %v680 = vld [vmem:[%s671 + $0x40] sm:$0xff]
  %v681 = vld [vmem:[%s671 + $0x48] sm:$0xff]
  %v682 = vld [vmem:[%s671 + $0x50] sm:$0xff]
  %v683 = vld [vmem:[%s671 + $0x58] sm:$0xff]
  %v684 = vld [vmem:[%s671 + $0x60] sm:$0xff]
  %v685 = vld [vmem:[%s671 + $0x68] sm:$0xff]
  %v686 = vld [vmem:[%s671 + $0x70] sm:$0xff]
  %v687 = vld [vmem:[%s671 + $0x78] sm:$0xff]
  %688 = vmatprep.subr.mxu0 0.0
  %689 = vmatpush1.msra.mxu0 %v672
  %690 = vmatprep.subr.mxu0 0.0
  %691 = vmatpush1.msra.mxu0 %v673
  %692 = vmatprep.subr.mxu0 0.0
  %693 = vmatpush1.msra.mxu0 %v674
  %694 = vmatprep.subr.mxu0 0.0
  %695 = vmatpush1.msra.mxu0 %v675
  %696 = vmatprep.subr.mxu0 0.0
  %697 = vmatpush1.msra.mxu0 %v676
  %698 = vmatprep.subr.mxu0 0.0
  %699 = vmatpush1.msra.mxu0 %v677
  %700 = vmatprep.subr.mxu0 0.0
  %701 = vmatpush1.msra.mxu0 %v678
  %702 = vmatprep.subr.mxu0 0.0
  %703 = vmatpush1.msra.mxu0 %v679
  %704 = vmatprep.subr.mxu0 0.0
  %705 = vmatpush1.msra.mxu0 %v680
  %706 = vmatprep.subr.mxu0 0.0
  %707 = vmatpush1.msra.mxu0 %v681
  %708 = vmatprep.subr.mxu0 0.0
  %709 = vmatpush1.msra.mxu0 %v682
  %710 = vmatprep.subr.mxu0 0.0
  %711 = vmatpush1.msra.mxu0 %v683
  %712 = vmatprep.subr.mxu0 0.0
  %713 = vmatpush1.msra.mxu0 %v684
  %714 = vmatprep.subr.mxu0 0.0
  %715 = vmatpush1.msra.mxu0 %v685
  %716 = vmatprep.subr.mxu0 0.0
  %717 = vmatpush1.msra.mxu0 %v686
  %718 = vmatprep.subr.mxu0 0.0
  %719 = vmatpush1.msra.mxu0 %v687
  %720 = vmatprep.subr.mxu0 0.0
  %721 = vmatpush1.msra.mxu0 0.0
  %722 = vmatprep.subr.mxu0 0.0
  %723 = vmatpush1.msra.mxu0 0.0
  %724 = vmatprep.subr.mxu0 0.0
  %725 = vmatpush1.msra.mxu0 0.0
  %726 = vmatprep.subr.mxu0 0.0
  %727 = vmatpush1.msra.mxu0 0.0
  %728 = vmatprep.subr.mxu0 0.0
  %729 = vmatpush1.msra.mxu0 0.0
  %730 = vmatprep.subr.mxu0 0.0
  %731 = vmatpush1.msra.mxu0 0.0
  %732 = vmatprep.subr.mxu0 0.0
  %733 = vmatpush1.msra.mxu0 0.0
  %734 = vmatprep.subr.mxu0 0.0
  %735 = vmatpush1.msra.mxu0 0.0
  %736 = vmatprep.subr.mxu0 0.0
  %737 = vmatpush1.msra.mxu0 0.0
  %738 = vmatprep.subr.mxu0 0.0
  %739 = vmatpush1.msra.mxu0 0.0
  %740 = vmatprep.subr.mxu0 0.0
  %741 = vmatpush1.msra.mxu0 0.0
  %742 = vmatprep.subr.mxu0 0.0
  %743 = vmatpush1.msra.mxu0 0.0
  %744 = vmatprep.subr.mxu0 0.0
  %745 = vmatpush1.msra.mxu0 0.0
  %746 = vmatprep.subr.mxu0 0.0
  %747 = vmatpush1.msra.mxu0 0.0
  %748 = vmatprep.subr.mxu0 0.0
  %749 = vmatpush1.msra.mxu0 0.0
  %750 = vmatprep.subr.mxu0 0.0
  %751 = vmatpush1.msra.mxu0 0.0
  %752 = vmatprep.mubr.f32.mxu0 0.0
  %753 = vmatmul.mubr.f32.gmra.mrb[0].mxu0 %v54
  %v754 = vpop.f32.mrb[0].mxu0
  %v755 = vadd.f32 0.0, %v754
  %v756 = vpop.f32.mrb[0].mxu0
  %757 = vdwg.mxu0
  %v758 = vadd.f32 %v670, %v755
  %v762 = vrot.slane %v54, 2
  %v763 = vrot.slane %v55, 2
  %v764 = vsel %vm192, %v762, %v763
  %v765 = vrot.slane %v56, 2
  %v766 = vsel %vm192, %v763, %v765
  %770 = vmatprep.subr.mxu0 0.0
  %771 = vmatpush1.msra.mxu0 %v69
  %772 = vmatprep.subr.mxu0 0.0
  %773 = vmatpush1.msra.mxu0 %v70
  %774 = vmatprep.subr.mxu0 0.0
  %775 = vmatpush1.msra.mxu0 %v71
  %776 = vmatprep.subr.mxu0 0.0
  %777 = vmatpush1.msra.mxu0 %v72
  %778 = vmatprep.subr.mxu0 0.0
  %779 = vmatpush1.msra.mxu0 %v73
  %780 = vmatprep.subr.mxu0 0.0
  %781 = vmatpush1.msra.mxu0 %v74
  %782 = vmatprep.subr.mxu0 0.0
  %783 = vmatpush1.msra.mxu0 %v75
  %784 = vmatprep.subr.mxu0 0.0
  %785 = vmatpush1.msra.mxu0 %v76
  %786 = vmatprep.subr.mxu0 0.0
  %787 = vmatpush1.msra.mxu0 %v77
  %788 = vmatprep.subr.mxu0 0.0
  %789 = vmatpush1.msra.mxu0 %v78
  %790 = vmatprep.subr.mxu0 0.0
  %791 = vmatpush1.msra.mxu0 %v79
  %792 = vmatprep.subr.mxu0 0.0
  %793 = vmatpush1.msra.mxu0 %v80
  %794 = vmatprep.subr.mxu0 0.0
  %795 = vmatpush1.msra.mxu0 %v81
  %796 = vmatprep.subr.mxu0 0.0
  %797 = vmatpush1.msra.mxu0 %v82
  %798 = vmatprep.subr.mxu0 0.0
  %799 = vmatpush1.msra.mxu0 %v83
  %800 = vmatprep.subr.mxu0 0.0
  %801 = vmatpush1.msra.mxu0 %v84
  %802 = vmatprep.subr.mxu0 0.0
  %803 = vmatpush1.msra.mxu0 0.0
  %804 = vmatprep.subr.mxu0 0.0
  %805 = vmatpush1.msra.mxu0 0.0
  %806 = vmatprep.subr.mxu0 0.0
  %807 = vmatpush1.msra.mxu0 0.0
  %808 = vmatprep.subr.mxu0 0.0
  %809 = vmatpush1.msra.mxu0 0.0
  %810 = vmatprep.subr.mxu0 0.0
  %811 = vmatpush1.msra.mxu0 0.0
  %812 = vmatprep.subr.mxu0 0.0
  %813 = vmatpush1.msra.mxu0 0.0
  %814 = vmatprep.subr.mxu0 0.0
  %815 = vmatpush1.msra.mxu0 0.0
  %816 = vmatprep.subr.mxu0 0.0
  %817 = vmatpush1.msra.mxu0 0.0
  %818 = vmatprep.subr.mxu0 0.0
  %819 = vmatpush1.msra.mxu0 0.0
  %820 = vmatprep.subr.mxu0 0.0
  %821 = vmatpush1.msra.mxu0 0.0
  %822 = vmatprep.subr.mxu0 0.0
  %823 = vmatpush1.msra.mxu0 0.0
  %824 = vmatprep.subr.mxu0 0.0
  %825 = vmatpush1.msra.mxu0 0.0
  %826 = vmatprep.subr.mxu0 0.0
  %827 = vmatpush1.msra.mxu0 0.0
  %828 = vmatprep.subr.mxu0 0.0
  %829 = vmatpush1.msra.mxu0 0.0
  %830 = vmatprep.subr.mxu0 0.0
  %831 = vmatpush1.msra.mxu0 0.0
  %832 = vmatprep.subr.mxu0 0.0
  %833 = vmatpush1.msra.mxu0 0.0
  %834 = vmatprep.mubr.f32.mxu0 0.0
  %835 = vmatmul.mubr.f32.gmra.mrb[0].mxu0 %v764
  %v836 = vpop.f32.mrb[0].mxu0
  %v837 = vadd.f32 %v187, %v836
  %v838 = vpop.f32.mrb[0].mxu0
  %839 = vmatprep.mubr.f32.mxu0 0.0
  %840 = vmatmul.mubr.f32.gmra.mrb[0].mxu0 %v766
  %v841 = vpop.f32.mrb[0].mxu0
  %v842 = vadd.f32 %v187, %v841
  %v843 = vpop.f32.mrb[0].mxu0
  %844 = vmatprep.mubr.f32.mxu0 0.0
  %845 = vmatmul.mubr.f32.gmra.mrb[0].mxu0 %v765
  %v846 = vpop.f32.mrb[0].mxu0
  %v847 = vadd.f32 %v187, %v846
  %v848 = vpop.f32.mrb[0].mxu0
  %849 = vdwg.mxu0
  %v850 = vmax.f32 %v837, 0.0
  %v851 = vmax.f32 %v842, 0.0
  %v852 = vmax.f32 %v847, 0.0
  %v853 = vmul.f32 %v850, %v288
  %v854 = vmul.f32 %v851, %v288
  %v855 = vmul.f32 %v852, %v288
  %v856 = vsel %vm293, %v853, 0.0
  %857 = vadd.xlane.f32.xlu0 %v856
  %v858 = vpop.xlane.xlu0 %857
  %v859 = vsel %vm293, %v854, 0.0
  %860 = vadd.xlane.f32.xlu0 %v859
  %v861 = vpop.xlane.xlu0 %860
  %v862 = vsel %vm300, %v855, 0.0
  %863 = vadd.xlane.f32.xlu0 %v862
  %v864 = vpop.xlane.xlu0 %863
  %v865 = vadd.f32 %v858, %v308
  %v866 = vadd.f32 %v861, %v308
  %v867 = vadd.f32 %v864, %v308
  %v868 = vsel %vm313, %v865, -inf
  %v869 = vsel %vm313, %v866, -inf
  %v870 = vsel %vm316, %v867, -inf
  %v871 = vmax.f32 %v868, %v869
  %v872 = vmax.f32 %v871, %v870
  %v873 = vrot.slane %v872, 4
  %v874 = vmax.f32 %v872, %v873
  %v875 = vrot.slane %v874, 2
  %v876 = vmax.f32 %v874, %v875
  %v877 = vrot.slane %v876, 1
  %v878 = vmax.f32 %v876, %v877
  %v879 = vsub.f32 %v865, %v878
  %v880 = vsub.f32 %v866, %v878
  %v881 = vsub.f32 %v867, %v878
  %v882 = vmul.f32 %v879, 1.442695
  %v883 = vpow.pop %v882
  %v884 = vmul.f32 %v880, 1.442695
  %v885 = vpow.pop %v884
  %v886 = vmul.f32 %v881, 1.442695
  %v887 = vpow.pop %v886
  %v888 = vsel %vm313, %v883, 0.0
  %v889 = vsel %vm313, %v885, 0.0
  %v890 = vadd.f32 %v888, %v889
  %v891 = vsel %vm316, %v887, 0.0
  %v892 = vadd.f32 %v890, %v891
  %v893 = vrot.slane %v892, 4
  %v894 = vadd.f32 %v892, %v893
  %v895 = vrot.slane %v894, 2
  %v896 = vadd.f32 %v894, %v895
  %v897 = vrot.slane %v896, 1
  %v898 = vadd.f32 %v896, %v897
  %v899 = vrcp.pop %v898
  %v900 = vmul.f32 %v883, %v899
  %v901 = vmul.f32 %v885, %v899
  %v902 = vmul.f32 %v887, %v899
  %904 = vset.pattern.permute.xlu0 0
  %905 = vperm.xlu0 %904, %v900
  %v906 = vpop.permute.xlu0 %905
  %908 = vset.pattern.permute.xlu0 0
  %909 = vperm.xlu0 %908, %v901
  %v910 = vpop.permute.xlu0 %909
  %912 = vset.pattern.permute.xlu0 0
  %913 = vperm.xlu0 %912, %v902
  %v914 = vpop.permute.xlu0 %913
  %v915 = vrot.slane %v906, 6
  %v916 = vrot.slane %v910, 6
  %v917 = vsel %vm362, %v915, %v916
  %v918 = vrot.slane %v914, 6
  %v919 = vsel %vm362, %v916, %v918
  %v923 = vmul.f32 %v54, %v915
  %v924 = vmul.f32 %v55, %v917
  %v925 = vmul.f32 %v56, %v919
  %v929 = vrot.slane %v923, 2
  %v930 = vrot.slane %v924, 2
  %v931 = vsel %vm192, %v929, %v930
  %v932 = vrot.slane %v925, 2
  %v933 = vsel %vm192, %v930, %v932
  %v937 = vadd.f32 %v931, %v933
  %v938 = vsel %vm386, %v932, 0.0
  %v939 = vadd.f32 %v937, %v938
  %v940 = vrot.slane %v939, 4
  %v941 = vadd.f32 %v939, %v940
  %v942 = vrot.slane %v941, 2
  %v943 = vadd.f32 %v941, %v942
  %v944 = vrot.slane %v943, 1
  %v945 = vadd.f32 %v943, %v944
  %v948 = vrot.slane %v56, 5
  %v949 = vrot.slane %v57, 5
  %v950 = vsel %vm386, %v948, %v949
  %v951 = vrot.slane %v58, 5
  %v952 = vsel %vm386, %v949, %v951
  %956 = vmatprep.subr.mxu0 0.0
  %957 = vmatpush1.msra.mxu0 %v69
  %958 = vmatprep.subr.mxu0 0.0
  %959 = vmatpush1.msra.mxu0 %v70
  %960 = vmatprep.subr.mxu0 0.0
  %961 = vmatpush1.msra.mxu0 %v71
  %962 = vmatprep.subr.mxu0 0.0
  %963 = vmatpush1.msra.mxu0 %v72
  %964 = vmatprep.subr.mxu0 0.0
  %965 = vmatpush1.msra.mxu0 %v73
  %966 = vmatprep.subr.mxu0 0.0
  %967 = vmatpush1.msra.mxu0 %v74
  %968 = vmatprep.subr.mxu0 0.0
  %969 = vmatpush1.msra.mxu0 %v75
  %970 = vmatprep.subr.mxu0 0.0
  %971 = vmatpush1.msra.mxu0 %v76
  %972 = vmatprep.subr.mxu0 0.0
  %973 = vmatpush1.msra.mxu0 %v77
  %974 = vmatprep.subr.mxu0 0.0
  %975 = vmatpush1.msra.mxu0 %v78
  %976 = vmatprep.subr.mxu0 0.0
  %977 = vmatpush1.msra.mxu0 %v79
  %978 = vmatprep.subr.mxu0 0.0
  %979 = vmatpush1.msra.mxu0 %v80
  %980 = vmatprep.subr.mxu0 0.0
  %981 = vmatpush1.msra.mxu0 %v81
  %982 = vmatprep.subr.mxu0 0.0
  %983 = vmatpush1.msra.mxu0 %v82
  %984 = vmatprep.subr.mxu0 0.0
  %985 = vmatpush1.msra.mxu0 %v83
  %986 = vmatprep.subr.mxu0 0.0
  %987 = vmatpush1.msra.mxu0 %v84
  %988 = vmatprep.subr.mxu0 0.0
  %989 = vmatpush1.msra.mxu0 0.0
  %990 = vmatprep.subr.mxu0 0.0
  %991 = vmatpush1.msra.mxu0 0.0
  %992 = vmatprep.subr.mxu0 0.0
  %993 = vmatpush1.msra.mxu0 0.0
  %994 = vmatprep.subr.mxu0 0.0
  %995 = vmatpush1.msra.mxu0 0.0
  %996 = vmatprep.subr.mxu0 0.0
  %997 = vmatpush1.msra.mxu0 0.0
  %998 = vmatprep.subr.mxu0 0.0
  %999 = vmatpush1.msra.mxu0 0.0
  %1000 = vmatprep.subr.mxu0 0.0
  %1001 = vmatpush1.msra.mxu0 0.0
  %1002 = vmatprep.subr.mxu0 0.0
  %1003 = vmatpush1.msra.mxu0 0.0
  %1004 = vmatprep.subr.mxu0 0.0
  %1005 = vmatpush1.msra.mxu0 0.0
  %1006 = vmatprep.subr.mxu0 0.0
  %1007 = vmatpush1.msra.mxu0 0.0
  %1008 = vmatprep.subr.mxu0 0.0
  %1009 = vmatpush1.msra.mxu0 0.0
  %1010 = vmatprep.subr.mxu0 0.0
  %1011 = vmatpush1.msra.mxu0 0.0
  %1012 = vmatprep.subr.mxu0 0.0
  %1013 = vmatpush1.msra.mxu0 0.0
  %1014 = vmatprep.subr.mxu0 0.0
  %1015 = vmatpush1.msra.mxu0 0.0
  %1016 = vmatprep.subr.mxu0 0.0
  %1017 = vmatpush1.msra.mxu0 0.0
  %1018 = vmatprep.subr.mxu0 0.0
  %1019 = vmatpush1.msra.mxu0 0.0
  %1020 = vmatprep.mubr.f32.mxu0 0.0
  %1021 = vmatmul.mubr.f32.gmra.mrb[0].mxu0 %v950
  %v1022 = vpop.f32.mrb[0].mxu0
  %v1023 = vadd.f32 %v187, %v1022
  %v1024 = vpop.f32.mrb[0].mxu0
  %1025 = vmatprep.mubr.f32.mxu0 0.0
  %1026 = vmatmul.mubr.f32.gmra.mrb[0].mxu0 %v952
  %v1027 = vpop.f32.mrb[0].mxu0
  %v1028 = vadd.f32 %v187, %v1027
  %v1029 = vpop.f32.mrb[0].mxu0
  %1030 = vmatprep.mubr.f32.mxu0 0.0
  %1031 = vmatmul.mubr.f32.gmra.mrb[0].mxu0 %v951
  %v1032 = vpop.f32.mrb[0].mxu0
  %v1033 = vadd.f32 %v187, %v1032
  %v1034 = vpop.f32.mrb[0].mxu0
  %1035 = vdwg.mxu0
  %v1036 = vmax.f32 %v1023, 0.0
  %v1037 = vmax.f32 %v1028, 0.0
  %v1038 = vmax.f32 %v1033, 0.0
  %v1039 = vmul.f32 %v1036, %v288
  %v1040 = vmul.f32 %v1037, %v288
  %v1041 = vmul.f32 %v1038, %v288
  %v1042 = vsel %vm293, %v1039, 0.0
  %1043 = vadd.xlane.f32.xlu0 %v1042
  %v1044 = vpop.xlane.xlu0 %1043
  %v1045 = vsel %vm293, %v1040, 0.0
  %1046 = vadd.xlane.f32.xlu0 %v1045
  %v1047 = vpop.xlane.xlu0 %1046
  %v1048 = vsel %vm300, %v1041, 0.0
  %1049 = vadd.xlane.f32.xlu0 %v1048
  %v1050 = vpop.xlane.xlu0 %1049
  %v1051 = vadd.f32 %v1044, %v308
  %v1052 = vadd.f32 %v1047, %v308
  %v1053 = vadd.f32 %v1050, %v308
  %v1054 = vsel %vm313, %v1051, -inf
  %v1055 = vsel %vm313, %v1052, -inf
  %v1056 = vsel %vm316, %v1053, -inf
  %v1057 = vmax.f32 %v1054, %v1055
  %v1058 = vmax.f32 %v1057, %v1056
  %v1059 = vrot.slane %v1058, 4
  %v1060 = vmax.f32 %v1058, %v1059
  %v1061 = vrot.slane %v1060, 2
  %v1062 = vmax.f32 %v1060, %v1061
  %v1063 = vrot.slane %v1062, 1
  %v1064 = vmax.f32 %v1062, %v1063
  %v1065 = vsub.f32 %v1051, %v1064
  %v1066 = vsub.f32 %v1052, %v1064
  %v1067 = vsub.f32 %v1053, %v1064
  %v1068 = vmul.f32 %v1065, 1.442695
  %v1069 = vpow.pop %v1068
  %v1070 = vmul.f32 %v1066, 1.442695
  %v1071 = vpow.pop %v1070
  %v1072 = vmul.f32 %v1067, 1.442695
  %v1073 = vpow.pop %v1072
  %v1074 = vsel %vm313, %v1069, 0.0
  %v1075 = vsel %vm313, %v1071, 0.0
  %v1076 = vadd.f32 %v1074, %v1075
  %v1077 = vsel %vm316, %v1073, 0.0
  %v1078 = vadd.f32 %v1076, %v1077
  %v1079 = vrot.slane %v1078, 4
  %v1080 = vadd.f32 %v1078, %v1079
  %v1081 = vrot.slane %v1080, 2
  %v1082 = vadd.f32 %v1080, %v1081
  %v1083 = vrot.slane %v1082, 1
  %v1084 = vadd.f32 %v1082, %v1083
  %v1085 = vrcp.pop %v1084
  %v1086 = vmul.f32 %v1069, %v1085
  %v1087 = vmul.f32 %v1071, %v1085
  %v1088 = vmul.f32 %v1073, %v1085
  %1090 = vset.pattern.permute.xlu0 0
  %1091 = vperm.xlu0 %1090, %v1086
  %v1092 = vpop.permute.xlu0 %1091
  %1094 = vset.pattern.permute.xlu0 0
  %1095 = vperm.xlu0 %1094, %v1087
  %v1096 = vpop.permute.xlu0 %1095
  %1098 = vset.pattern.permute.xlu0 0
  %1099 = vperm.xlu0 %1098, %v1088
  %v1100 = vpop.permute.xlu0 %1099
  %v1101 = vrot.slane %v1092, 3
  %v1102 = vrot.slane %v1096, 3
  %v1103 = vsel %vm550, %v1101, %v1102
  %v1104 = vrot.slane %v1100, 3
  %v1105 = vsel %vm550, %v1102, %v1104
  %v1109 = vmul.f32 %v56, %v1101
  %v1110 = vmul.f32 %v57, %v1103
  %v1111 = vmul.f32 %v58, %v1105
  %v1115 = vrot.slane %v1109, 5
  %v1116 = vrot.slane %v1110, 5
  %v1117 = vsel %vm386, %v1115, %v1116
  %v1118 = vrot.slane %v1111, 5
  %v1119 = vsel %vm386, %v1116, %v1118
  %v1123 = vadd.f32 %v1117, %v1119
  %v1124 = vsel %vm386, %v1118, 0.0
  %v1125 = vadd.f32 %v1123, %v1124
  %v1126 = vrot.slane %v1125, 4
  %v1127 = vadd.f32 %v1125, %v1126
  %v1128 = vrot.slane %v1127, 2
  %v1129 = vadd.f32 %v1127, %v1128
  %v1130 = vrot.slane %v1129, 1
  %v1131 = vadd.f32 %v1129, %v1130
  %v1132 = vsel %vm582, %v945, %v1131
  %v1133 = vld [vmem:[%s671 + $0x80] sm:$0xff]
  %v1134 = vld [vmem:[%s671 + $0x88] sm:$0xff]
  %v1135 = vld [vmem:[%s671 + $0x90] sm:$0xff]
  %v1136 = vld [vmem:[%s671 + $0x98] sm:$0xff]
  %v1137 = vld [vmem:[%s671 + $0xa0] sm:$0xff]
  %v1138 = vld [vmem:[%s671 + $0xa8] sm:$0xff]
  %v1139 = vld [vmem:[%s671 + $0xb0] sm:$0xff]
  %v1140 = vld [vmem:[%s671 + $0xb8] sm:$0xff]
  %v1141 = vld [vmem:[%s671 + $0xc0] sm:$0xff]
  %v1142 = vld [vmem:[%s671 + $0xc8] sm:$0xff]
  %v1143 = vld [vmem:[%s671 + $0xd0] sm:$0xff]
  %v1144 = vld [vmem:[%s671 + $0xd8] sm:$0xff]
  %v1145 = vld [vmem:[%s671 + $0xe0] sm:$0xff]
  %v1146 = vld [vmem:[%s671 + $0xe8] sm:$0xff]
  %v1147 = vld [vmem:[%s671 + $0xf0] sm:$0xff]
  %v1148 = vld [vmem:[%s671 + $0xf8] sm:$0xff]
  %1149 = vmatprep.subr.mxu0 0.0
  %1150 = vmatpush1.msra.mxu0 %v1133
  %1151 = vmatprep.subr.mxu0 0.0
  %1152 = vmatpush1.msra.mxu0 %v1134
  %1153 = vmatprep.subr.mxu0 0.0
  %1154 = vmatpush1.msra.mxu0 %v1135
  %1155 = vmatprep.subr.mxu0 0.0
  %1156 = vmatpush1.msra.mxu0 %v1136
  %1157 = vmatprep.subr.mxu0 0.0
  %1158 = vmatpush1.msra.mxu0 %v1137
  %1159 = vmatprep.subr.mxu0 0.0
  %1160 = vmatpush1.msra.mxu0 %v1138
  %1161 = vmatprep.subr.mxu0 0.0
  %1162 = vmatpush1.msra.mxu0 %v1139
  %1163 = vmatprep.subr.mxu0 0.0
  %1164 = vmatpush1.msra.mxu0 %v1140
  %1165 = vmatprep.subr.mxu0 0.0
  %1166 = vmatpush1.msra.mxu0 %v1141
  %1167 = vmatprep.subr.mxu0 0.0
  %1168 = vmatpush1.msra.mxu0 %v1142
  %1169 = vmatprep.subr.mxu0 0.0
  %1170 = vmatpush1.msra.mxu0 %v1143
  %1171 = vmatprep.subr.mxu0 0.0
  %1172 = vmatpush1.msra.mxu0 %v1144
  %1173 = vmatprep.subr.mxu0 0.0
  %1174 = vmatpush1.msra.mxu0 %v1145
  %1175 = vmatprep.subr.mxu0 0.0
  %1176 = vmatpush1.msra.mxu0 %v1146
  %1177 = vmatprep.subr.mxu0 0.0
  %1178 = vmatpush1.msra.mxu0 %v1147
  %1179 = vmatprep.subr.mxu0 0.0
  %1180 = vmatpush1.msra.mxu0 %v1148
  %1181 = vmatprep.subr.mxu0 0.0
  %1182 = vmatpush1.msra.mxu0 0.0
  %1183 = vmatprep.subr.mxu0 0.0
  %1184 = vmatpush1.msra.mxu0 0.0
  %1185 = vmatprep.subr.mxu0 0.0
  %1186 = vmatpush1.msra.mxu0 0.0
  %1187 = vmatprep.subr.mxu0 0.0
  %1188 = vmatpush1.msra.mxu0 0.0
  %1189 = vmatprep.subr.mxu0 0.0
  %1190 = vmatpush1.msra.mxu0 0.0
  %1191 = vmatprep.subr.mxu0 0.0
  %1192 = vmatpush1.msra.mxu0 0.0
  %1193 = vmatprep.subr.mxu0 0.0
  %1194 = vmatpush1.msra.mxu0 0.0
  %1195 = vmatprep.subr.mxu0 0.0
  %1196 = vmatpush1.msra.mxu0 0.0
  %1197 = vmatprep.subr.mxu0 0.0
  %1198 = vmatpush1.msra.mxu0 0.0
  %1199 = vmatprep.subr.mxu0 0.0
  %1200 = vmatpush1.msra.mxu0 0.0
  %1201 = vmatprep.subr.mxu0 0.0
  %1202 = vmatpush1.msra.mxu0 0.0
  %1203 = vmatprep.subr.mxu0 0.0
  %1204 = vmatpush1.msra.mxu0 0.0
  %1205 = vmatprep.subr.mxu0 0.0
  %1206 = vmatpush1.msra.mxu0 0.0
  %1207 = vmatprep.subr.mxu0 0.0
  %1208 = vmatpush1.msra.mxu0 0.0
  %1209 = vmatprep.subr.mxu0 0.0
  %1210 = vmatpush1.msra.mxu0 0.0
  %1211 = vmatprep.subr.mxu0 0.0
  %1212 = vmatpush1.msra.mxu0 0.0
  %1213 = vmatprep.mubr.f32.mxu0 0.0
  %1214 = vmatmul.mubr.f32.gmra.mrb[0].mxu0 %v1132
  %v1215 = vpop.f32.mrb[0].mxu0
  %v1216 = vadd.f32 0.0, %v1215
  %v1217 = vpop.f32.mrb[0].mxu0
  %1218 = vdwg.mxu0
  %v1219 = vadd.f32 %v758, %v1216
  %s1220 = scalar_lea.vmem %s5, 512
  %v1221 = vld [vmem:[%s1220] sm:$0xff]
  %v1222 = vld [vmem:[%s1220 + $0x8] sm:$0xff]
  %v1223 = vld [vmem:[%s1220 + $0x10] sm:$0xff]
  %v1224 = vld [vmem:[%s1220 + $0x18] sm:$0xff]
  %v1225 = vld [vmem:[%s1220 + $0x20] sm:$0xff]
  %v1226 = vld [vmem:[%s1220 + $0x28] sm:$0xff]
  %v1227 = vld [vmem:[%s1220 + $0x30] sm:$0xff]
  %v1228 = vld [vmem:[%s1220 + $0x38] sm:$0xff]
  %v1229 = vld [vmem:[%s1220 + $0x40] sm:$0xff]
  %v1230 = vld [vmem:[%s1220 + $0x48] sm:$0xff]
  %v1231 = vld [vmem:[%s1220 + $0x50] sm:$0xff]
  %v1232 = vld [vmem:[%s1220 + $0x58] sm:$0xff]
  %v1233 = vld [vmem:[%s1220 + $0x60] sm:$0xff]
  %v1234 = vld [vmem:[%s1220 + $0x68] sm:$0xff]
  %v1235 = vld [vmem:[%s1220 + $0x70] sm:$0xff]
  %v1236 = vld [vmem:[%s1220 + $0x78] sm:$0xff]
  %1237 = vmatprep.subr.mxu0 0.0
  %1238 = vmatpush1.msra.mxu0 %v1221
  %1239 = vmatprep.subr.mxu0 0.0
  %1240 = vmatpush1.msra.mxu0 %v1222
  %1241 = vmatprep.subr.mxu0 0.0
  %1242 = vmatpush1.msra.mxu0 %v1223
  %1243 = vmatprep.subr.mxu0 0.0
  %1244 = vmatpush1.msra.mxu0 %v1224
  %1245 = vmatprep.subr.mxu0 0.0
  %1246 = vmatpush1.msra.mxu0 %v1225
  %1247 = vmatprep.subr.mxu0 0.0
  %1248 = vmatpush1.msra.mxu0 %v1226
  %1249 = vmatprep.subr.mxu0 0.0
  %1250 = vmatpush1.msra.mxu0 %v1227
  %1251 = vmatprep.subr.mxu0 0.0
  %1252 = vmatpush1.msra.mxu0 %v1228
  %1253 = vmatprep.subr.mxu0 0.0
  %1254 = vmatpush1.msra.mxu0 %v1229
  %1255 = vmatprep.subr.mxu0 0.0
  %1256 = vmatpush1.msra.mxu0 %v1230
  %1257 = vmatprep.subr.mxu0 0.0
  %1258 = vmatpush1.msra.mxu0 %v1231
  %1259 = vmatprep.subr.mxu0 0.0
  %1260 = vmatpush1.msra.mxu0 %v1232
  %1261 = vmatprep.subr.mxu0 0.0
  %1262 = vmatpush1.msra.mxu0 %v1233
  %1263 = vmatprep.subr.mxu0 0.0
  %1264 = vmatpush1.msra.mxu0 %v1234
  %1265 = vmatprep.subr.mxu0 0.0
  %1266 = vmatpush1.msra.mxu0 %v1235
  %1267 = vmatprep.subr.mxu0 0.0
  %1268 = vmatpush1.msra.mxu0 %v1236
  %1269 = vmatprep.subr.mxu0 0.0
  %1270 = vmatpush1.msra.mxu0 0.0
  %1271 = vmatprep.subr.mxu0 0.0
  %1272 = vmatpush1.msra.mxu0 0.0
  %1273 = vmatprep.subr.mxu0 0.0
  %1274 = vmatpush1.msra.mxu0 0.0
  %1275 = vmatprep.subr.mxu0 0.0
  %1276 = vmatpush1.msra.mxu0 0.0
  %1277 = vmatprep.subr.mxu0 0.0
  %1278 = vmatpush1.msra.mxu0 0.0
  %1279 = vmatprep.subr.mxu0 0.0
  %1280 = vmatpush1.msra.mxu0 0.0
  %1281 = vmatprep.subr.mxu0 0.0
  %1282 = vmatpush1.msra.mxu0 0.0
  %1283 = vmatprep.subr.mxu0 0.0
  %1284 = vmatpush1.msra.mxu0 0.0
  %1285 = vmatprep.subr.mxu0 0.0
  %1286 = vmatpush1.msra.mxu0 0.0
  %1287 = vmatprep.subr.mxu0 0.0
  %1288 = vmatpush1.msra.mxu0 0.0
  %1289 = vmatprep.subr.mxu0 0.0
  %1290 = vmatpush1.msra.mxu0 0.0
  %1291 = vmatprep.subr.mxu0 0.0
  %1292 = vmatpush1.msra.mxu0 0.0
  %1293 = vmatprep.subr.mxu0 0.0
  %1294 = vmatpush1.msra.mxu0 0.0
  %1295 = vmatprep.subr.mxu0 0.0
  %1296 = vmatpush1.msra.mxu0 0.0
  %1297 = vmatprep.subr.mxu0 0.0
  %1298 = vmatpush1.msra.mxu0 0.0
  %1299 = vmatprep.subr.mxu0 0.0
  %1300 = vmatpush1.msra.mxu0 0.0
  %1301 = vmatprep.mubr.f32.mxu0 0.0
  %1302 = vmatmul.mubr.f32.gmra.mrb[0].mxu0 %v59
  %v1303 = vpop.f32.mrb[0].mxu0
  %v1304 = vadd.f32 0.0, %v1303
  %v1305 = vpop.f32.mrb[0].mxu0
  %1306 = vdwg.mxu0
  %v1307 = vadd.f32 %v1219, %v1304
  %v1311 = vrot.slane %v59, 2
  %v1312 = vrot.slane %v60, 2
  %v1313 = vsel %vm192, %v1311, %v1312
  %v1314 = vrot.slane %v61, 2
  %v1315 = vsel %vm192, %v1312, %v1314
  %1319 = vmatprep.subr.mxu0 0.0
  %1320 = vmatpush1.msra.mxu0 %v69
  %1321 = vmatprep.subr.mxu0 0.0
  %1322 = vmatpush1.msra.mxu0 %v70
  %1323 = vmatprep.subr.mxu0 0.0
  %1324 = vmatpush1.msra.mxu0 %v71
  %1325 = vmatprep.subr.mxu0 0.0
  %1326 = vmatpush1.msra.mxu0 %v72
  %1327 = vmatprep.subr.mxu0 0.0
  %1328 = vmatpush1.msra.mxu0 %v73
  %1329 = vmatprep.subr.mxu0 0.0
  %1330 = vmatpush1.msra.mxu0 %v74
  %1331 = vmatprep.subr.mxu0 0.0
  %1332 = vmatpush1.msra.mxu0 %v75
  %1333 = vmatprep.subr.mxu0 0.0
  %1334 = vmatpush1.msra.mxu0 %v76
  %1335 = vmatprep.subr.mxu0 0.0
  %1336 = vmatpush1.msra.mxu0 %v77
  %1337 = vmatprep.subr.mxu0 0.0
  %1338 = vmatpush1.msra.mxu0 %v78
  %1339 = vmatprep.subr.mxu0 0.0
  %1340 = vmatpush1.msra.mxu0 %v79
  %1341 = vmatprep.subr.mxu0 0.0
  %1342 = vmatpush1.msra.mxu0 %v80
  %1343 = vmatprep.subr.mxu0 0.0
  %1344 = vmatpush1.msra.mxu0 %v81
  %1345 = vmatprep.subr.mxu0 0.0
  %1346 = vmatpush1.msra.mxu0 %v82
  %1347 = vmatprep.subr.mxu0 0.0
  %1348 = vmatpush1.msra.mxu0 %v83
  %1349 = vmatprep.subr.mxu0 0.0
  %1350 = vmatpush1.msra.mxu0 %v84
  %1351 = vmatprep.subr.mxu0 0.0
  %1352 = vmatpush1.msra.mxu0 0.0
  %1353 = vmatprep.subr.mxu0 0.0
  %1354 = vmatpush1.msra.mxu0 0.0
  %1355 = vmatprep.subr.mxu0 0.0
  %1356 = vmatpush1.msra.mxu0 0.0
  %1357 = vmatprep.subr.mxu0 0.0
  %1358 = vmatpush1.msra.mxu0 0.0
  %1359 = vmatprep.subr.mxu0 0.0
  %1360 = vmatpush1.msra.mxu0 0.0
  %1361 = vmatprep.subr.mxu0 0.0
  %1362 = vmatpush1.msra.mxu0 0.0
  %1363 = vmatprep.subr.mxu0 0.0
  %1364 = vmatpush1.msra.mxu0 0.0
  %1365 = vmatprep.subr.mxu0 0.0
  %1366 = vmatpush1.msra.mxu0 0.0
  %1367 = vmatprep.subr.mxu0 0.0
  %1368 = vmatpush1.msra.mxu0 0.0
  %1369 = vmatprep.subr.mxu0 0.0
  %1370 = vmatpush1.msra.mxu0 0.0
  %1371 = vmatprep.subr.mxu0 0.0
  %1372 = vmatpush1.msra.mxu0 0.0
  %1373 = vmatprep.subr.mxu0 0.0
  %1374 = vmatpush1.msra.mxu0 0.0
  %1375 = vmatprep.subr.mxu0 0.0
  %1376 = vmatpush1.msra.mxu0 0.0
  %1377 = vmatprep.subr.mxu0 0.0
  %1378 = vmatpush1.msra.mxu0 0.0
  %1379 = vmatprep.subr.mxu0 0.0
  %1380 = vmatpush1.msra.mxu0 0.0
  %1381 = vmatprep.subr.mxu0 0.0
  %1382 = vmatpush1.msra.mxu0 0.0
  %1383 = vmatprep.mubr.f32.mxu0 0.0
  %1384 = vmatmul.mubr.f32.gmra.mrb[0].mxu0 %v1313
  %v1385 = vpop.f32.mrb[0].mxu0
  %v1386 = vadd.f32 %v187, %v1385
  %v1387 = vpop.f32.mrb[0].mxu0
  %1388 = vmatprep.mubr.f32.mxu0 0.0
  %1389 = vmatmul.mubr.f32.gmra.mrb[0].mxu0 %v1315
  %v1390 = vpop.f32.mrb[0].mxu0
  %v1391 = vadd.f32 %v187, %v1390
  %v1392 = vpop.f32.mrb[0].mxu0
  %1393 = vmatprep.mubr.f32.mxu0 0.0
  %1394 = vmatmul.mubr.f32.gmra.mrb[0].mxu0 %v1314
  %v1395 = vpop.f32.mrb[0].mxu0
  %v1396 = vadd.f32 %v187, %v1395
  %v1397 = vpop.f32.mrb[0].mxu0
  %1398 = vdwg.mxu0
  %v1399 = vmax.f32 %v1386, 0.0
  %v1400 = vmax.f32 %v1391, 0.0
  %v1401 = vmax.f32 %v1396, 0.0
  %v1402 = vmul.f32 %v1399, %v288
  %v1403 = vmul.f32 %v1400, %v288
  %v1404 = vmul.f32 %v1401, %v288
  %v1405 = vsel %vm293, %v1402, 0.0
  %1406 = vadd.xlane.f32.xlu0 %v1405
  %v1407 = vpop.xlane.xlu0 %1406
  %v1408 = vsel %vm293, %v1403, 0.0
  %1409 = vadd.xlane.f32.xlu0 %v1408
  %v1410 = vpop.xlane.xlu0 %1409
  %v1411 = vsel %vm300, %v1404, 0.0
  %1412 = vadd.xlane.f32.xlu0 %v1411
  %v1413 = vpop.xlane.xlu0 %1412
  %v1414 = vadd.f32 %v1407, %v308
  %v1415 = vadd.f32 %v1410, %v308
  %v1416 = vadd.f32 %v1413, %v308
  %v1417 = vsel %vm313, %v1414, -inf
  %v1418 = vsel %vm313, %v1415, -inf
  %v1419 = vsel %vm316, %v1416, -inf
  %v1420 = vmax.f32 %v1417, %v1418
  %v1421 = vmax.f32 %v1420, %v1419
  %v1422 = vrot.slane %v1421, 4
  %v1423 = vmax.f32 %v1421, %v1422
  %v1424 = vrot.slane %v1423, 2
  %v1425 = vmax.f32 %v1423, %v1424
  %v1426 = vrot.slane %v1425, 1
  %v1427 = vmax.f32 %v1425, %v1426
  %v1428 = vsub.f32 %v1414, %v1427
  %v1429 = vsub.f32 %v1415, %v1427
  %v1430 = vsub.f32 %v1416, %v1427
  %v1431 = vmul.f32 %v1428, 1.442695
  %v1432 = vpow.pop %v1431
  %v1433 = vmul.f32 %v1429, 1.442695
  %v1434 = vpow.pop %v1433
  %v1435 = vmul.f32 %v1430, 1.442695
  %v1436 = vpow.pop %v1435
  %v1437 = vsel %vm313, %v1432, 0.0
  %v1438 = vsel %vm313, %v1434, 0.0
  %v1439 = vadd.f32 %v1437, %v1438
  %v1440 = vsel %vm316, %v1436, 0.0
  %v1441 = vadd.f32 %v1439, %v1440
  %v1442 = vrot.slane %v1441, 4
  %v1443 = vadd.f32 %v1441, %v1442
  %v1444 = vrot.slane %v1443, 2
  %v1445 = vadd.f32 %v1443, %v1444
  %v1446 = vrot.slane %v1445, 1
  %v1447 = vadd.f32 %v1445, %v1446
  %v1448 = vrcp.pop %v1447
  %v1449 = vmul.f32 %v1432, %v1448
  %v1450 = vmul.f32 %v1434, %v1448
  %v1451 = vmul.f32 %v1436, %v1448
  %1453 = vset.pattern.permute.xlu0 0
  %1454 = vperm.xlu0 %1453, %v1449
  %v1455 = vpop.permute.xlu0 %1454
  %1457 = vset.pattern.permute.xlu0 0
  %1458 = vperm.xlu0 %1457, %v1450
  %v1459 = vpop.permute.xlu0 %1458
  %1461 = vset.pattern.permute.xlu0 0
  %1462 = vperm.xlu0 %1461, %v1451
  %v1463 = vpop.permute.xlu0 %1462
  %v1464 = vrot.slane %v1455, 6
  %v1465 = vrot.slane %v1459, 6
  %v1466 = vsel %vm362, %v1464, %v1465
  %v1467 = vrot.slane %v1463, 6
  %v1468 = vsel %vm362, %v1465, %v1467
  %v1472 = vmul.f32 %v59, %v1464
  %v1473 = vmul.f32 %v60, %v1466
  %v1474 = vmul.f32 %v61, %v1468
  %v1478 = vrot.slane %v1472, 2
  %v1479 = vrot.slane %v1473, 2
  %v1480 = vsel %vm192, %v1478, %v1479
  %v1481 = vrot.slane %v1474, 2
  %v1482 = vsel %vm192, %v1479, %v1481
  %v1486 = vadd.f32 %v1480, %v1482
  %v1487 = vsel %vm386, %v1481, 0.0
  %v1488 = vadd.f32 %v1486, %v1487
  %v1489 = vrot.slane %v1488, 4
  %v1490 = vadd.f32 %v1488, %v1489
  %v1491 = vrot.slane %v1490, 2
  %v1492 = vadd.f32 %v1490, %v1491
  %v1493 = vrot.slane %v1492, 1
  %v1494 = vadd.f32 %v1492, %v1493
  %v1497 = vrot.slane %v61, 5
  %v1498 = vrot.slane %v62, 5
  %v1499 = vsel %vm386, %v1497, %v1498
  %v1500 = vrot.slane %v63, 5
  %v1501 = vsel %vm386, %v1498, %v1500
  %1505 = vmatprep.subr.mxu0 0.0
  %1506 = vmatpush1.msra.mxu0 %v69
  %1507 = vmatprep.subr.mxu0 0.0
  %1508 = vmatpush1.msra.mxu0 %v70
  %1509 = vmatprep.subr.mxu0 0.0
  %1510 = vmatpush1.msra.mxu0 %v71
  %1511 = vmatprep.subr.mxu0 0.0
  %1512 = vmatpush1.msra.mxu0 %v72
  %1513 = vmatprep.subr.mxu0 0.0
  %1514 = vmatpush1.msra.mxu0 %v73
  %1515 = vmatprep.subr.mxu0 0.0
  %1516 = vmatpush1.msra.mxu0 %v74
  %1517 = vmatprep.subr.mxu0 0.0
  %1518 = vmatpush1.msra.mxu0 %v75
  %1519 = vmatprep.subr.mxu0 0.0
  %1520 = vmatpush1.msra.mxu0 %v76
  %1521 = vmatprep.subr.mxu0 0.0
  %1522 = vmatpush1.msra.mxu0 %v77
  %1523 = vmatprep.subr.mxu0 0.0
  %1524 = vmatpush1.msra.mxu0 %v78
  %1525 = vmatprep.subr.mxu0 0.0
  %1526 = vmatpush1.msra.mxu0 %v79
  %1527 = vmatprep.subr.mxu0 0.0
  %1528 = vmatpush1.msra.mxu0 %v80
  %1529 = vmatprep.subr.mxu0 0.0
  %1530 = vmatpush1.msra.mxu0 %v81
  %1531 = vmatprep.subr.mxu0 0.0
  %1532 = vmatpush1.msra.mxu0 %v82
  %1533 = vmatprep.subr.mxu0 0.0
  %1534 = vmatpush1.msra.mxu0 %v83
  %1535 = vmatprep.subr.mxu0 0.0
  %1536 = vmatpush1.msra.mxu0 %v84
  %1537 = vmatprep.subr.mxu0 0.0
  %1538 = vmatpush1.msra.mxu0 0.0
  %1539 = vmatprep.subr.mxu0 0.0
  %1540 = vmatpush1.msra.mxu0 0.0
  %1541 = vmatprep.subr.mxu0 0.0
  %1542 = vmatpush1.msra.mxu0 0.0
  %1543 = vmatprep.subr.mxu0 0.0
  %1544 = vmatpush1.msra.mxu0 0.0
  %1545 = vmatprep.subr.mxu0 0.0
  %1546 = vmatpush1.msra.mxu0 0.0
  %1547 = vmatprep.subr.mxu0 0.0
  %1548 = vmatpush1.msra.mxu0 0.0
  %1549 = vmatprep.subr.mxu0 0.0
  %1550 = vmatpush1.msra.mxu0 0.0
  %1551 = vmatprep.subr.mxu0 0.0
  %1552 = vmatpush1.msra.mxu0 0.0
  %1553 = vmatprep.subr.mxu0 0.0
  %1554 = vmatpush1.msra.mxu0 0.0
  %1555 = vmatprep.subr.mxu0 0.0
  %1556 = vmatpush1.msra.mxu0 0.0
  %1557 = vmatprep.subr.mxu0 0.0
  %1558 = vmatpush1.msra.mxu0 0.0
  %1559 = vmatprep.subr.mxu0 0.0
  %1560 = vmatpush1.msra.mxu0 0.0
  %1561 = vmatprep.subr.mxu0 0.0
  %1562 = vmatpush1.msra.mxu0 0.0
  %1563 = vmatprep.subr.mxu0 0.0
  %1564 = vmatpush1.msra.mxu0 0.0
  %1565 = vmatprep.subr.mxu0 0.0
  %1566 = vmatpush1.msra.mxu0 0.0
  %1567 = vmatprep.subr.mxu0 0.0
  %1568 = vmatpush1.msra.mxu0 0.0
  %1569 = vmatprep.mubr.f32.mxu0 0.0
  %1570 = vmatmul.mubr.f32.gmra.mrb[0].mxu0 %v1499
  %v1571 = vpop.f32.mrb[0].mxu0
  %v1572 = vadd.f32 %v187, %v1571
  %v1573 = vpop.f32.mrb[0].mxu0
  %1574 = vmatprep.mubr.f32.mxu0 0.0
  %1575 = vmatmul.mubr.f32.gmra.mrb[0].mxu0 %v1501
  %v1576 = vpop.f32.mrb[0].mxu0
  %v1577 = vadd.f32 %v187, %v1576
  %v1578 = vpop.f32.mrb[0].mxu0
  %1579 = vmatprep.mubr.f32.mxu0 0.0
  %1580 = vmatmul.mubr.f32.gmra.mrb[0].mxu0 %v1500
  %v1581 = vpop.f32.mrb[0].mxu0
  %v1582 = vadd.f32 %v187, %v1581
  %v1583 = vpop.f32.mrb[0].mxu0
  %1584 = vdwg.mxu0
  %v1585 = vmax.f32 %v1572, 0.0
  %v1586 = vmax.f32 %v1577, 0.0
  %v1587 = vmax.f32 %v1582, 0.0
  %v1588 = vmul.f32 %v1585, %v288
  %v1589 = vmul.f32 %v1586, %v288
  %v1590 = vmul.f32 %v1587, %v288
  %v1591 = vsel %vm293, %v1588, 0.0
  %1592 = vadd.xlane.f32.xlu0 %v1591
  %v1593 = vpop.xlane.xlu0 %1592
  %v1594 = vsel %vm293, %v1589, 0.0
  %1595 = vadd.xlane.f32.xlu0 %v1594
  %v1596 = vpop.xlane.xlu0 %1595
  %v1597 = vsel %vm300, %v1590, 0.0
  %1598 = vadd.xlane.f32.xlu0 %v1597
  %v1599 = vpop.xlane.xlu0 %1598
  %v1600 = vadd.f32 %v1593, %v308
  %v1601 = vadd.f32 %v1596, %v308
  %v1602 = vadd.f32 %v1599, %v308
  %v1603 = vsel %vm313, %v1600, -inf
  %v1604 = vsel %vm313, %v1601, -inf
  %v1605 = vsel %vm316, %v1602, -inf
  %v1606 = vmax.f32 %v1603, %v1604
  %v1607 = vmax.f32 %v1606, %v1605
  %v1608 = vrot.slane %v1607, 4
  %v1609 = vmax.f32 %v1607, %v1608
  %v1610 = vrot.slane %v1609, 2
  %v1611 = vmax.f32 %v1609, %v1610
  %v1612 = vrot.slane %v1611, 1
  %v1613 = vmax.f32 %v1611, %v1612
  %v1614 = vsub.f32 %v1600, %v1613
  %v1615 = vsub.f32 %v1601, %v1613
  %v1616 = vsub.f32 %v1602, %v1613
  %v1617 = vmul.f32 %v1614, 1.442695
  %v1618 = vpow.pop %v1617
  %v1619 = vmul.f32 %v1615, 1.442695
  %v1620 = vpow.pop %v1619
  %v1621 = vmul.f32 %v1616, 1.442695
  %v1622 = vpow.pop %v1621
  %v1623 = vsel %vm313, %v1618, 0.0
  %v1624 = vsel %vm313, %v1620, 0.0
  %v1625 = vadd.f32 %v1623, %v1624
  %v1626 = vsel %vm316, %v1622, 0.0
  %v1627 = vadd.f32 %v1625, %v1626
  %v1628 = vrot.slane %v1627, 4
  %v1629 = vadd.f32 %v1627, %v1628
  %v1630 = vrot.slane %v1629, 2
  %v1631 = vadd.f32 %v1629, %v1630
  %v1632 = vrot.slane %v1631, 1
  %v1633 = vadd.f32 %v1631, %v1632
  %v1634 = vrcp.pop %v1633
  %v1635 = vmul.f32 %v1618, %v1634
  %v1636 = vmul.f32 %v1620, %v1634
  %v1637 = vmul.f32 %v1622, %v1634
  %1639 = vset.pattern.permute.xlu0 0
  %1640 = vperm.xlu0 %1639, %v1635
  %v1641 = vpop.permute.xlu0 %1640
  %1643 = vset.pattern.permute.xlu0 0
  %1644 = vperm.xlu0 %1643, %v1636
  %v1645 = vpop.permute.xlu0 %1644
  %1647 = vset.pattern.permute.xlu0 0
  %1648 = vperm.xlu0 %1647, %v1637
  %v1649 = vpop.permute.xlu0 %1648
  %v1650 = vrot.slane %v1641, 3
  %v1651 = vrot.slane %v1645, 3
  %v1652 = vsel %vm550, %v1650, %v1651
  %v1653 = vrot.slane %v1649, 3
  %v1654 = vsel %vm550, %v1651, %v1653
  %v1658 = vmul.f32 %v61, %v1650
  %v1659 = vmul.f32 %v62, %v1652
  %v1660 = vmul.f32 %v63, %v1654
  %v1664 = vrot.slane %v1658, 5
  %v1665 = vrot.slane %v1659, 5
  %v1666 = vsel %vm386, %v1664, %v1665
  %v1667 = vrot.slane %v1660, 5
  %v1668 = vsel %vm386, %v1665, %v1667
  %v1672 = vadd.f32 %v1666, %v1668
  %v1673 = vsel %vm386, %v1667, 0.0
  %v1674 = vadd.f32 %v1672, %v1673
  %v1675 = vrot.slane %v1674, 4
  %v1676 = vadd.f32 %v1674, %v1675
  %v1677 = vrot.slane %v1676, 2
  %v1678 = vadd.f32 %v1676, %v1677
  %v1679 = vrot.slane %v1678, 1
  %v1680 = vadd.f32 %v1678, %v1679
  %v1681 = vsel %vm582, %v1494, %v1680
  %v1682 = vld [vmem:[%s1220 + $0x80] sm:$0xff]
  %v1683 = vld [vmem:[%s1220 + $0x88] sm:$0xff]
  %v1684 = vld [vmem:[%s1220 + $0x90] sm:$0xff]
  %v1685 = vld [vmem:[%s1220 + $0x98] sm:$0xff]
  %v1686 = vld [vmem:[%s1220 + $0xa0] sm:$0xff]
  %v1687 = vld [vmem:[%s1220 + $0xa8] sm:$0xff]
  %v1688 = vld [vmem:[%s1220 + $0xb0] sm:$0xff]
  %v1689 = vld [vmem:[%s1220 + $0xb8] sm:$0xff]
  %v1690 = vld [vmem:[%s1220 + $0xc0] sm:$0xff]
  %v1691 = vld [vmem:[%s1220 + $0xc8] sm:$0xff]
  %v1692 = vld [vmem:[%s1220 + $0xd0] sm:$0xff]
  %v1693 = vld [vmem:[%s1220 + $0xd8] sm:$0xff]
  %v1694 = vld [vmem:[%s1220 + $0xe0] sm:$0xff]
  %v1695 = vld [vmem:[%s1220 + $0xe8] sm:$0xff]
  %v1696 = vld [vmem:[%s1220 + $0xf0] sm:$0xff]
  %v1697 = vld [vmem:[%s1220 + $0xf8] sm:$0xff]
  %1698 = vmatprep.subr.mxu0 0.0
  %1699 = vmatpush1.msra.mxu0 %v1682
  %1700 = vmatprep.subr.mxu0 0.0
  %1701 = vmatpush1.msra.mxu0 %v1683
  %1702 = vmatprep.subr.mxu0 0.0
  %1703 = vmatpush1.msra.mxu0 %v1684
  %1704 = vmatprep.subr.mxu0 0.0
  %1705 = vmatpush1.msra.mxu0 %v1685
  %1706 = vmatprep.subr.mxu0 0.0
  %1707 = vmatpush1.msra.mxu0 %v1686
  %1708 = vmatprep.subr.mxu0 0.0
  %1709 = vmatpush1.msra.mxu0 %v1687
  %1710 = vmatprep.subr.mxu0 0.0
  %1711 = vmatpush1.msra.mxu0 %v1688
  %1712 = vmatprep.subr.mxu0 0.0
  %1713 = vmatpush1.msra.mxu0 %v1689
  %1714 = vmatprep.subr.mxu0 0.0
  %1715 = vmatpush1.msra.mxu0 %v1690
  %1716 = vmatprep.subr.mxu0 0.0
  %1717 = vmatpush1.msra.mxu0 %v1691
  %1718 = vmatprep.subr.mxu0 0.0
  %1719 = vmatpush1.msra.mxu0 %v1692
  %1720 = vmatprep.subr.mxu0 0.0
  %1721 = vmatpush1.msra.mxu0 %v1693
  %1722 = vmatprep.subr.mxu0 0.0
  %1723 = vmatpush1.msra.mxu0 %v1694
  %1724 = vmatprep.subr.mxu0 0.0
  %1725 = vmatpush1.msra.mxu0 %v1695
  %1726 = vmatprep.subr.mxu0 0.0
  %1727 = vmatpush1.msra.mxu0 %v1696
  %1728 = vmatprep.subr.mxu0 0.0
  %1729 = vmatpush1.msra.mxu0 %v1697
  %1730 = vmatprep.subr.mxu0 0.0
  %1731 = vmatpush1.msra.mxu0 0.0
  %1732 = vmatprep.subr.mxu0 0.0
  %1733 = vmatpush1.msra.mxu0 0.0
  %1734 = vmatprep.subr.mxu0 0.0
  %1735 = vmatpush1.msra.mxu0 0.0
  %1736 = vmatprep.subr.mxu0 0.0
  %1737 = vmatpush1.msra.mxu0 0.0
  %1738 = vmatprep.subr.mxu0 0.0
  %1739 = vmatpush1.msra.mxu0 0.0
  %1740 = vmatprep.subr.mxu0 0.0
  %1741 = vmatpush1.msra.mxu0 0.0
  %1742 = vmatprep.subr.mxu0 0.0
  %1743 = vmatpush1.msra.mxu0 0.0
  %1744 = vmatprep.subr.mxu0 0.0
  %1745 = vmatpush1.msra.mxu0 0.0
  %1746 = vmatprep.subr.mxu0 0.0
  %1747 = vmatpush1.msra.mxu0 0.0
  %1748 = vmatprep.subr.mxu0 0.0
  %1749 = vmatpush1.msra.mxu0 0.0
  %1750 = vmatprep.subr.mxu0 0.0
  %1751 = vmatpush1.msra.mxu0 0.0
  %1752 = vmatprep.subr.mxu0 0.0
  %1753 = vmatpush1.msra.mxu0 0.0
  %1754 = vmatprep.subr.mxu0 0.0
  %1755 = vmatpush1.msra.mxu0 0.0
  %1756 = vmatprep.subr.mxu0 0.0
  %1757 = vmatpush1.msra.mxu0 0.0
  %1758 = vmatprep.subr.mxu0 0.0
  %1759 = vmatpush1.msra.mxu0 0.0
  %1760 = vmatprep.subr.mxu0 0.0
  %1761 = vmatpush1.msra.mxu0 0.0
  %1762 = vmatprep.mubr.f32.mxu0 0.0
  %1763 = vmatmul.mubr.f32.gmra.mrb[0].mxu0 %v1681
  %v1764 = vpop.f32.mrb[0].mxu0
  %v1765 = vadd.f32 0.0, %v1764
  %v1766 = vpop.f32.mrb[0].mxu0
  %1767 = vdwg.mxu0
  %v1768 = vadd.f32 %v1307, %v1765
  %s1769 = scalar_lea.vmem %s5, 768
  %v1770 = vld [vmem:[%s1769] sm:$0xff]
  %v1771 = vld [vmem:[%s1769 + $0x8] sm:$0xff]
  %v1772 = vld [vmem:[%s1769 + $0x10] sm:$0xff]
  %v1773 = vld [vmem:[%s1769 + $0x18] sm:$0xff]
  %v1774 = vld [vmem:[%s1769 + $0x20] sm:$0xff]
  %v1775 = vld [vmem:[%s1769 + $0x28] sm:$0xff]
  %v1776 = vld [vmem:[%s1769 + $0x30] sm:$0xff]
  %v1777 = vld [vmem:[%s1769 + $0x38] sm:$0xff]
  %v1778 = vld [vmem:[%s1769 + $0x40] sm:$0xff]
  %v1779 = vld [vmem:[%s1769 + $0x48] sm:$0xff]
  %v1780 = vld [vmem:[%s1769 + $0x50] sm:$0xff]
  %v1781 = vld [vmem:[%s1769 + $0x58] sm:$0xff]
  %v1782 = vld [vmem:[%s1769 + $0x60] sm:$0xff]
  %v1783 = vld [vmem:[%s1769 + $0x68] sm:$0xff]
  %v1784 = vld [vmem:[%s1769 + $0x70] sm:$0xff]
  %v1785 = vld [vmem:[%s1769 + $0x78] sm:$0xff]
  %1786 = vmatprep.subr.mxu0 0.0
  %1787 = vmatpush1.msra.mxu0 %v1770
  %1788 = vmatprep.subr.mxu0 0.0
  %1789 = vmatpush1.msra.mxu0 %v1771
  %1790 = vmatprep.subr.mxu0 0.0
  %1791 = vmatpush1.msra.mxu0 %v1772
  %1792 = vmatprep.subr.mxu0 0.0
  %1793 = vmatpush1.msra.mxu0 %v1773
  %1794 = vmatprep.subr.mxu0 0.0
  %1795 = vmatpush1.msra.mxu0 %v1774
  %1796 = vmatprep.subr.mxu0 0.0
  %1797 = vmatpush1.msra.mxu0 %v1775
  %1798 = vmatprep.subr.mxu0 0.0
  %1799 = vmatpush1.msra.mxu0 %v1776
  %1800 = vmatprep.subr.mxu0 0.0
  %1801 = vmatpush1.msra.mxu0 %v1777
  %1802 = vmatprep.subr.mxu0 0.0
  %1803 = vmatpush1.msra.mxu0 %v1778
  %1804 = vmatprep.subr.mxu0 0.0
  %1805 = vmatpush1.msra.mxu0 %v1779
  %1806 = vmatprep.subr.mxu0 0.0
  %1807 = vmatpush1.msra.mxu0 %v1780
  %1808 = vmatprep.subr.mxu0 0.0
  %1809 = vmatpush1.msra.mxu0 %v1781
  %1810 = vmatprep.subr.mxu0 0.0
  %1811 = vmatpush1.msra.mxu0 %v1782
  %1812 = vmatprep.subr.mxu0 0.0
  %1813 = vmatpush1.msra.mxu0 %v1783
  %1814 = vmatprep.subr.mxu0 0.0
  %1815 = vmatpush1.msra.mxu0 %v1784
  %1816 = vmatprep.subr.mxu0 0.0
  %1817 = vmatpush1.msra.mxu0 %v1785
  %1818 = vmatprep.subr.mxu0 0.0
  %1819 = vmatpush1.msra.mxu0 0.0
  %1820 = vmatprep.subr.mxu0 0.0
  %1821 = vmatpush1.msra.mxu0 0.0
  %1822 = vmatprep.subr.mxu0 0.0
  %1823 = vmatpush1.msra.mxu0 0.0
  %1824 = vmatprep.subr.mxu0 0.0
  %1825 = vmatpush1.msra.mxu0 0.0
  %1826 = vmatprep.subr.mxu0 0.0
  %1827 = vmatpush1.msra.mxu0 0.0
  %1828 = vmatprep.subr.mxu0 0.0
  %1829 = vmatpush1.msra.mxu0 0.0
  %1830 = vmatprep.subr.mxu0 0.0
  %1831 = vmatpush1.msra.mxu0 0.0
  %1832 = vmatprep.subr.mxu0 0.0
  %1833 = vmatpush1.msra.mxu0 0.0
  %1834 = vmatprep.subr.mxu0 0.0
  %1835 = vmatpush1.msra.mxu0 0.0
  %1836 = vmatprep.subr.mxu0 0.0
  %1837 = vmatpush1.msra.mxu0 0.0
  %1838 = vmatprep.subr.mxu0 0.0
  %1839 = vmatpush1.msra.mxu0 0.0
  %1840 = vmatprep.subr.mxu0 0.0
  %1841 = vmatpush1.msra.mxu0 0.0
  %1842 = vmatprep.subr.mxu0 0.0
  %1843 = vmatpush1.msra.mxu0 0.0
  %1844 = vmatprep.subr.mxu0 0.0
  %1845 = vmatpush1.msra.mxu0 0.0
  %1846 = vmatprep.subr.mxu0 0.0
  %1847 = vmatpush1.msra.mxu0 0.0
  %1848 = vmatprep.subr.mxu0 0.0
  %1849 = vmatpush1.msra.mxu0 0.0
  %1850 = vmatprep.mubr.f32.mxu0 0.0
  %1851 = vmatmul.mubr.f32.gmra.mrb[0].mxu0 %v64
  %v1852 = vpop.f32.mrb[0].mxu0
  %v1853 = vadd.f32 0.0, %v1852
  %v1854 = vpop.f32.mrb[0].mxu0
  %1855 = vdwg.mxu0
  %v1856 = vadd.f32 %v1768, %v1853
  %v1860 = vrot.slane %v64, 2
  %v1861 = vrot.slane %v65, 2
  %v1862 = vsel %vm192, %v1860, %v1861
  %v1863 = vrot.slane %v66, 2
  %v1864 = vsel %vm192, %v1861, %v1863
  %1868 = vmatprep.subr.mxu0 0.0
  %1869 = vmatpush1.msra.mxu0 %v69
  %1870 = vmatprep.subr.mxu0 0.0
  %1871 = vmatpush1.msra.mxu0 %v70
  %1872 = vmatprep.subr.mxu0 0.0
  %1873 = vmatpush1.msra.mxu0 %v71
  %1874 = vmatprep.subr.mxu0 0.0
  %1875 = vmatpush1.msra.mxu0 %v72
  %1876 = vmatprep.subr.mxu0 0.0
  %1877 = vmatpush1.msra.mxu0 %v73
  %1878 = vmatprep.subr.mxu0 0.0
  %1879 = vmatpush1.msra.mxu0 %v74
  %1880 = vmatprep.subr.mxu0 0.0
  %1881 = vmatpush1.msra.mxu0 %v75
  %1882 = vmatprep.subr.mxu0 0.0
  %1883 = vmatpush1.msra.mxu0 %v76
  %1884 = vmatprep.subr.mxu0 0.0
  %1885 = vmatpush1.msra.mxu0 %v77
  %1886 = vmatprep.subr.mxu0 0.0
  %1887 = vmatpush1.msra.mxu0 %v78
  %1888 = vmatprep.subr.mxu0 0.0
  %1889 = vmatpush1.msra.mxu0 %v79
  %1890 = vmatprep.subr.mxu0 0.0
  %1891 = vmatpush1.msra.mxu0 %v80
  %1892 = vmatprep.subr.mxu0 0.0
  %1893 = vmatpush1.msra.mxu0 %v81
  %1894 = vmatprep.subr.mxu0 0.0
  %1895 = vmatpush1.msra.mxu0 %v82
  %1896 = vmatprep.subr.mxu0 0.0
  %1897 = vmatpush1.msra.mxu0 %v83
  %1898 = vmatprep.subr.mxu0 0.0
  %1899 = vmatpush1.msra.mxu0 %v84
  %1900 = vmatprep.subr.mxu0 0.0
  %1901 = vmatpush1.msra.mxu0 0.0
  %1902 = vmatprep.subr.mxu0 0.0
  %1903 = vmatpush1.msra.mxu0 0.0
  %1904 = vmatprep.subr.mxu0 0.0
  %1905 = vmatpush1.msra.mxu0 0.0
  %1906 = vmatprep.subr.mxu0 0.0
  %1907 = vmatpush1.msra.mxu0 0.0
  %1908 = vmatprep.subr.mxu0 0.0
  %1909 = vmatpush1.msra.mxu0 0.0
  %1910 = vmatprep.subr.mxu0 0.0
  %1911 = vmatpush1.msra.mxu0 0.0
  %1912 = vmatprep.subr.mxu0 0.0
  %1913 = vmatpush1.msra.mxu0 0.0
  %1914 = vmatprep.subr.mxu0 0.0
  %1915 = vmatpush1.msra.mxu0 0.0
  %1916 = vmatprep.subr.mxu0 0.0
  %1917 = vmatpush1.msra.mxu0 0.0
  %1918 = vmatprep.subr.mxu0 0.0
  %1919 = vmatpush1.msra.mxu0 0.0
  %1920 = vmatprep.subr.mxu0 0.0
  %1921 = vmatpush1.msra.mxu0 0.0
  %1922 = vmatprep.subr.mxu0 0.0
  %1923 = vmatpush1.msra.mxu0 0.0
  %1924 = vmatprep.subr.mxu0 0.0
  %1925 = vmatpush1.msra.mxu0 0.0
  %1926 = vmatprep.subr.mxu0 0.0
  %1927 = vmatpush1.msra.mxu0 0.0
  %1928 = vmatprep.subr.mxu0 0.0
  %1929 = vmatpush1.msra.mxu0 0.0
  %1930 = vmatprep.subr.mxu0 0.0
  %1931 = vmatpush1.msra.mxu0 0.0
  %1932 = vmatprep.mubr.f32.mxu0 0.0
  %1933 = vmatmul.mubr.f32.gmra.mrb[0].mxu0 %v1862
  %v1934 = vpop.f32.mrb[0].mxu0
  %v1935 = vadd.f32 %v187, %v1934
  %v1936 = vpop.f32.mrb[0].mxu0
  %1937 = vmatprep.mubr.f32.mxu0 0.0
  %1938 = vmatmul.mubr.f32.gmra.mrb[0].mxu0 %v1864
  %v1939 = vpop.f32.mrb[0].mxu0
  %v1940 = vadd.f32 %v187, %v1939
  %v1941 = vpop.f32.mrb[0].mxu0
  %1942 = vmatprep.mubr.f32.mxu0 0.0
  %1943 = vmatmul.mubr.f32.gmra.mrb[0].mxu0 %v1863
  %v1944 = vpop.f32.mrb[0].mxu0
  %v1945 = vadd.f32 %v187, %v1944
  %v1946 = vpop.f32.mrb[0].mxu0
  %1947 = vdwg.mxu0
  %v1948 = vmax.f32 %v1935, 0.0
  %v1949 = vmax.f32 %v1940, 0.0
  %v1950 = vmax.f32 %v1945, 0.0
  %v1951 = vmul.f32 %v1948, %v288
  %v1952 = vmul.f32 %v1949, %v288
  %v1953 = vmul.f32 %v1950, %v288
  %v1954 = vsel %vm293, %v1951, 0.0
  %1955 = vadd.xlane.f32.xlu0 %v1954
  %v1956 = vpop.xlane.xlu0 %1955
  %v1957 = vsel %vm293, %v1952, 0.0
  %1958 = vadd.xlane.f32.xlu0 %v1957
  %v1959 = vpop.xlane.xlu0 %1958
  %v1960 = vsel %vm300, %v1953, 0.0
  %1961 = vadd.xlane.f32.xlu0 %v1960
  %v1962 = vpop.xlane.xlu0 %1961
  %v1963 = vadd.f32 %v1956, %v308
  %v1964 = vadd.f32 %v1959, %v308
  %v1965 = vadd.f32 %v1962, %v308
  %v1966 = vsel %vm313, %v1963, -inf
  %v1967 = vsel %vm313, %v1964, -inf
  %v1968 = vsel %vm316, %v1965, -inf
  %v1969 = vmax.f32 %v1966, %v1967
  %v1970 = vmax.f32 %v1969, %v1968
  %v1971 = vrot.slane %v1970, 4
  %v1972 = vmax.f32 %v1970, %v1971
  %v1973 = vrot.slane %v1972, 2
  %v1974 = vmax.f32 %v1972, %v1973
  %v1975 = vrot.slane %v1974, 1
  %v1976 = vmax.f32 %v1974, %v1975
  %v1977 = vsub.f32 %v1963, %v1976
  %v1978 = vsub.f32 %v1964, %v1976
  %v1979 = vsub.f32 %v1965, %v1976
  %v1980 = vmul.f32 %v1977, 1.442695
  %v1981 = vpow.pop %v1980
  %v1982 = vmul.f32 %v1978, 1.442695
  %v1983 = vpow.pop %v1982
  %v1984 = vmul.f32 %v1979, 1.442695
  %v1985 = vpow.pop %v1984
  %v1986 = vsel %vm313, %v1981, 0.0
  %v1987 = vsel %vm313, %v1983, 0.0
  %v1988 = vadd.f32 %v1986, %v1987
  %v1989 = vsel %vm316, %v1985, 0.0
  %v1990 = vadd.f32 %v1988, %v1989
  %v1991 = vrot.slane %v1990, 4
  %v1992 = vadd.f32 %v1990, %v1991
  %v1993 = vrot.slane %v1992, 2
  %v1994 = vadd.f32 %v1992, %v1993
  %v1995 = vrot.slane %v1994, 1
  %v1996 = vadd.f32 %v1994, %v1995
  %v1997 = vrcp.pop %v1996
  %v1998 = vmul.f32 %v1981, %v1997
  %v1999 = vmul.f32 %v1983, %v1997
  %v2000 = vmul.f32 %v1985, %v1997
  %2002 = vset.pattern.permute.xlu0 0
  %2003 = vperm.xlu0 %2002, %v1998
  %v2004 = vpop.permute.xlu0 %2003
  %2006 = vset.pattern.permute.xlu0 0
  %2007 = vperm.xlu0 %2006, %v1999
  %v2008 = vpop.permute.xlu0 %2007
  %2010 = vset.pattern.permute.xlu0 0
  %2011 = vperm.xlu0 %2010, %v2000
  %v2012 = vpop.permute.xlu0 %2011
  %v2013 = vrot.slane %v2004, 6
  %v2014 = vrot.slane %v2008, 6
  %v2015 = vsel %vm362, %v2013, %v2014
  %v2016 = vrot.slane %v2012, 6
  %v2017 = vsel %vm362, %v2014, %v2016
  %v2021 = vmul.f32 %v64, %v2013
  %v2022 = vmul.f32 %v65, %v2015
  %v2023 = vmul.f32 %v66, %v2017
  %v2027 = vrot.slane %v2021, 2
  %v2028 = vrot.slane %v2022, 2
  %v2029 = vsel %vm192, %v2027, %v2028
  %v2030 = vrot.slane %v2023, 2
  %v2031 = vsel %vm192, %v2028, %v2030
  %v2035 = vadd.f32 %v2029, %v2031
  %v2036 = vsel %vm386, %v2030, 0.0
  %v2037 = vadd.f32 %v2035, %v2036
  %v2038 = vrot.slane %v2037, 4
  %v2039 = vadd.f32 %v2037, %v2038
  %v2040 = vrot.slane %v2039, 2
  %v2041 = vadd.f32 %v2039, %v2040
  %v2042 = vrot.slane %v2041, 1
  %v2043 = vadd.f32 %v2041, %v2042
  %v2046 = vrot.slane %v66, 5
  %v2047 = vrot.slane %v67, 5
  %v2048 = vsel %vm386, %v2046, %v2047
  %v2049 = vrot.slane %v68, 5
  %v2050 = vsel %vm386, %v2047, %v2049
  %2054 = vmatprep.subr.mxu0 0.0
  %2055 = vmatpush1.msra.mxu0 %v69
  %2056 = vmatprep.subr.mxu0 0.0
  %2057 = vmatpush1.msra.mxu0 %v70
  %2058 = vmatprep.subr.mxu0 0.0
  %2059 = vmatpush1.msra.mxu0 %v71
  %2060 = vmatprep.subr.mxu0 0.0
  %2061 = vmatpush1.msra.mxu0 %v72
  %2062 = vmatprep.subr.mxu0 0.0
  %2063 = vmatpush1.msra.mxu0 %v73
  %2064 = vmatprep.subr.mxu0 0.0
  %2065 = vmatpush1.msra.mxu0 %v74
  %2066 = vmatprep.subr.mxu0 0.0
  %2067 = vmatpush1.msra.mxu0 %v75
  %2068 = vmatprep.subr.mxu0 0.0
  %2069 = vmatpush1.msra.mxu0 %v76
  %2070 = vmatprep.subr.mxu0 0.0
  %2071 = vmatpush1.msra.mxu0 %v77
  %2072 = vmatprep.subr.mxu0 0.0
  %2073 = vmatpush1.msra.mxu0 %v78
  %2074 = vmatprep.subr.mxu0 0.0
  %2075 = vmatpush1.msra.mxu0 %v79
  %2076 = vmatprep.subr.mxu0 0.0
  %2077 = vmatpush1.msra.mxu0 %v80
  %2078 = vmatprep.subr.mxu0 0.0
  %2079 = vmatpush1.msra.mxu0 %v81
  %2080 = vmatprep.subr.mxu0 0.0
  %2081 = vmatpush1.msra.mxu0 %v82
  %2082 = vmatprep.subr.mxu0 0.0
  %2083 = vmatpush1.msra.mxu0 %v83
  %2084 = vmatprep.subr.mxu0 0.0
  %2085 = vmatpush1.msra.mxu0 %v84
  %2086 = vmatprep.subr.mxu0 0.0
  %2087 = vmatpush1.msra.mxu0 0.0
  %2088 = vmatprep.subr.mxu0 0.0
  %2089 = vmatpush1.msra.mxu0 0.0
  %2090 = vmatprep.subr.mxu0 0.0
  %2091 = vmatpush1.msra.mxu0 0.0
  %2092 = vmatprep.subr.mxu0 0.0
  %2093 = vmatpush1.msra.mxu0 0.0
  %2094 = vmatprep.subr.mxu0 0.0
  %2095 = vmatpush1.msra.mxu0 0.0
  %2096 = vmatprep.subr.mxu0 0.0
  %2097 = vmatpush1.msra.mxu0 0.0
  %2098 = vmatprep.subr.mxu0 0.0
  %2099 = vmatpush1.msra.mxu0 0.0
  %2100 = vmatprep.subr.mxu0 0.0
  %2101 = vmatpush1.msra.mxu0 0.0
  %2102 = vmatprep.subr.mxu0 0.0
  %2103 = vmatpush1.msra.mxu0 0.0
  %2104 = vmatprep.subr.mxu0 0.0
  %2105 = vmatpush1.msra.mxu0 0.0
  %2106 = vmatprep.subr.mxu0 0.0
  %2107 = vmatpush1.msra.mxu0 0.0
  %2108 = vmatprep.subr.mxu0 0.0
  %2109 = vmatpush1.msra.mxu0 0.0
  %2110 = vmatprep.subr.mxu0 0.0
  %2111 = vmatpush1.msra.mxu0 0.0
  %2112 = vmatprep.subr.mxu0 0.0
  %2113 = vmatpush1.msra.mxu0 0.0
  %2114 = vmatprep.subr.mxu0 0.0
  %2115 = vmatpush1.msra.mxu0 0.0
  %2116 = vmatprep.subr.mxu0 0.0
  %2117 = vmatpush1.msra.mxu0 0.0
  %2118 = vmatprep.mubr.f32.mxu0 0.0
  %2119 = vmatmul.mubr.f32.gmra.mrb[0].mxu0 %v2048
  %v2120 = vpop.f32.mrb[0].mxu0
  %v2121 = vadd.f32 %v187, %v2120
  %v2122 = vpop.f32.mrb[0].mxu0
  %2123 = vmatprep.mubr.f32.mxu0 0.0
  %2124 = vmatmul.mubr.f32.gmra.mrb[0].mxu0 %v2050
  %v2125 = vpop.f32.mrb[0].mxu0
  %v2126 = vadd.f32 %v187, %v2125
  %v2127 = vpop.f32.mrb[0].mxu0
  %2128 = vmatprep.mubr.f32.mxu0 0.0
  %2129 = vmatmul.mubr.f32.gmra.mrb[0].mxu0 %v2049
  %v2130 = vpop.f32.mrb[0].mxu0
  %v2131 = vadd.f32 %v187, %v2130
  %v2132 = vpop.f32.mrb[0].mxu0
  %2133 = vdwg.mxu0
  %v2134 = vmax.f32 %v2121, 0.0
  %v2135 = vmax.f32 %v2126, 0.0
  %v2136 = vmax.f32 %v2131, 0.0
  %v2137 = vmul.f32 %v2134, %v288
  %v2138 = vmul.f32 %v2135, %v288
  %v2139 = vmul.f32 %v2136, %v288
  %v2140 = vsel %vm293, %v2137, 0.0
  %2141 = vadd.xlane.f32.xlu0 %v2140
  %v2142 = vpop.xlane.xlu0 %2141
  %v2143 = vsel %vm293, %v2138, 0.0
  %2144 = vadd.xlane.f32.xlu0 %v2143
  %v2145 = vpop.xlane.xlu0 %2144
  %v2146 = vsel %vm300, %v2139, 0.0
  %2147 = vadd.xlane.f32.xlu0 %v2146
  %v2148 = vpop.xlane.xlu0 %2147
  %v2149 = vadd.f32 %v2142, %v308
  %v2150 = vadd.f32 %v2145, %v308
  %v2151 = vadd.f32 %v2148, %v308
  %v2152 = vsel %vm313, %v2149, -inf
  %v2153 = vsel %vm313, %v2150, -inf
  %v2154 = vsel %vm316, %v2151, -inf
  %v2155 = vmax.f32 %v2152, %v2153
  %v2156 = vmax.f32 %v2155, %v2154
  %v2157 = vrot.slane %v2156, 4
  %v2158 = vmax.f32 %v2156, %v2157
  %v2159 = vrot.slane %v2158, 2
  %v2160 = vmax.f32 %v2158, %v2159
  %v2161 = vrot.slane %v2160, 1
  %v2162 = vmax.f32 %v2160, %v2161
  %v2163 = vsub.f32 %v2149, %v2162
  %v2164 = vsub.f32 %v2150, %v2162
  %v2165 = vsub.f32 %v2151, %v2162
  %v2166 = vmul.f32 %v2163, 1.442695
  %v2167 = vpow.pop %v2166
  %v2168 = vmul.f32 %v2164, 1.442695
  %v2169 = vpow.pop %v2168
  %v2170 = vmul.f32 %v2165, 1.442695
  %v2171 = vpow.pop %v2170
  %v2172 = vsel %vm313, %v2167, 0.0
  %v2173 = vsel %vm313, %v2169, 0.0
  %v2174 = vadd.f32 %v2172, %v2173
  %v2175 = vsel %vm316, %v2171, 0.0
  %v2176 = vadd.f32 %v2174, %v2175
  %v2177 = vrot.slane %v2176, 4
  %v2178 = vadd.f32 %v2176, %v2177
  %v2179 = vrot.slane %v2178, 2
  %v2180 = vadd.f32 %v2178, %v2179
  %v2181 = vrot.slane %v2180, 1
  %v2182 = vadd.f32 %v2180, %v2181
  %v2183 = vrcp.pop %v2182
  %v2184 = vmul.f32 %v2167, %v2183
  %v2185 = vmul.f32 %v2169, %v2183
  %v2186 = vmul.f32 %v2171, %v2183
  %2188 = vset.pattern.permute.xlu0 0
  %2189 = vperm.xlu0 %2188, %v2184
  %v2190 = vpop.permute.xlu0 %2189
  %2192 = vset.pattern.permute.xlu0 0
  %2193 = vperm.xlu0 %2192, %v2185
  %v2194 = vpop.permute.xlu0 %2193
  %2196 = vset.pattern.permute.xlu0 0
  %2197 = vperm.xlu0 %2196, %v2186
  %v2198 = vpop.permute.xlu0 %2197
  %v2199 = vrot.slane %v2190, 3
  %v2200 = vrot.slane %v2194, 3
  %v2201 = vsel %vm550, %v2199, %v2200
  %v2202 = vrot.slane %v2198, 3
  %v2203 = vsel %vm550, %v2200, %v2202
  %v2207 = vmul.f32 %v66, %v2199
  %v2208 = vmul.f32 %v67, %v2201
  %v2209 = vmul.f32 %v68, %v2203
  %v2213 = vrot.slane %v2207, 5
  %v2214 = vrot.slane %v2208, 5
  %v2215 = vsel %vm386, %v2213, %v2214
  %v2216 = vrot.slane %v2209, 5
  %v2217 = vsel %vm386, %v2214, %v2216
  %v2221 = vadd.f32 %v2215, %v2217
  %v2222 = vsel %vm386, %v2216, 0.0
  %v2223 = vadd.f32 %v2221, %v2222
  %v2224 = vrot.slane %v2223, 4
  %v2225 = vadd.f32 %v2223, %v2224
  %v2226 = vrot.slane %v2225, 2
  %v2227 = vadd.f32 %v2225, %v2226
  %v2228 = vrot.slane %v2227, 1
  %v2229 = vadd.f32 %v2227, %v2228
  %v2230 = vsel %vm582, %v2043, %v2229
  %v2231 = vld [vmem:[%s1769 + $0x80] sm:$0xff]
  %v2232 = vld [vmem:[%s1769 + $0x88] sm:$0xff]
  %v2233 = vld [vmem:[%s1769 + $0x90] sm:$0xff]
  %v2234 = vld [vmem:[%s1769 + $0x98] sm:$0xff]
  %v2235 = vld [vmem:[%s1769 + $0xa0] sm:$0xff]
  %v2236 = vld [vmem:[%s1769 + $0xa8] sm:$0xff]
  %v2237 = vld [vmem:[%s1769 + $0xb0] sm:$0xff]
  %v2238 = vld [vmem:[%s1769 + $0xb8] sm:$0xff]
  %v2239 = vld [vmem:[%s1769 + $0xc0] sm:$0xff]
  %v2240 = vld [vmem:[%s1769 + $0xc8] sm:$0xff]
  %v2241 = vld [vmem:[%s1769 + $0xd0] sm:$0xff]
  %v2242 = vld [vmem:[%s1769 + $0xd8] sm:$0xff]
  %v2243 = vld [vmem:[%s1769 + $0xe0] sm:$0xff]
  %v2244 = vld [vmem:[%s1769 + $0xe8] sm:$0xff]
  %v2245 = vld [vmem:[%s1769 + $0xf0] sm:$0xff]
  %v2246 = vld [vmem:[%s1769 + $0xf8] sm:$0xff]
  %2247 = vmatprep.subr.mxu0 0.0
  %2248 = vmatpush1.msra.mxu0 %v2231
  %2249 = vmatprep.subr.mxu0 0.0
  %2250 = vmatpush1.msra.mxu0 %v2232
  %2251 = vmatprep.subr.mxu0 0.0
  %2252 = vmatpush1.msra.mxu0 %v2233
  %2253 = vmatprep.subr.mxu0 0.0
  %2254 = vmatpush1.msra.mxu0 %v2234
  %2255 = vmatprep.subr.mxu0 0.0
  %2256 = vmatpush1.msra.mxu0 %v2235
  %2257 = vmatprep.subr.mxu0 0.0
  %2258 = vmatpush1.msra.mxu0 %v2236
  %2259 = vmatprep.subr.mxu0 0.0
  %2260 = vmatpush1.msra.mxu0 %v2237
  %2261 = vmatprep.subr.mxu0 0.0
  %2262 = vmatpush1.msra.mxu0 %v2238
  %2263 = vmatprep.subr.mxu0 0.0
  %2264 = vmatpush1.msra.mxu0 %v2239
  %2265 = vmatprep.subr.mxu0 0.0
  %2266 = vmatpush1.msra.mxu0 %v2240
  %2267 = vmatprep.subr.mxu0 0.0
  %2268 = vmatpush1.msra.mxu0 %v2241
  %2269 = vmatprep.subr.mxu0 0.0
  %2270 = vmatpush1.msra.mxu0 %v2242
  %2271 = vmatprep.subr.mxu0 0.0
  %2272 = vmatpush1.msra.mxu0 %v2243
  %2273 = vmatprep.subr.mxu0 0.0
  %2274 = vmatpush1.msra.mxu0 %v2244
  %2275 = vmatprep.subr.mxu0 0.0
  %2276 = vmatpush1.msra.mxu0 %v2245
  %2277 = vmatprep.subr.mxu0 0.0
  %2278 = vmatpush1.msra.mxu0 %v2246
  %2279 = vmatprep.subr.mxu0 0.0
  %2280 = vmatpush1.msra.mxu0 0.0
  %2281 = vmatprep.subr.mxu0 0.0
  %2282 = vmatpush1.msra.mxu0 0.0
  %2283 = vmatprep.subr.mxu0 0.0
  %2284 = vmatpush1.msra.mxu0 0.0
  %2285 = vmatprep.subr.mxu0 0.0
  %2286 = vmatpush1.msra.mxu0 0.0
  %2287 = vmatprep.subr.mxu0 0.0
  %2288 = vmatpush1.msra.mxu0 0.0
  %2289 = vmatprep.subr.mxu0 0.0
  %2290 = vmatpush1.msra.mxu0 0.0
  %2291 = vmatprep.subr.mxu0 0.0
  %2292 = vmatpush1.msra.mxu0 0.0
  %2293 = vmatprep.subr.mxu0 0.0
  %2294 = vmatpush1.msra.mxu0 0.0
  %2295 = vmatprep.subr.mxu0 0.0
  %2296 = vmatpush1.msra.mxu0 0.0
  %2297 = vmatprep.subr.mxu0 0.0
  %2298 = vmatpush1.msra.mxu0 0.0
  %2299 = vmatprep.subr.mxu0 0.0
  %2300 = vmatpush1.msra.mxu0 0.0
  %2301 = vmatprep.subr.mxu0 0.0
  %2302 = vmatpush1.msra.mxu0 0.0
  %2303 = vmatprep.subr.mxu0 0.0
  %2304 = vmatpush1.msra.mxu0 0.0
  %2305 = vmatprep.subr.mxu0 0.0
  %2306 = vmatpush1.msra.mxu0 0.0
  %2307 = vmatprep.subr.mxu0 0.0
  %2308 = vmatpush1.msra.mxu0 0.0
  %2309 = vmatprep.subr.mxu0 0.0
  %2310 = vmatpush1.msra.mxu0 0.0
  %2311 = vmatprep.mubr.f32.mxu0 0.0
  %2312 = vmatmul.mubr.f32.gmra.mrb[0].mxu0 %v2230
  %v2313 = vpop.f32.mrb[0].mxu0
  %v2314 = vadd.f32 0.0, %v2313
  %v2315 = vpop.f32.mrb[0].mxu0
  %2316 = vdwg.mxu0
  %v2317 = vadd.f32 %v1856, %v2314
  %v2318 = vld [vmem:[%s9] sm:$0xf]
  %v2319 = vld [vmem:[%s7] sm:$0xff]
  %v2320 = vld [vmem:[%s7 + $0x8] sm:$0xff]
  %v2321 = vld [vmem:[%s7 + $0x10] sm:$0xff]
  %v2322 = vld [vmem:[%s7 + $0x18] sm:$0xff]
  %v2323 = vld [vmem:[%s7 + $0x20] sm:$0xff]
  %v2324 = vld [vmem:[%s7 + $0x28] sm:$0xff]
  %v2325 = vld [vmem:[%s7 + $0x30] sm:$0xff]
  %v2326 = vld [vmem:[%s7 + $0x38] sm:$0xff]
  %v2327 = vld [vmem:[%s7 + $0x40] sm:$0xff]
  %v2328 = vld [vmem:[%s7 + $0x48] sm:$0xff]
  %v2329 = vld [vmem:[%s7 + $0x50] sm:$0xff]
  %v2330 = vld [vmem:[%s7 + $0x58] sm:$0xff]
  %v2331 = vld [vmem:[%s7 + $0x60] sm:$0xff]
  %v2332 = vld [vmem:[%s7 + $0x68] sm:$0xff]
  %v2333 = vld [vmem:[%s7 + $0x70] sm:$0xff]
  %v2334 = vld [vmem:[%s7 + $0x78] sm:$0xff]
  %v2335 = vld [vmem:[%s7 + $0x80] sm:$0xff]
  %v2336 = vld [vmem:[%s7 + $0x88] sm:$0xff]
  %v2337 = vld [vmem:[%s7 + $0x90] sm:$0xff]
  %v2338 = vld [vmem:[%s7 + $0x98] sm:$0xff]
  %v2339 = vld [vmem:[%s7 + $0xa0] sm:$0xff]
  %v2340 = vld [vmem:[%s7 + $0xa8] sm:$0xff]
  %v2341 = vld [vmem:[%s7 + $0xb0] sm:$0xff]
  %v2342 = vld [vmem:[%s7 + $0xb8] sm:$0xff]
  %v2343 = vld [vmem:[%s7 + $0xc0] sm:$0xff]
  %v2344 = vld [vmem:[%s7 + $0xc8] sm:$0xff]
  %v2345 = vld [vmem:[%s7 + $0xd0] sm:$0xff]
  %v2346 = vld [vmem:[%s7 + $0xd8] sm:$0xff]
  %v2347 = vld [vmem:[%s7 + $0xe0] sm:$0xff]
  %v2348 = vld [vmem:[%s7 + $0xe8] sm:$0xff]
  %v2349 = vld [vmem:[%s7 + $0xf0] sm:$0xff]
  %v2350 = vld [vmem:[%s7 + $0xf8] sm:$0xff]
  %v2351 = vld [vmem:[%s7 + $0x100] sm:$0xff]
  %v2352 = vld [vmem:[%s7 + $0x108] sm:$0xff]
  %v2353 = vld [vmem:[%s7 + $0x110] sm:$0xff]
  %v2354 = vld [vmem:[%s7 + $0x118] sm:$0xff]
  %v2355 = vld [vmem:[%s7 + $0x120] sm:$0xff]
  %v2356 = vld [vmem:[%s7 + $0x128] sm:$0xff]
  %v2357 = vld [vmem:[%s7 + $0x130] sm:$0xff]
  %v2358 = vld [vmem:[%s7 + $0x138] sm:$0xff]
  %v2359 = vld [vmem:[%s7 + $0x140] sm:$0xff]
  %v2360 = vld [vmem:[%s7 + $0x148] sm:$0xff]
  %v2361 = vld [vmem:[%s7 + $0x150] sm:$0xff]
  %v2362 = vld [vmem:[%s7 + $0x158] sm:$0xff]
  %v2363 = vld [vmem:[%s7 + $0x160] sm:$0xff]
  %v2364 = vld [vmem:[%s7 + $0x168] sm:$0xff]
  %v2365 = vld [vmem:[%s7 + $0x170] sm:$0xff]
  %v2366 = vld [vmem:[%s7 + $0x178] sm:$0xff]
  %v2367 = vld [vmem:[%s7 + $0x180] sm:$0xff]
  %v2368 = vld [vmem:[%s7 + $0x188] sm:$0xff]
  %v2369 = vld [vmem:[%s7 + $0x190] sm:$0xff]
  %v2370 = vld [vmem:[%s7 + $0x198] sm:$0xff]
  %v2371 = vld [vmem:[%s7 + $0x1a0] sm:$0xff]
  %v2372 = vld [vmem:[%s7 + $0x1a8] sm:$0xff]
  %v2373 = vld [vmem:[%s7 + $0x1b0] sm:$0xff]
  %v2374 = vld [vmem:[%s7 + $0x1b8] sm:$0xff]
  %v2375 = vld [vmem:[%s7 + $0x1c0] sm:$0xff]
  %v2376 = vld [vmem:[%s7 + $0x1c8] sm:$0xff]
  %v2377 = vld [vmem:[%s7 + $0x1d0] sm:$0xff]
  %v2378 = vld [vmem:[%s7 + $0x1d8] sm:$0xff]
  %v2379 = vld [vmem:[%s7 + $0x1e0] sm:$0xff]
  %v2380 = vld [vmem:[%s7 + $0x1e8] sm:$0xff]
  %v2381 = vld [vmem:[%s7 + $0x1f0] sm:$0xff]
  %v2382 = vld [vmem:[%s7 + $0x1f8] sm:$0xff]
  %v2384 = vlaneseq
  %v2385 = vshrl.u32 %v2384, 7
  %v2386 = vsub.s32 0, %v2385
  %v2387 = vrot.slane %v2318, %v2386
  %v2388 = vlaneseq
  %v2389 = vshrl.u32 %v2388, 7
  %v2390 = vsub.s32 1, %v2389
  %v2391 = vrot.slane %v2318, %v2390
  %v2392 = vlaneseq
  %v2393 = vshrl.u32 %v2392, 7
  %v2394 = vsub.s32 2, %v2393
  %v2395 = vrot.slane %v2318, %v2394
  %v2396 = vlaneseq
  %v2397 = vshrl.u32 %v2396, 7
  %v2398 = vsub.s32 3, %v2397
  %v2399 = vrot.slane %v2318, %v2398
  %2404 = vmatprep.subr.mxu0 %v2320
  %2405 = vmatpush1.msra.mxu0 %v2319
  %2406 = vmatprep.subr.mxu0 %v2324
  %2407 = vmatpush1.msra.mxu0 %v2323
  %2408 = vmatprep.subr.mxu0 %v2328
  %2409 = vmatpush1.msra.mxu0 %v2327
  %2410 = vmatprep.subr.mxu0 %v2332
  %2411 = vmatpush1.msra.mxu0 %v2331
  %2412 = vmatprep.subr.mxu0 %v2336
  %2413 = vmatpush1.msra.mxu0 %v2335
  %2414 = vmatprep.subr.mxu0 %v2340
  %2415 = vmatpush1.msra.mxu0 %v2339
  %2416 = vmatprep.subr.mxu0 %v2344
  %2417 = vmatpush1.msra.mxu0 %v2343
  %2418 = vmatprep.subr.mxu0 %v2348
  %2419 = vmatpush1.msra.mxu0 %v2347
  %2420 = vmatprep.subr.mxu0 %v2352
  %2421 = vmatpush1.msra.mxu0 %v2351
  %2422 = vmatprep.subr.mxu0 %v2356
  %2423 = vmatpush1.msra.mxu0 %v2355
  %2424 = vmatprep.subr.mxu0 %v2360
  %2425 = vmatpush1.msra.mxu0 %v2359
  %2426 = vmatprep.subr.mxu0 %v2364
  %2427 = vmatpush1.msra.mxu0 %v2363
  %2428 = vmatprep.subr.mxu0 %v2368
  %2429 = vmatpush1.msra.mxu0 %v2367
  %2430 = vmatprep.subr.mxu0 %v2372
  %2431 = vmatpush1.msra.mxu0 %v2371
  %2432 = vmatprep.subr.mxu0 %v2376
  %2433 = vmatpush1.msra.mxu0 %v2375
  %2434 = vmatprep.subr.mxu0 %v2380
  %2435 = vmatpush1.msra.mxu0 %v2379
  %2436 = vmatprep.subr.mxu0 0.0
  %2437 = vmatpush1.msra.mxu0 0.0
  %2438 = vmatprep.subr.mxu0 0.0
  %2439 = vmatpush1.msra.mxu0 0.0
  %2440 = vmatprep.subr.mxu0 0.0
  %2441 = vmatpush1.msra.mxu0 0.0
  %2442 = vmatprep.subr.mxu0 0.0
  %2443 = vmatpush1.msra.mxu0 0.0
  %2444 = vmatprep.subr.mxu0 0.0
  %2445 = vmatpush1.msra.mxu0 0.0
  %2446 = vmatprep.subr.mxu0 0.0
  %2447 = vmatpush1.msra.mxu0 0.0
  %2448 = vmatprep.subr.mxu0 0.0
  %2449 = vmatpush1.msra.mxu0 0.0
  %2450 = vmatprep.subr.mxu0 0.0
  %2451 = vmatpush1.msra.mxu0 0.0
  %2452 = vmatprep.subr.mxu0 0.0
  %2453 = vmatpush1.msra.mxu0 0.0
  %2454 = vmatprep.subr.mxu0 0.0
  %2455 = vmatpush1.msra.mxu0 0.0
  %2456 = vmatprep.subr.mxu0 0.0
  %2457 = vmatpush1.msra.mxu0 0.0
  %2458 = vmatprep.subr.mxu0 0.0
  %2459 = vmatpush1.msra.mxu0 0.0
  %2460 = vmatprep.subr.mxu0 0.0
  %2461 = vmatpush1.msra.mxu0 0.0
  %2462 = vmatprep.subr.mxu0 0.0
  %2463 = vmatpush1.msra.mxu0 0.0
  %2464 = vmatprep.subr.mxu0 0.0
  %2465 = vmatpush1.msra.mxu0 0.0
  %2466 = vmatprep.subr.mxu0 0.0
  %2467 = vmatpush1.msra.mxu0 0.0
  %2468 = vmatprep.mubr.f32.mxu0 0.0
  %2469 = vmatmul.mubr.f32.gmra.mrb[0].mxu0 %v2317
  %v2470 = vpop.f32.mrb[0].mxu0
  %v2471 = vadd.f32 %v2387, %v2470
  %v2472 = vpop.f32.mrb[0].mxu0
  %v2473 = vadd.f32 %v2391, %v2472
  %2474 = vdwg.mxu0
  %2475 = vmatprep.subr.mxu0 %v2322
  %2476 = vmatpush1.msra.mxu0 %v2321
  %2477 = vmatprep.subr.mxu0 %v2326
  %2478 = vmatpush1.msra.mxu0 %v2325
  %2479 = vmatprep.subr.mxu0 %v2330
  %2480 = vmatpush1.msra.mxu0 %v2329
  %2481 = vmatprep.subr.mxu0 %v2334
  %2482 = vmatpush1.msra.mxu0 %v2333
  %2483 = vmatprep.subr.mxu0 %v2338
  %2484 = vmatpush1.msra.mxu0 %v2337
  %2485 = vmatprep.subr.mxu0 %v2342
  %2486 = vmatpush1.msra.mxu0 %v2341
  %2487 = vmatprep.subr.mxu0 %v2346
  %2488 = vmatpush1.msra.mxu0 %v2345
  %2489 = vmatprep.subr.mxu0 %v2350
  %2490 = vmatpush1.msra.mxu0 %v2349
  %2491 = vmatprep.subr.mxu0 %v2354
  %2492 = vmatpush1.msra.mxu0 %v2353
  %2493 = vmatprep.subr.mxu0 %v2358
  %2494 = vmatpush1.msra.mxu0 %v2357
  %2495 = vmatprep.subr.mxu0 %v2362
  %2496 = vmatpush1.msra.mxu0 %v2361
  %2497 = vmatprep.subr.mxu0 %v2366
  %2498 = vmatpush1.msra.mxu0 %v2365
  %2499 = vmatprep.subr.mxu0 %v2370
  %2500 = vmatpush1.msra.mxu0 %v2369
  %2501 = vmatprep.subr.mxu0 %v2374
  %2502 = vmatpush1.msra.mxu0 %v2373
  %2503 = vmatprep.subr.mxu0 %v2378
  %2504 = vmatpush1.msra.mxu0 %v2377
  %2505 = vmatprep.subr.mxu0 %v2382
  %2506 = vmatpush1.msra.mxu0 %v2381
  %2507 = vmatprep.subr.mxu0 0.0
  %2508 = vmatpush1.msra.mxu0 0.0
  %2509 = vmatprep.subr.mxu0 0.0
  %2510 = vmatpush1.msra.mxu0 0.0
  %2511 = vmatprep.subr.mxu0 0.0
  %2512 = vmatpush1.msra.mxu0 0.0
  %2513 = vmatprep.subr.mxu0 0.0
  %2514 = vmatpush1.msra.mxu0 0.0
  %2515 = vmatprep.subr.mxu0 0.0
  %2516 = vmatpush1.msra.mxu0 0.0
  %2517 = vmatprep.subr.mxu0 0.0
  %2518 = vmatpush1.msra.mxu0 0.0
  %2519 = vmatprep.subr.mxu0 0.0
  %2520 = vmatpush1.msra.mxu0 0.0
  %2521 = vmatprep.subr.mxu0 0.0
  %2522 = vmatpush1.msra.mxu0 0.0
  %2523 = vmatprep.subr.mxu0 0.0
  %2524 = vmatpush1.msra.mxu0 0.0
  %2525 = vmatprep.subr.mxu0 0.0
  %2526 = vmatpush1.msra.mxu0 0.0
  %2527 = vmatprep.subr.mxu0 0.0
  %2528 = vmatpush1.msra.mxu0 0.0
  %2529 = vmatprep.subr.mxu0 0.0
  %2530 = vmatpush1.msra.mxu0 0.0
  %2531 = vmatprep.subr.mxu0 0.0
  %2532 = vmatpush1.msra.mxu0 0.0
  %2533 = vmatprep.subr.mxu0 0.0
  %2534 = vmatpush1.msra.mxu0 0.0
  %2535 = vmatprep.subr.mxu0 0.0
  %2536 = vmatpush1.msra.mxu0 0.0
  %2537 = vmatprep.subr.mxu0 0.0
  %2538 = vmatpush1.msra.mxu0 0.0
  %2539 = vmatprep.mubr.f32.mxu0 0.0
  %2540 = vmatmul.mubr.f32.gmra.mrb[0].mxu0 %v2317
  %v2541 = vpop.f32.mrb[0].mxu0
  %v2542 = vadd.f32 %v2395, %v2541
  %v2543 = vpop.f32.mrb[0].mxu0
  %v2544 = vadd.f32 %v2399, %v2543
  %2545 = vdwg.mxu0
  %v2546 = vtanh.pop %v2471
  %v2547 = vtanh.pop %v2473
  %v2548 = vtanh.pop %v2542
  %v2549 = vtanh.pop %v2544
  %v2550 = vmul.f32 %v2546, 0.5
  %v2551 = vadd.f32 %v2550, 0.5
  %v2552 = vmul.f32 %v2547, 0.5
  %v2553 = vadd.f32 %v2552, 0.5
  %v2554 = vmul.f32 %v2549, 0.5
  %v2555 = vadd.f32 %v2554, 0.5
  %v2556 = vmul.f32 %v2553, 0.0
  %v2557 = vmul.f32 %v2551, %v2548
  %v2558 = vadd.f32 %v2556, %v2557
  %v2559 = vtanh.pop %v2558
  %v2560 = vmul.f32 %v2555, %v2559
  %2561 = vst [vmem:[#allocation2] sm:$0x3] %v2560
  loop: start=1, step=1, limit=60
  $region58: #{forward.3} parent=0 // loop_pre_header
    _
  $region59: #{forward.3} parent=0 // loop_header
    %s2563 = sphi 1, %s2567
    %p2564 = scmp.ge.s32.totalorder %s2563, 60
    %v2568 = vphi %v2560, %v2790
    %v2569 = vphi %v2558, %v2788
  $region60: #{forward.3} parent=0 // loop_header_branch
    %2566 = sbr.rel (%p2564) target = $region64
  $region61: #{forward.3} parent=0 // loop_body
    %v2570 = vld [vmem:[%s8] sm:$0xff]
    %v2571 = vld [vmem:[%s8 + $0x8] sm:$0xff]
    %v2572 = vld [vmem:[%s8 + $0x10] sm:$0xff]
    %v2573 = vld [vmem:[%s8 + $0x18] sm:$0xff]
    %v2574 = vld [vmem:[%s8 + $0x20] sm:$0xff]
    %v2575 = vld [vmem:[%s8 + $0x28] sm:$0xff]
    %v2576 = vld [vmem:[%s8 + $0x30] sm:$0xff]
    %v2577 = vld [vmem:[%s8 + $0x38] sm:$0xff]
    %v2578 = vld [vmem:[%s8 + $0x40] sm:$0xff]
    %v2579 = vld [vmem:[%s8 + $0x48] sm:$0xff]
    %v2580 = vld [vmem:[%s8 + $0x50] sm:$0xff]
    %v2581 = vld [vmem:[%s8 + $0x58] sm:$0xff]
    %v2582 = vld [vmem:[%s8 + $0x60] sm:$0xff]
    %v2583 = vld [vmem:[%s8 + $0x68] sm:$0xff]
    %v2584 = vld [vmem:[%s8 + $0x70] sm:$0xff]
    %v2585 = vld [vmem:[%s8 + $0x78] sm:$0xff]
    %v2586 = vld [vmem:[%s8 + $0x80] sm:$0xff]
    %v2587 = vld [vmem:[%s8 + $0x88] sm:$0xff]
    %v2588 = vld [vmem:[%s8 + $0x90] sm:$0xff]
    %v2589 = vld [vmem:[%s8 + $0x98] sm:$0xff]
    %v2590 = vld [vmem:[%s8 + $0xa0] sm:$0xff]
    %v2591 = vld [vmem:[%s8 + $0xa8] sm:$0xff]
    %v2592 = vld [vmem:[%s8 + $0xb0] sm:$0xff]
    %v2593 = vld [vmem:[%s8 + $0xb8] sm:$0xff]
    %v2594 = vld [vmem:[%s8 + $0xc0] sm:$0xff]
    %v2595 = vld [vmem:[%s8 + $0xc8] sm:$0xff]
    %v2596 = vld [vmem:[%s8 + $0xd0] sm:$0xff]
    %v2597 = vld [vmem:[%s8 + $0xd8] sm:$0xff]
    %v2598 = vld [vmem:[%s8 + $0xe0] sm:$0xff]
    %v2599 = vld [vmem:[%s8 + $0xe8] sm:$0xff]
    %v2600 = vld [vmem:[%s8 + $0xf0] sm:$0xff]
    %v2601 = vld [vmem:[%s8 + $0xf8] sm:$0xff]
    %v2602 = vld [vmem:[%s8 + $0x100] sm:$0xff]
    %v2603 = vld [vmem:[%s8 + $0x108] sm:$0xff]
    %v2604 = vld [vmem:[%s8 + $0x110] sm:$0xff]
    %v2605 = vld [vmem:[%s8 + $0x118] sm:$0xff]
    %v2606 = vld [vmem:[%s8 + $0x120] sm:$0xff]
    %v2607 = vld [vmem:[%s8 + $0x128] sm:$0xff]
    %v2608 = vld [vmem:[%s8 + $0x130] sm:$0xff]
    %v2609 = vld [vmem:[%s8 + $0x138] sm:$0xff]
    %v2610 = vld [vmem:[%s8 + $0x140] sm:$0xff]
    %v2611 = vld [vmem:[%s8 + $0x148] sm:$0xff]
    %v2612 = vld [vmem:[%s8 + $0x150] sm:$0xff]
    %v2613 = vld [vmem:[%s8 + $0x158] sm:$0xff]
    %v2614 = vld [vmem:[%s8 + $0x160] sm:$0xff]
    %v2615 = vld [vmem:[%s8 + $0x168] sm:$0xff]
    %v2616 = vld [vmem:[%s8 + $0x170] sm:$0xff]
    %v2617 = vld [vmem:[%s8 + $0x178] sm:$0xff]
    %v2618 = vld [vmem:[%s8 + $0x180] sm:$0xff]
    %v2619 = vld [vmem:[%s8 + $0x188] sm:$0xff]
    %v2620 = vld [vmem:[%s8 + $0x190] sm:$0xff]
    %v2621 = vld [vmem:[%s8 + $0x198] sm:$0xff]
    %v2622 = vld [vmem:[%s8 + $0x1a0] sm:$0xff]
    %v2623 = vld [vmem:[%s8 + $0x1a8] sm:$0xff]
    %v2624 = vld [vmem:[%s8 + $0x1b0] sm:$0xff]
    %v2625 = vld [vmem:[%s8 + $0x1b8] sm:$0xff]
    %v2626 = vld [vmem:[%s8 + $0x1c0] sm:$0xff]
    %v2627 = vld [vmem:[%s8 + $0x1c8] sm:$0xff]
    %v2628 = vld [vmem:[%s8 + $0x1d0] sm:$0xff]
    %v2629 = vld [vmem:[%s8 + $0x1d8] sm:$0xff]
    %v2630 = vld [vmem:[%s8 + $0x1e0] sm:$0xff]
    %v2631 = vld [vmem:[%s8 + $0x1e8] sm:$0xff]
    %v2632 = vld [vmem:[%s8 + $0x1f0] sm:$0xff]
    %v2633 = vld [vmem:[%s8 + $0x1f8] sm:$0xff]
    %2634 = vmatprep.subr.mxu0 %v2571
    %2635 = vmatpush1.msra.mxu0 %v2570
    %2636 = vmatprep.subr.mxu0 %v2575
    %2637 = vmatpush1.msra.mxu0 %v2574
    %2638 = vmatprep.subr.mxu0 %v2579
    %2639 = vmatpush1.msra.mxu0 %v2578
    %2640 = vmatprep.subr.mxu0 %v2583
    %2641 = vmatpush1.msra.mxu0 %v2582
    %2642 = vmatprep.subr.mxu0 %v2587
    %2643 = vmatpush1.msra.mxu0 %v2586
    %2644 = vmatprep.subr.mxu0 %v2591
    %2645 = vmatpush1.msra.mxu0 %v2590
    %2646 = vmatprep.subr.mxu0 %v2595
    %2647 = vmatpush1.msra.mxu0 %v2594
    %2648 = vmatprep.subr.mxu0 %v2599
    %2649 = vmatpush1.msra.mxu0 %v2598
    %2650 = vmatprep.subr.mxu0 %v2603
    %2651 = vmatpush1.msra.mxu0 %v2602
    %2652 = vmatprep.subr.mxu0 %v2607
    %2653 = vmatpush1.msra.mxu0 %v2606
    %2654 = vmatprep.subr.mxu0 %v2611
    %2655 = vmatpush1.msra.mxu0 %v2610
    %2656 = vmatprep.subr.mxu0 %v2615
    %2657 = vmatpush1.msra.mxu0 %v2614
    %2658 = vmatprep.subr.mxu0 %v2619
    %2659 = vmatpush1.msra.mxu0 %v2618
    %2660 = vmatprep.subr.mxu0 %v2623
    %2661 = vmatpush1.msra.mxu0 %v2622
    %2662 = vmatprep.subr.mxu0 %v2627
    %2663 = vmatpush1.msra.mxu0 %v2626
    %2664 = vmatprep.subr.mxu0 %v2631
    %2665 = vmatpush1.msra.mxu0 %v2630
    %2666 = vmatprep.subr.mxu0 0.0
    %2667 = vmatpush1.msra.mxu0 0.0
    %2668 = vmatprep.subr.mxu0 0.0
    %2669 = vmatpush1.msra.mxu0 0.0
    %2670 = vmatprep.subr.mxu0 0.0
    %2671 = vmatpush1.msra.mxu0 0.0
    %2672 = vmatprep.subr.mxu0 0.0
    %2673 = vmatpush1.msra.mxu0 0.0
    %2674 = vmatprep.subr.mxu0 0.0
    %2675 = vmatpush1.msra.mxu0 0.0
    %2676 = vmatprep.subr.mxu0 0.0
    %2677 = vmatpush1.msra.mxu0 0.0
    %2678 = vmatprep.subr.mxu0 0.0
    %2679 = vmatpush1.msra.mxu0 0.0
    %2680 = vmatprep.subr.mxu0 0.0
    %2681 = vmatpush1.msra.mxu0 0.0
    %2682 = vmatprep.subr.mxu0 0.0
    %2683 = vmatpush1.msra.mxu0 0.0
    %2684 = vmatprep.subr.mxu0 0.0
    %2685 = vmatpush1.msra.mxu0 0.0
    %2686 = vmatprep.subr.mxu0 0.0
    %2687 = vmatpush1.msra.mxu0 0.0
    %2688 = vmatprep.subr.mxu0 0.0
    %2689 = vmatpush1.msra.mxu0 0.0
    %2690 = vmatprep.subr.mxu0 0.0
    %2691 = vmatpush1.msra.mxu0 0.0
    %2692 = vmatprep.subr.mxu0 0.0
    %2693 = vmatpush1.msra.mxu0 0.0
    %2694 = vmatprep.subr.mxu0 0.0
    %2695 = vmatpush1.msra.mxu0 0.0
    %2696 = vmatprep.subr.mxu0 0.0
    %2697 = vmatpush1.msra.mxu0 0.0
    %2698 = vmatprep.mubr.f32.mxu0 0.0
    %2699 = vmatmul.mubr.f32.gmra.mrb[0].mxu0 %v2568
    %v2700 = vpop.f32.mrb[0].mxu0
    %v2701 = vadd.f32 %v2387, %v2700
    %v2702 = vpop.f32.mrb[0].mxu0
    %v2703 = vadd.f32 %v2391, %v2702
    %2704 = vdwg.mxu0
    %2705 = vmatprep.subr.mxu0 %v2573
    %2706 = vmatpush1.msra.mxu0 %v2572
    %2707 = vmatprep.subr.mxu0 %v2577
    %2708 = vmatpush1.msra.mxu0 %v2576
    %2709 = vmatprep.subr.mxu0 %v2581
    %2710 = vmatpush1.msra.mxu0 %v2580
    %2711 = vmatprep.subr.mxu0 %v2585
    %2712 = vmatpush1.msra.mxu0 %v2584
    %2713 = vmatprep.subr.mxu0 %v2589
    %2714 = vmatpush1.msra.mxu0 %v2588
    %2715 = vmatprep.subr.mxu0 %v2593
    %2716 = vmatpush1.msra.mxu0 %v2592
    %2717 = vmatprep.subr.mxu0 %v2597
    %2718 = vmatpush1.msra.mxu0 %v2596
    %2719 = vmatprep.subr.mxu0 %v2601
    %2720 = vmatpush1.msra.mxu0 %v2600
    %2721 = vmatprep.subr.mxu0 %v2605
    %2722 = vmatpush1.msra.mxu0 %v2604
    %2723 = vmatprep.subr.mxu0 %v2609
    %2724 = vmatpush1.msra.mxu0 %v2608
    %2725 = vmatprep.subr.mxu0 %v2613
    %2726 = vmatpush1.msra.mxu0 %v2612
    %2727 = vmatprep.subr.mxu0 %v2617
    %2728 = vmatpush1.msra.mxu0 %v2616
    %2729 = vmatprep.subr.mxu0 %v2621
    %2730 = vmatpush1.msra.mxu0 %v2620
    %2731 = vmatprep.subr.mxu0 %v2625
    %2732 = vmatpush1.msra.mxu0 %v2624
    %2733 = vmatprep.subr.mxu0 %v2629
    %2734 = vmatpush1.msra.mxu0 %v2628
    %2735 = vmatprep.subr.mxu0 %v2633
    %2736 = vmatpush1.msra.mxu0 %v2632
    %2737 = vmatprep.subr.mxu0 0.0
    %2738 = vmatpush1.msra.mxu0 0.0
    %2739 = vmatprep.subr.mxu0 0.0
    %2740 = vmatpush1.msra.mxu0 0.0
    %2741 = vmatprep.subr.mxu0 0.0
    %2742 = vmatpush1.msra.mxu0 0.0
    %2743 = vmatprep.subr.mxu0 0.0
    %2744 = vmatpush1.msra.mxu0 0.0
    %2745 = vmatprep.subr.mxu0 0.0
    %2746 = vmatpush1.msra.mxu0 0.0
    %2747 = vmatprep.subr.mxu0 0.0
    %2748 = vmatpush1.msra.mxu0 0.0
    %2749 = vmatprep.subr.mxu0 0.0
    %2750 = vmatpush1.msra.mxu0 0.0
    %2751 = vmatprep.subr.mxu0 0.0
    %2752 = vmatpush1.msra.mxu0 0.0
    %2753 = vmatprep.subr.mxu0 0.0
    %2754 = vmatpush1.msra.mxu0 0.0
    %2755 = vmatprep.subr.mxu0 0.0
    %2756 = vmatpush1.msra.mxu0 0.0
    %2757 = vmatprep.subr.mxu0 0.0
    %2758 = vmatpush1.msra.mxu0 0.0
    %2759 = vmatprep.subr.mxu0 0.0
    %2760 = vmatpush1.msra.mxu0 0.0
    %2761 = vmatprep.subr.mxu0 0.0
    %2762 = vmatpush1.msra.mxu0 0.0
    %2763 = vmatprep.subr.mxu0 0.0
    %2764 = vmatpush1.msra.mxu0 0.0
    %2765 = vmatprep.subr.mxu0 0.0
    %2766 = vmatpush1.msra.mxu0 0.0
    %2767 = vmatprep.subr.mxu0 0.0
    %2768 = vmatpush1.msra.mxu0 0.0
    %2769 = vmatprep.mubr.f32.mxu0 0.0
    %2770 = vmatmul.mubr.f32.gmra.mrb[0].mxu0 %v2568
    %v2771 = vpop.f32.mrb[0].mxu0
    %v2772 = vadd.f32 %v2395, %v2771
    %v2773 = vpop.f32.mrb[0].mxu0
    %v2774 = vadd.f32 %v2399, %v2773
    %2775 = vdwg.mxu0
    %v2776 = vtanh.pop %v2701
    %v2777 = vtanh.pop %v2703
    %v2778 = vtanh.pop %v2772
    %v2779 = vtanh.pop %v2774
    %v2780 = vmul.f32 %v2776, 0.5
    %v2781 = vadd.f32 %v2780, 0.5
    %v2782 = vmul.f32 %v2777, 0.5
    %v2783 = vadd.f32 %v2782, 0.5
    %v2784 = vmul.f32 %v2779, 0.5
    %v2785 = vadd.f32 %v2784, 0.5
    %v2786 = vmul.f32 %v2783, %v2569
    %v2787 = vmul.f32 %v2781, %v2778
    %v2788 = vadd.f32 %v2786, %v2787
    %v2789 = vtanh.pop %v2788
    %v2790 = vmul.f32 %v2785, %v2789
    %s2791 = smul.u32 %s2563, 2
    %s2792 = scalar_lea.vmem [#allocation2], %s2791
    %2793 = vst [vmem:[%s2792] sm:$0x3] %v2790
  $region62: #{forward.3} parent=0 // loop_footer
    %s2567 = sadd.s32 1, %s2563
  $region63: #{forward.3} parent=0 // loop_footer_branch
    %2562 = sbr.rel target = $region59
  $region64: #{forward.3} parent=0 // loop_exit
    _
  %v2794 = vld [vmem:[#allocation2] sm:$0x3]
  %v2795 = vld [vmem:[#allocation2 + $0x2] sm:$0x3]
  %v2796 = vld [vmem:[#allocation2 + $0x4] sm:$0x3]
  %v2797 = vld [vmem:[#allocation2 + $0x6] sm:$0x3]
  %v2798 = vld [vmem:[#allocation2 + $0x8] sm:$0x3]
  %v2799 = vld [vmem:[#allocation2 + $0xa] sm:$0x3]
  %v2800 = vld [vmem:[#allocation2 + $0xc] sm:$0x3]
  %v2801 = vld [vmem:[#allocation2 + $0xe] sm:$0x3]
  %v2802 = vld [vmem:[#allocation2 + $0x10] sm:$0x3]
  %v2803 = vld [vmem:[#allocation2 + $0x12] sm:$0x3]
  %v2804 = vld [vmem:[#allocation2 + $0x14] sm:$0x3]
  %v2805 = vld [vmem:[#allocation2 + $0x16] sm:$0x3]
  %v2806 = vld [vmem:[#allocation2 + $0x18] sm:$0x3]
  %v2807 = vld [vmem:[#allocation2 + $0x1a] sm:$0x3]
  %v2808 = vld [vmem:[#allocation2 + $0x1c] sm:$0x3]
  %v2809 = vld [vmem:[#allocation2 + $0x1e] sm:$0x3]
  %v2810 = vld [vmem:[#allocation2 + $0x20] sm:$0x3]
  %v2811 = vld [vmem:[#allocation2 + $0x22] sm:$0x3]
  %v2812 = vld [vmem:[#allocation2 + $0x24] sm:$0x3]
  %v2813 = vld [vmem:[#allocation2 + $0x26] sm:$0x3]
  %v2814 = vld [vmem:[#allocation2 + $0x28] sm:$0x3]
  %v2815 = vld [vmem:[#allocation2 + $0x2a] sm:$0x3]
  %v2816 = vld [vmem:[#allocation2 + $0x2c] sm:$0x3]
  %v2817 = vld [vmem:[#allocation2 + $0x2e] sm:$0x3]
  %v2818 = vld [vmem:[#allocation2 + $0x30] sm:$0x3]
  %v2819 = vld [vmem:[#allocation2 + $0x32] sm:$0x3]
  %v2820 = vld [vmem:[#allocation2 + $0x34] sm:$0x3]
  %v2821 = vld [vmem:[#allocation2 + $0x36] sm:$0x3]
  %v2822 = vld [vmem:[#allocation2 + $0x38] sm:$0x3]
  %v2823 = vld [vmem:[#allocation2 + $0x3a] sm:$0x3]
  %v2824 = vld [vmem:[#allocation2 + $0x3c] sm:$0x3]
  %v2825 = vld [vmem:[#allocation2 + $0x3e] sm:$0x3]
  %v2826 = vld [vmem:[#allocation2 + $0x40] sm:$0x3]
  %v2827 = vld [vmem:[#allocation2 + $0x42] sm:$0x3]
  %v2828 = vld [vmem:[#allocation2 + $0x44] sm:$0x3]
  %v2829 = vld [vmem:[#allocation2 + $0x46] sm:$0x3]
  %v2830 = vld [vmem:[#allocation2 + $0x48] sm:$0x3]
  %v2831 = vld [vmem:[#allocation2 + $0x4a] sm:$0x3]
  %v2832 = vld [vmem:[#allocation2 + $0x4c] sm:$0x3]
  %v2833 = vld [vmem:[#allocation2 + $0x4e] sm:$0x3]
  %v2834 = vld [vmem:[#allocation2 + $0x50] sm:$0x3]
  %v2835 = vld [vmem:[#allocation2 + $0x52] sm:$0x3]
  %v2836 = vld [vmem:[#allocation2 + $0x54] sm:$0x3]
  %v2837 = vld [vmem:[#allocation2 + $0x56] sm:$0x3]
  %v2838 = vld [vmem:[#allocation2 + $0x58] sm:$0x3]
  %v2839 = vld [vmem:[#allocation2 + $0x5a] sm:$0x3]
  %v2840 = vld [vmem:[#allocation2 + $0x5c] sm:$0x3]
  %v2841 = vld [vmem:[#allocation2 + $0x5e] sm:$0x3]
  %v2842 = vld [vmem:[#allocation2 + $0x60] sm:$0x3]
  %v2843 = vld [vmem:[#allocation2 + $0x62] sm:$0x3]
  %v2844 = vld [vmem:[#allocation2 + $0x64] sm:$0x3]
  %v2845 = vld [vmem:[#allocation2 + $0x66] sm:$0x3]
  %v2846 = vld [vmem:[#allocation2 + $0x68] sm:$0x3]
  %v2847 = vld [vmem:[#allocation2 + $0x6a] sm:$0x3]
  %v2848 = vld [vmem:[#allocation2 + $0x6c] sm:$0x3]
  %v2849 = vld [vmem:[#allocation2 + $0x6e] sm:$0x3]
  %v2850 = vld [vmem:[#allocation2 + $0x70] sm:$0x3]
  %v2851 = vld [vmem:[#allocation2 + $0x72] sm:$0x3]
  %v2852 = vld [vmem:[#allocation2 + $0x74] sm:$0x3]
  %v2853 = vld [vmem:[#allocation2 + $0x76] sm:$0x3]
  %v2854 = vld [vmem:[%s10] sm:$0xff]
  %v2855 = vld [vmem:[%s10 + $0x8] sm:$0xff]
  %v2856 = vld [vmem:[%s10 + $0x10] sm:$0xff]
  %v2857 = vld [vmem:[%s10 + $0x18] sm:$0xff]
  %v2858 = vld [vmem:[%s10 + $0x20] sm:$0xff]
  %v2859 = vld [vmem:[%s10 + $0x28] sm:$0xff]
  %v2860 = vld [vmem:[%s10 + $0x30] sm:$0xff]
  %v2861 = vld [vmem:[%s10 + $0x38] sm:$0xff]
  %v2862 = vld [vmem:[%s10 + $0x40] sm:$0xff]
  %v2863 = vld [vmem:[%s10 + $0x48] sm:$0xff]
  %v2864 = vld [vmem:[%s10 + $0x50] sm:$0xff]
  %v2865 = vld [vmem:[%s10 + $0x58] sm:$0xff]
  %v2866 = vld [vmem:[%s10 + $0x60] sm:$0xff]
  %v2867 = vld [vmem:[%s10 + $0x68] sm:$0xff]
  %v2868 = vld [vmem:[%s10 + $0x70] sm:$0xff]
  %v2869 = vld [vmem:[%s10 + $0x78] sm:$0xff]
  %v2870 = vld [vmem:[%s11] sm:$0x1]
  %v2872 = vlaneseq
  %v2873 = vshrl.u32 %v2872, 7
  %v2874 = vsub.s32 0, %v2873
  %v2875 = vrot.slane %v2870, %v2874
  %v2937 = vcombine.low %v2794, %v2795
  %v2938 = vcombine.low %v2796, %v2797
  %v2940 = vunpack.c.l.s4 1983009808
  %v2941 = vunpack.c.0.s8 %v2940
  %v2942 = vlaneseq
  %v2943 = vshrl.u32 %v2942, 7
  %v2944 = vsub.s32 %v2941, %v2943
  %v2945 = vrot.slane %v2937, %v2944
  %v2947 = vunpack.c.l.s4 1983009808
  %v2948 = vunpack.c.0.s8 %v2947
  %v2949 = vlaneseq
  %v2950 = vshrl.u32 %v2949, 7
  %v2951 = vsub.s32 %v2948, %v2950
  %v2952 = vrot.slane %v2938, %v2951
  %v2953 = vcombine.low %v2945, %v2952
  %v2954 = vcombine.low %v2798, %v2799
  %v2955 = vcombine.low %v2800, %v2801
  %v2957 = vunpack.c.l.s4 1983009808
  %v2958 = vunpack.c.0.s8 %v2957
  %v2959 = vlaneseq
  %v2960 = vshrl.u32 %v2959, 7
  %v2961 = vsub.s32 %v2958, %v2960
  %v2962 = vrot.slane %v2954, %v2961
  %v2964 = vunpack.c.l.s4 1983009808
  %v2965 = vunpack.c.0.s8 %v2964
  %v2966 = vlaneseq
  %v2967 = vshrl.u32 %v2966, 7
  %v2968 = vsub.s32 %v2965, %v2967
  %v2969 = vrot.slane %v2955, %v2968
  %v2970 = vcombine.low %v2962, %v2969
  %v2971 = vcombine.low %v2802, %v2803
  %v2972 = vcombine.low %v2804, %v2805
  %v2974 = vunpack.c.l.s4 1983009808
  %v2975 = vunpack.c.0.s8 %v2974
  %v2976 = vlaneseq
  %v2977 = vshrl.u32 %v2976, 7
  %v2978 = vsub.s32 %v2975, %v2977
  %v2979 = vrot.slane %v2971, %v2978
  %v2981 = vunpack.c.l.s4 1983009808
  %v2982 = vunpack.c.0.s8 %v2981
  %v2983 = vlaneseq
  %v2984 = vshrl.u32 %v2983, 7
  %v2985 = vsub.s32 %v2982, %v2984
  %v2986 = vrot.slane %v2972, %v2985
  %v2987 = vcombine.low %v2979, %v2986
  %v2988 = vcombine.low %v2806, %v2807
  %v2989 = vcombine.low %v2808, %v2809
  %v2991 = vunpack.c.l.s4 1983009808
  %v2992 = vunpack.c.0.s8 %v2991
  %v2993 = vlaneseq
  %v2994 = vshrl.u32 %v2993, 7
  %v2995 = vsub.s32 %v2992, %v2994
  %v2996 = vrot.slane %v2988, %v2995
  %v2998 = vunpack.c.l.s4 1983009808
  %v2999 = vunpack.c.0.s8 %v2998
  %v3000 = vlaneseq
  %v3001 = vshrl.u32 %v3000, 7
  %v3002 = vsub.s32 %v2999, %v3001
  %v3003 = vrot.slane %v2989, %v3002
  %v3004 = vcombine.low %v2996, %v3003
  %v3005 = vcombine.low %v2810, %v2811
  %v3006 = vcombine.low %v2812, %v2813
  %v3008 = vunpack.c.l.s4 1983009808
  %v3009 = vunpack.c.0.s8 %v3008
  %v3010 = vlaneseq
  %v3011 = vshrl.u32 %v3010, 7
  %v3012 = vsub.s32 %v3009, %v3011
  %v3013 = vrot.slane %v3005, %v3012
  %v3015 = vunpack.c.l.s4 1983009808
  %v3016 = vunpack.c.0.s8 %v3015
  %v3017 = vlaneseq
  %v3018 = vshrl.u32 %v3017, 7
  %v3019 = vsub.s32 %v3016, %v3018
  %v3020 = vrot.slane %v3006, %v3019
  %v3021 = vcombine.low %v3013, %v3020
  %v3022 = vcombine.low %v2814, %v2815
  %v3023 = vcombine.low %v2816, %v2817
  %v3025 = vunpack.c.l.s4 1983009808
  %v3026 = vunpack.c.0.s8 %v3025
  %v3027 = vlaneseq
  %v3028 = vshrl.u32 %v3027, 7
  %v3029 = vsub.s32 %v3026, %v3028
  %v3030 = vrot.slane %v3022, %v3029
  %v3032 = vunpack.c.l.s4 1983009808
  %v3033 = vunpack.c.0.s8 %v3032
  %v3034 = vlaneseq
  %v3035 = vshrl.u32 %v3034, 7
  %v3036 = vsub.s32 %v3033, %v3035
  %v3037 = vrot.slane %v3023, %v3036
  %v3038 = vcombine.low %v3030, %v3037
  %v3039 = vcombine.low %v2818, %v2819
  %v3040 = vcombine.low %v2820, %v2821
  %v3042 = vunpack.c.l.s4 1983009808
  %v3043 = vunpack.c.0.s8 %v3042
  %v3044 = vlaneseq
  %v3045 = vshrl.u32 %v3044, 7
  %v3046 = vsub.s32 %v3043, %v3045
  %v3047 = vrot.slane %v3039, %v3046
  %v3049 = vunpack.c.l.s4 1983009808
  %v3050 = vunpack.c.0.s8 %v3049
  %v3051 = vlaneseq
  %v3052 = vshrl.u32 %v3051, 7
  %v3053 = vsub.s32 %v3050, %v3052
  %v3054 = vrot.slane %v3040, %v3053
  %v3055 = vcombine.low %v3047, %v3054
  %v3056 = vcombine.low %v2822, %v2823
  %v3057 = vcombine.low %v2824, %v2825
  %v3059 = vunpack.c.l.s4 1983009808
  %v3060 = vunpack.c.0.s8 %v3059
  %v3061 = vlaneseq
  %v3062 = vshrl.u32 %v3061, 7
  %v3063 = vsub.s32 %v3060, %v3062
  %v3064 = vrot.slane %v3056, %v3063
  %v3066 = vunpack.c.l.s4 1983009808
  %v3067 = vunpack.c.0.s8 %v3066
  %v3068 = vlaneseq
  %v3069 = vshrl.u32 %v3068, 7
  %v3070 = vsub.s32 %v3067, %v3069
  %v3071 = vrot.slane %v3057, %v3070
  %v3072 = vcombine.low %v3064, %v3071
  %v3073 = vcombine.low %v2826, %v2827
  %v3074 = vcombine.low %v2828, %v2829
  %v3076 = vunpack.c.l.s4 1983009808
  %v3077 = vunpack.c.0.s8 %v3076
  %v3078 = vlaneseq
  %v3079 = vshrl.u32 %v3078, 7
  %v3080 = vsub.s32 %v3077, %v3079
  %v3081 = vrot.slane %v3073, %v3080
  %v3083 = vunpack.c.l.s4 1983009808
  %v3084 = vunpack.c.0.s8 %v3083
  %v3085 = vlaneseq
  %v3086 = vshrl.u32 %v3085, 7
  %v3087 = vsub.s32 %v3084, %v3086
  %v3088 = vrot.slane %v3074, %v3087
  %v3089 = vcombine.low %v3081, %v3088
  %v3090 = vcombine.low %v2830, %v2831
  %v3091 = vcombine.low %v2832, %v2833
  %v3093 = vunpack.c.l.s4 1983009808
  %v3094 = vunpack.c.0.s8 %v3093
  %v3095 = vlaneseq
  %v3096 = vshrl.u32 %v3095, 7
  %v3097 = vsub.s32 %v3094, %v3096
  %v3098 = vrot.slane %v3090, %v3097
  %v3100 = vunpack.c.l.s4 1983009808
  %v3101 = vunpack.c.0.s8 %v3100
  %v3102 = vlaneseq
  %v3103 = vshrl.u32 %v3102, 7
  %v3104 = vsub.s32 %v3101, %v3103
  %v3105 = vrot.slane %v3091, %v3104
  %v3106 = vcombine.low %v3098, %v3105
  %v3107 = vcombine.low %v2834, %v2835
  %v3108 = vcombine.low %v2836, %v2837
  %v3110 = vunpack.c.l.s4 1983009808
  %v3111 = vunpack.c.0.s8 %v3110
  %v3112 = vlaneseq
  %v3113 = vshrl.u32 %v3112, 7
  %v3114 = vsub.s32 %v3111, %v3113
  %v3115 = vrot.slane %v3107, %v3114
  %v3117 = vunpack.c.l.s4 1983009808
  %v3118 = vunpack.c.0.s8 %v3117
  %v3119 = vlaneseq
  %v3120 = vshrl.u32 %v3119, 7
  %v3121 = vsub.s32 %v3118, %v3120
  %v3122 = vrot.slane %v3108, %v3121
  %v3123 = vcombine.low %v3115, %v3122
  %v3124 = vcombine.low %v2838, %v2839
  %v3125 = vcombine.low %v2840, %v2841
  %v3127 = vunpack.c.l.s4 1983009808
  %v3128 = vunpack.c.0.s8 %v3127
  %v3129 = vlaneseq
  %v3130 = vshrl.u32 %v3129, 7
  %v3131 = vsub.s32 %v3128, %v3130
  %v3132 = vrot.slane %v3124, %v3131
  %v3134 = vunpack.c.l.s4 1983009808
  %v3135 = vunpack.c.0.s8 %v3134
  %v3136 = vlaneseq
  %v3137 = vshrl.u32 %v3136, 7
  %v3138 = vsub.s32 %v3135, %v3137
  %v3139 = vrot.slane %v3125, %v3138
  %v3140 = vcombine.low %v3132, %v3139
  %v3141 = vcombine.low %v2842, %v2843
  %v3142 = vcombine.low %v2844, %v2845
  %v3144 = vunpack.c.l.s4 1983009808
  %v3145 = vunpack.c.0.s8 %v3144
  %v3146 = vlaneseq
  %v3147 = vshrl.u32 %v3146, 7
  %v3148 = vsub.s32 %v3145, %v3147
  %v3149 = vrot.slane %v3141, %v3148
  %v3151 = vunpack.c.l.s4 1983009808
  %v3152 = vunpack.c.0.s8 %v3151
  %v3153 = vlaneseq
  %v3154 = vshrl.u32 %v3153, 7
  %v3155 = vsub.s32 %v3152, %v3154
  %v3156 = vrot.slane %v3142, %v3155
  %v3157 = vcombine.low %v3149, %v3156
  %v3158 = vcombine.low %v2846, %v2847
  %v3159 = vcombine.low %v2848, %v2849
  %v3161 = vunpack.c.l.s4 1983009808
  %v3162 = vunpack.c.0.s8 %v3161
  %v3163 = vlaneseq
  %v3164 = vshrl.u32 %v3163, 7
  %v3165 = vsub.s32 %v3162, %v3164
  %v3166 = vrot.slane %v3158, %v3165
  %v3168 = vunpack.c.l.s4 1983009808
  %v3169 = vunpack.c.0.s8 %v3168
  %v3170 = vlaneseq
  %v3171 = vshrl.u32 %v3170, 7
  %v3172 = vsub.s32 %v3169, %v3171
  %v3173 = vrot.slane %v3159, %v3172
  %v3174 = vcombine.low %v3166, %v3173
  %v3175 = vcombine.low %v2850, %v2851
  %v3176 = vcombine.low %v2852, %v2853
  %v3178 = vunpack.c.l.s4 1983009808
  %v3179 = vunpack.c.0.s8 %v3178
  %v3180 = vlaneseq
  %v3181 = vshrl.u32 %v3180, 7
  %v3182 = vsub.s32 %v3179, %v3181
  %v3183 = vrot.slane %v3175, %v3182
  %v3185 = vunpack.c.l.s4 1983009808
  %v3186 = vunpack.c.0.s8 %v3185
  %v3187 = vlaneseq
  %v3188 = vshrl.u32 %v3187, 7
  %v3189 = vsub.s32 %v3186, %v3188
  %v3190 = vrot.slane %v3176, %v3189
  %v3191 = vcombine.low %v3183, %v3190
  %3207 = vmatprep.subr.mxu0 0.0
  %3208 = vmatpush1.msra.mxu0 %v2854
  %3209 = vmatprep.subr.mxu0 0.0
  %3210 = vmatpush1.msra.mxu0 %v2855
  %3211 = vmatprep.subr.mxu0 0.0
  %3212 = vmatpush1.msra.mxu0 %v2856
  %3213 = vmatprep.subr.mxu0 0.0
  %3214 = vmatpush1.msra.mxu0 %v2857
  %3215 = vmatprep.subr.mxu0 0.0
  %3216 = vmatpush1.msra.mxu0 %v2858
  %3217 = vmatprep.subr.mxu0 0.0
  %3218 = vmatpush1.msra.mxu0 %v2859
  %3219 = vmatprep.subr.mxu0 0.0
  %3220 = vmatpush1.msra.mxu0 %v2860
  %3221 = vmatprep.subr.mxu0 0.0
  %3222 = vmatpush1.msra.mxu0 %v2861
  %3223 = vmatprep.subr.mxu0 0.0
  %3224 = vmatpush1.msra.mxu0 %v2862
  %3225 = vmatprep.subr.mxu0 0.0
  %3226 = vmatpush1.msra.mxu0 %v2863
  %3227 = vmatprep.subr.mxu0 0.0
  %3228 = vmatpush1.msra.mxu0 %v2864
  %3229 = vmatprep.subr.mxu0 0.0
  %3230 = vmatpush1.msra.mxu0 %v2865
  %3231 = vmatprep.subr.mxu0 0.0
  %3232 = vmatpush1.msra.mxu0 %v2866
  %3233 = vmatprep.subr.mxu0 0.0
  %3234 = vmatpush1.msra.mxu0 %v2867
  %3235 = vmatprep.subr.mxu0 0.0
  %3236 = vmatpush1.msra.mxu0 %v2868
  %3237 = vmatprep.subr.mxu0 0.0
  %3238 = vmatpush1.msra.mxu0 %v2869
  %3239 = vmatprep.subr.mxu0 0.0
  %3240 = vmatpush1.msra.mxu0 0.0
  %3241 = vmatprep.subr.mxu0 0.0
  %3242 = vmatpush1.msra.mxu0 0.0
  %3243 = vmatprep.subr.mxu0 0.0
  %3244 = vmatpush1.msra.mxu0 0.0
  %3245 = vmatprep.subr.mxu0 0.0
  %3246 = vmatpush1.msra.mxu0 0.0
  %3247 = vmatprep.subr.mxu0 0.0
  %3248 = vmatpush1.msra.mxu0 0.0
  %3249 = vmatprep.subr.mxu0 0.0
  %3250 = vmatpush1.msra.mxu0 0.0
  %3251 = vmatprep.subr.mxu0 0.0
  %3252 = vmatpush1.msra.mxu0 0.0
  %3253 = vmatprep.subr.mxu0 0.0
  %3254 = vmatpush1.msra.mxu0 0.0
  %3255 = vmatprep.subr.mxu0 0.0
  %3256 = vmatpush1.msra.mxu0 0.0
  %3257 = vmatprep.subr.mxu0 0.0
  %3258 = vmatpush1.msra.mxu0 0.0
  %3259 = vmatprep.subr.mxu0 0.0
  %3260 = vmatpush1.msra.mxu0 0.0
  %3261 = vmatprep.subr.mxu0 0.0
  %3262 = vmatpush1.msra.mxu0 0.0
  %3263 = vmatprep.subr.mxu0 0.0
  %3264 = vmatpush1.msra.mxu0 0.0
  %3265 = vmatprep.subr.mxu0 0.0
  %3266 = vmatpush1.msra.mxu0 0.0
  %3267 = vmatprep.subr.mxu0 0.0
  %3268 = vmatpush1.msra.mxu0 0.0
  %3269 = vmatprep.subr.mxu0 0.0
  %3270 = vmatpush1.msra.mxu0 0.0
  %3271 = vmatprep.mubr.f32.mxu0 0.0
  %3272 = vmatmul.mubr.f32.gmra.mrb[0].mxu0 %v2953
  %v3273 = vpop.f32.mrb[0].mxu0
  %v3274 = vadd.f32 %v2875, %v3273
  %v3275 = vpop.f32.mrb[0].mxu0
  %3276 = vmatprep.mubr.f32.mxu0 0.0
  %3277 = vmatmul.mubr.f32.gmra.mrb[0].mxu0 %v2970
  %v3278 = vpop.f32.mrb[0].mxu0
  %v3279 = vadd.f32 %v2875, %v3278
  %v3280 = vpop.f32.mrb[0].mxu0
  %3281 = vmatprep.mubr.f32.mxu0 0.0
  %3282 = vmatmul.mubr.f32.gmra.mrb[0].mxu0 %v2987
  %v3283 = vpop.f32.mrb[0].mxu0
  %v3284 = vadd.f32 %v2875, %v3283
  %v3285 = vpop.f32.mrb[0].mxu0
  %3286 = vmatprep.mubr.f32.mxu0 0.0
  %3287 = vmatmul.mubr.f32.gmra.mrb[0].mxu0 %v3004
  %v3288 = vpop.f32.mrb[0].mxu0
  %v3289 = vadd.f32 %v2875, %v3288
  %v3290 = vpop.f32.mrb[0].mxu0
  %3291 = vmatprep.mubr.f32.mxu0 0.0
  %3292 = vmatmul.mubr.f32.gmra.mrb[0].mxu0 %v3021
  %v3293 = vpop.f32.mrb[0].mxu0
  %v3294 = vadd.f32 %v2875, %v3293
  %v3295 = vpop.f32.mrb[0].mxu0
  %3296 = vmatprep.mubr.f32.mxu0 0.0
  %3297 = vmatmul.mubr.f32.gmra.mrb[0].mxu0 %v3038
  %v3298 = vpop.f32.mrb[0].mxu0
  %v3299 = vadd.f32 %v2875, %v3298
  %v3300 = vpop.f32.mrb[0].mxu0
  %3301 = vmatprep.mubr.f32.mxu0 0.0
  %3302 = vmatmul.mubr.f32.gmra.mrb[0].mxu0 %v3055
  %v3303 = vpop.f32.mrb[0].mxu0
  %v3304 = vadd.f32 %v2875, %v3303
  %v3305 = vpop.f32.mrb[0].mxu0
  %3306 = vmatprep.mubr.f32.mxu0 0.0
  %3307 = vmatmul.mubr.f32.gmra.mrb[0].mxu0 %v3072
  %v3308 = vpop.f32.mrb[0].mxu0
  %v3309 = vadd.f32 %v2875, %v3308
  %v3310 = vpop.f32.mrb[0].mxu0
  %3311 = vmatprep.mubr.f32.mxu0 0.0
  %3312 = vmatmul.mubr.f32.gmra.mrb[0].mxu0 %v3089
  %v3313 = vpop.f32.mrb[0].mxu0
  %v3314 = vadd.f32 %v2875, %v3313
  %v3315 = vpop.f32.mrb[0].mxu0
  %3316 = vmatprep.mubr.f32.mxu0 0.0
  %3317 = vmatmul.mubr.f32.gmra.mrb[0].mxu0 %v3106
  %v3318 = vpop.f32.mrb[0].mxu0
  %v3319 = vadd.f32 %v2875, %v3318
  %v3320 = vpop.f32.mrb[0].mxu0
  %3321 = vmatprep.mubr.f32.mxu0 0.0
  %3322 = vmatmul.mubr.f32.gmra.mrb[0].mxu0 %v3123
  %v3323 = vpop.f32.mrb[0].mxu0
  %v3324 = vadd.f32 %v2875, %v3323
  %v3325 = vpop.f32.mrb[0].mxu0
  %3326 = vmatprep.mubr.f32.mxu0 0.0
  %3327 = vmatmul.mubr.f32.gmra.mrb[0].mxu0 %v3140
  %v3328 = vpop.f32.mrb[0].mxu0
  %v3329 = vadd.f32 %v2875, %v3328
  %v3330 = vpop.f32.mrb[0].mxu0
  %3331 = vmatprep.mubr.f32.mxu0 0.0
  %3332 = vmatmul.mubr.f32.gmra.mrb[0].mxu0 %v3157
  %v3333 = vpop.f32.mrb[0].mxu0
  %v3334 = vadd.f32 %v2875, %v3333
  %v3335 = vpop.f32.mrb[0].mxu0
  %3336 = vmatprep.mubr.f32.mxu0 0.0
  %3337 = vmatmul.mubr.f32.gmra.mrb[0].mxu0 %v3174
  %v3338 = vpop.f32.mrb[0].mxu0
  %v3339 = vadd.f32 %v2875, %v3338
  %v3340 = vpop.f32.mrb[0].mxu0
  %3341 = vmatprep.mubr.f32.mxu0 0.0
  %3342 = vmatmul.mubr.f32.gmra.mrb[0].mxu0 %v3191
  %v3343 = vpop.f32.mrb[0].mxu0
  %v3344 = vadd.f32 %v2875, %v3343
  %v3345 = vpop.f32.mrb[0].mxu0
  %3346 = vdwg.mxu0
  %v3347 = vmax.f32 %v3274, 0.0
  %v3348 = vmax.f32 %v3279, 0.0
  %v3349 = vmax.f32 %v3284, 0.0
  %v3350 = vmax.f32 %v3289, 0.0
  %v3351 = vmax.f32 %v3294, 0.0
  %v3352 = vmax.f32 %v3299, 0.0
  %v3353 = vmax.f32 %v3304, 0.0
  %v3354 = vmax.f32 %v3309, 0.0
  %v3355 = vmax.f32 %v3314, 0.0
  %v3356 = vmax.f32 %v3319, 0.0
  %v3357 = vmax.f32 %v3324, 0.0
  %v3358 = vmax.f32 %v3329, 0.0
  %v3359 = vmax.f32 %v3334, 0.0
  %v3360 = vmax.f32 %v3339, 0.0
  %v3361 = vmax.f32 %v3344, 0.0
  %v3362 = vld [vmem:[%s12] sm:$0xff]
  %v3363 = vld [vmem:[%s12 + $0x8] sm:$0xff]
  %v3364 = vld [vmem:[%s12 + $0x10] sm:$0xff]
  %v3365 = vld [vmem:[%s12 + $0x18] sm:$0xff]
  %v3366 = vld [vmem:[%s12 + $0x20] sm:$0xff]
  %v3367 = vld [vmem:[%s12 + $0x28] sm:$0xff]
  %v3368 = vld [vmem:[%s12 + $0x30] sm:$0xff]
  %v3369 = vld [vmem:[%s12 + $0x38] sm:$0xff]
  %v3370 = vld [vmem:[%s13] sm:$0x1]
  %v3372 = vlaneseq
  %v3373 = vshrl.u32 %v3372, 7
  %v3374 = vsub.s32 0, %v3373
  %v3375 = vrot.slane %v3370, %v3374
  %v3378 = vsel %vm293, %v3347, 0
  %v3381 = vsel %vm293, %v3348, 0
  %v3384 = vsel %vm293, %v3349, 0
  %v3387 = vsel %vm293, %v3350, 0
  %v3390 = vsel %vm293, %v3351, 0
  %v3393 = vsel %vm293, %v3352, 0
  %v3396 = vsel %vm293, %v3353, 0
  %v3399 = vsel %vm293, %v3354, 0
  %v3402 = vsel %vm293, %v3355, 0
  %v3405 = vsel %vm293, %v3356, 0
  %v3408 = vsel %vm293, %v3357, 0
  %v3411 = vsel %vm293, %v3358, 0
  %v3414 = vsel %vm293, %v3359, 0
  %v3417 = vsel %vm293, %v3360, 0
  %v3420 = vsel %vm293, %v3361, 0
  %3422 = vmatprep.subr.mxu0 0.0
  %3423 = vmatpush1.msra.mxu0 %v3362
  %3424 = vmatprep.subr.mxu0 0.0
  %3425 = vmatpush1.msra.mxu0 %v3363
  %3426 = vmatprep.subr.mxu0 0.0
  %3427 = vmatpush1.msra.mxu0 %v3364
  %3428 = vmatprep.subr.mxu0 0.0
  %3429 = vmatpush1.msra.mxu0 %v3365
  %3430 = vmatprep.subr.mxu0 0.0
  %3431 = vmatpush1.msra.mxu0 %v3366
  %3432 = vmatprep.subr.mxu0 0.0
  %3433 = vmatpush1.msra.mxu0 %v3367
  %3434 = vmatprep.subr.mxu0 0.0
  %3435 = vmatpush1.msra.mxu0 %v3368
  %3436 = vmatprep.subr.mxu0 0.0
  %3437 = vmatpush1.msra.mxu0 %v3369
  %3438 = vmatprep.subr.mxu0 0.0
  %3439 = vmatpush1.msra.mxu0 0.0
  %3440 = vmatprep.subr.mxu0 0.0
  %3441 = vmatpush1.msra.mxu0 0.0
  %3442 = vmatprep.subr.mxu0 0.0
  %3443 = vmatpush1.msra.mxu0 0.0
  %3444 = vmatprep.subr.mxu0 0.0
  %3445 = vmatpush1.msra.mxu0 0.0
  %3446 = vmatprep.subr.mxu0 0.0
  %3447 = vmatpush1.msra.mxu0 0.0
  %3448 = vmatprep.subr.mxu0 0.0
  %3449 = vmatpush1.msra.mxu0 0.0
  %3450 = vmatprep.subr.mxu0 0.0
  %3451 = vmatpush1.msra.mxu0 0.0
  %3452 = vmatprep.subr.mxu0 0.0
  %3453 = vmatpush1.msra.mxu0 0.0
  %3454 = vmatprep.subr.mxu0 0.0
  %3455 = vmatpush1.msra.mxu0 0.0
  %3456 = vmatprep.subr.mxu0 0.0
  %3457 = vmatpush1.msra.mxu0 0.0
  %3458 = vmatprep.subr.mxu0 0.0
  %3459 = vmatpush1.msra.mxu0 0.0
  %3460 = vmatprep.subr.mxu0 0.0
  %3461 = vmatpush1.msra.mxu0 0.0
  %3462 = vmatprep.subr.mxu0 0.0
  %3463 = vmatpush1.msra.mxu0 0.0
  %3464 = vmatprep.subr.mxu0 0.0
  %3465 = vmatpush1.msra.mxu0 0.0
  %3466 = vmatprep.subr.mxu0 0.0
  %3467 = vmatpush1.msra.mxu0 0.0
  %3468 = vmatprep.subr.mxu0 0.0
  %3469 = vmatpush1.msra.mxu0 0.0
  %3470 = vmatprep.subr.mxu0 0.0
  %3471 = vmatpush1.msra.mxu0 0.0
  %3472 = vmatprep.subr.mxu0 0.0
  %3473 = vmatpush1.msra.mxu0 0.0
  %3474 = vmatprep.subr.mxu0 0.0
  %3475 = vmatpush1.msra.mxu0 0.0
  %3476 = vmatprep.subr.mxu0 0.0
  %3477 = vmatpush1.msra.mxu0 0.0
  %3478 = vmatprep.subr.mxu0 0.0
  %3479 = vmatpush1.msra.mxu0 0.0
  %3480 = vmatprep.subr.mxu0 0.0
  %3481 = vmatpush1.msra.mxu0 0.0
  %3482 = vmatprep.subr.mxu0 0.0
  %3483 = vmatpush1.msra.mxu0 0.0
  %3484 = vmatprep.subr.mxu0 0.0
  %3485 = vmatpush1.msra.mxu0 0.0
  %3486 = vmatprep.mubr.f32.mxu0 0.0
  %3487 = vmatmul.mubr.f32.gmra.mrb[0].mxu0 %v3378
  %v3488 = vpop.f32.mrb[0].mxu0
  %v3489 = vadd.f32 %v3375, %v3488
  %v3490 = vpop.f32.mrb[0].mxu0
  %3491 = vmatprep.mubr.f32.mxu0 0.0
  %3492 = vmatmul.mubr.f32.gmra.mrb[0].mxu0 %v3381
  %v3493 = vpop.f32.mrb[0].mxu0
  %v3494 = vadd.f32 %v3375, %v3493
  %v3495 = vpop.f32.mrb[0].mxu0
  %3496 = vmatprep.mubr.f32.mxu0 0.0
  %3497 = vmatmul.mubr.f32.gmra.mrb[0].mxu0 %v3384
  %v3498 = vpop.f32.mrb[0].mxu0
  %v3499 = vadd.f32 %v3375, %v3498
  %v3500 = vpop.f32.mrb[0].mxu0
  %3501 = vmatprep.mubr.f32.mxu0 0.0
  %3502 = vmatmul.mubr.f32.gmra.mrb[0].mxu0 %v3387
  %v3503 = vpop.f32.mrb[0].mxu0
  %v3504 = vadd.f32 %v3375, %v3503
  %v3505 = vpop.f32.mrb[0].mxu0
  %3506 = vmatprep.mubr.f32.mxu0 0.0
  %3507 = vmatmul.mubr.f32.gmra.mrb[0].mxu0 %v3390
  %v3508 = vpop.f32.mrb[0].mxu0
  %v3509 = vadd.f32 %v3375, %v3508
  %v3510 = vpop.f32.mrb[0].mxu0
  %3511 = vmatprep.mubr.f32.mxu0 0.0
  %3512 = vmatmul.mubr.f32.gmra.mrb[0].mxu0 %v3393
  %v3513 = vpop.f32.mrb[0].mxu0
  %v3514 = vadd.f32 %v3375, %v3513
  %v3515 = vpop.f32.mrb[0].mxu0
  %3516 = vmatprep.mubr.f32.mxu0 0.0
  %3517 = vmatmul.mubr.f32.gmra.mrb[0].mxu0 %v3396
  %v3518 = vpop.f32.mrb[0].mxu0
  %v3519 = vadd.f32 %v3375, %v3518
  %v3520 = vpop.f32.mrb[0].mxu0
  %3521 = vmatprep.mubr.f32.mxu0 0.0
  %3522 = vmatmul.mubr.f32.gmra.mrb[0].mxu0 %v3399
  %v3523 = vpop.f32.mrb[0].mxu0
  %v3524 = vadd.f32 %v3375, %v3523
  %v3525 = vpop.f32.mrb[0].mxu0
  %3526 = vmatprep.mubr.f32.mxu0 0.0
  %3527 = vmatmul.mubr.f32.gmra.mrb[0].mxu0 %v3402
  %v3528 = vpop.f32.mrb[0].mxu0
  %v3529 = vadd.f32 %v3375, %v3528
  %v3530 = vpop.f32.mrb[0].mxu0
  %3531 = vmatprep.mubr.f32.mxu0 0.0
  %3532 = vmatmul.mubr.f32.gmra.mrb[0].mxu0 %v3405
  %v3533 = vpop.f32.mrb[0].mxu0
  %v3534 = vadd.f32 %v3375, %v3533
  %v3535 = vpop.f32.mrb[0].mxu0
  %3536 = vmatprep.mubr.f32.mxu0 0.0
  %3537 = vmatmul.mubr.f32.gmra.mrb[0].mxu0 %v3408
  %v3538 = vpop.f32.mrb[0].mxu0
  %v3539 = vadd.f32 %v3375, %v3538
  %v3540 = vpop.f32.mrb[0].mxu0
  %3541 = vmatprep.mubr.f32.mxu0 0.0
  %3542 = vmatmul.mubr.f32.gmra.mrb[0].mxu0 %v3411
  %v3543 = vpop.f32.mrb[0].mxu0
  %v3544 = vadd.f32 %v3375, %v3543
  %v3545 = vpop.f32.mrb[0].mxu0
  %3546 = vmatprep.mubr.f32.mxu0 0.0
  %3547 = vmatmul.mubr.f32.gmra.mrb[0].mxu0 %v3414
  %v3548 = vpop.f32.mrb[0].mxu0
  %v3549 = vadd.f32 %v3375, %v3548
  %v3550 = vpop.f32.mrb[0].mxu0
  %3551 = vmatprep.mubr.f32.mxu0 0.0
  %3552 = vmatmul.mubr.f32.gmra.mrb[0].mxu0 %v3417
  %v3553 = vpop.f32.mrb[0].mxu0
  %v3554 = vadd.f32 %v3375, %v3553
  %v3555 = vpop.f32.mrb[0].mxu0
  %3556 = vmatprep.mubr.f32.mxu0 0.0
  %3557 = vmatmul.mubr.f32.gmra.mrb[0].mxu0 %v3420
  %v3558 = vpop.f32.mrb[0].mxu0
  %v3559 = vadd.f32 %v3375, %v3558
  %v3560 = vpop.f32.mrb[0].mxu0
  %3561 = vdwg.mxu0
  %3562 = vst [vmem:[%s14] sm:$0xff] %v3489
  %3563 = vst [vmem:[%s14 + $0x8] sm:$0xff] %v3494
  %3564 = vst [vmem:[%s14 + $0x10] sm:$0xff] %v3499
  %3565 = vst [vmem:[%s14 + $0x18] sm:$0xff] %v3504
  %3566 = vst [vmem:[%s14 + $0x20] sm:$0xff] %v3509
  %3567 = vst [vmem:[%s14 + $0x28] sm:$0xff] %v3514
  %3568 = vst [vmem:[%s14 + $0x30] sm:$0xff] %v3519
  %3569 = vst [vmem:[%s14 + $0x38] sm:$0xff] %v3524
  %3570 = vst [vmem:[%s14 + $0x40] sm:$0xff] %v3529
  %3571 = vst [vmem:[%s14 + $0x48] sm:$0xff] %v3534
  %3572 = vst [vmem:[%s14 + $0x50] sm:$0xff] %v3539
  %3573 = vst [vmem:[%s14 + $0x58] sm:$0xff] %v3544
  %3574 = vst [vmem:[%s14 + $0x60] sm:$0xff] %v3549
  %3575 = vst [vmem:[%s14 + $0x68] sm:$0xff] %v3554
  %3576 = vst [vmem:[%s14 + $0x70] sm:$0xff] %v3559
  // Predicated region
  $region65: #{forward.3} parent=0 // pred_check
    _
  $region66: #{forward.3} parent=0 // pred_check_branch
    %3578 = sbr.rel (0) target = $region68
  $region67: #{forward.3} parent=0 // pred_region
    _
  $region68: #{forward.3} parent=0 // pred_fallthru
    _
  // Predicated region
  $region69: #{forward.3} parent=0 // pred_check
    _
  $region70: #{forward.3} parent=0 // pred_check_branch
    %3580 = sbr.rel (0) target = $region72
  $region71: #{forward.3} parent=0 // pred_region
    _
  $region72: #{forward.3} parent=0 // pred_fallthru
    _

</llo_original>
